<compile_context>
chip_gen: v6e
topology: v6e:2x2x1
jax: 0.10.0
libtpu: 0.0.40
codegen_flags: <defaults>
</compile_context>

<pallas_src>
import functools

import jax
import jax.numpy as jnp
import numpy as np
from jax.experimental import pallas as pl
from jax.experimental.pallas import tpu as pltpu


L_CHUNK = 16  # key-axis chunk: multiple of 8 (f32 sublanes) and of 16 (bf16 sublane packing)


def _round_up(x, m):
    return (x + m - 1) // m * m


def _cdiv(a, b):
    return -(-a // b)


def _pad_axis(x, axis, target):
    pad = target - x.shape[axis]
    if pad <= 0:
        return x
    cfg = [(0, 0)] * x.ndim
    cfg[axis] = (0, pad)
    return jnp.pad(x, cfg)


# ----------------------------- kernel -----------------------------
def att2in_pair2_kernel(
    xt_ref, h_ref, c_ref,
    att_feats_ref, p_att_ref, att_mask_ref,
    prev_feats_ref, p_prev_ref, prev_mask_ref,
    w_hatt2_ref, w_alpha2_ref,
    w_gates_ref, b_gates_ref, w_map_ref, b_map_ref,
    next_h_ref, next_c_ref,
    *, l_chunk,
):
    R = next_h_ref.shape[-1]
    H = w_hatt2_ref.shape[-1] // 2

    xt = xt_ref[...]                       # (Bt, E)
    h = h_ref[...]                         # (Bt, R)

    # Both h->att projections in ONE MXU matmul (biases pre-folded into p_att / p_prev).
    att_h2 = jnp.dot(h, w_hatt2_ref[...], preferred_element_type=jnp.float32)   # (Bt, 2H)

    def attention_pool(att_h, w_alpha, feats_ref, patt_ref, mask_ref):
        # Online (flash-style) masked softmax + weighted feature sum, chunked over the key
        # axis so the (Bt, L, H) / (Bt, L, A) temporaries never exist at full L.
        # Logits / exp-weights / mask stay in a (Bt, Lc, 1) layout (keys in sublanes) to
        # match the (Bt, Lc, A) feature tiles -> no cross-lane relayout per chunk.
        bt, lp, a = feats_ref.shape
        n_chunks = lp // l_chunk

        def body(ci, carry):
            m, s, acc = carry
            start = pl.multiple_of(ci * l_chunk, l_chunk)
            p_att_c = patt_ref[:, pl.ds(start, l_chunk), :].astype(jnp.float32)   # (Bt,Lc,H)
            feats_c = feats_ref[:, pl.ds(start, l_chunk), :].astype(jnp.float32)  # (Bt,Lc,A)
            mask_c = mask_ref[:, pl.ds(start, l_chunk), :]                        # (Bt,Lc,1)

            dot = jnp.tanh(p_att_c + att_h[:, None, :])                           # (Bt,Lc,H)
            logits = jnp.sum(dot * w_alpha, axis=-1, keepdims=True)               # (Bt,Lc,1)
            m_new = jnp.maximum(m, jnp.max(logits, axis=1))                       # (Bt,1)
            # multiplicative masking == reference's softmax -> mask -> renormalize
            p = jnp.exp(logits - m_new[:, :, None]) * mask_c                      # (Bt,Lc,1)
            scale = jnp.exp(m - m_new)                                            # (Bt,1)
            s_new = scale * s + jnp.sum(p, axis=1)                                # (Bt,1)
            acc_new = scale * acc + jnp.sum(p * feats_c, axis=1)                  # (Bt,A)
            return m_new, s_new, acc_new

        m0 = jnp.full((bt, 1), -1e30, jnp.float32)
        s0 = jnp.zeros((bt, 1), jnp.float32)
        acc0 = jnp.zeros((bt, a), jnp.float32)
        m, s, acc = jax.lax.fori_loop(0, n_chunks, body, (m0, s0, acc0), unroll=True)
        # exact division (once per pool) instead of the approximate reciprocal.
        return acc / s

    att_res = attention_pool(att_h2[:, :H], w_alpha2_ref[:, :H],
                             att_feats_ref, p_att_ref, att_mask_ref)
    att_prev = attention_pool(att_h2[:, H:], w_alpha2_ref[:, H:],
                              prev_feats_ref, p_prev_ref, prev_mask_ref)

    # Fused i2h + h2h: [xt, h] concatenated along lanes in-kernel (no host HBM round trip),
    # single (Bt, E+R) x (E+R, 5R) MXU matmul, biases pre-summed on host.
    s_all = jnp.dot(jnp.concatenate([xt, h], axis=-1), w_gates_ref[...],
                    preferred_element_type=jnp.float32) + b_gates_ref[...]

    sig = jax.nn.sigmoid(s_all[:, :3 * R])
    in_gate = sig[:, :R]
    forget_gate = sig[:, R:2 * R]
    out_gate = sig[:, 2 * R:]

    # attention_map and a2c pre-fused into a single (2A, 2R) matrix (one K=2A MXU matmul).
    it = (s_all[:, 3 * R:]
          + jnp.dot(jnp.concatenate([att_res, att_prev], axis=-1), w_map_ref[...],
                    preferred_element_type=jnp.float32)
          + b_map_ref[...])
    in_transform = jnp.maximum(it[:, :R], it[:, R:])

    next_c = forget_gate * c_ref[...] + in_gate * in_transform
    next_h = out_gate * jnp.tanh(next_c)
    next_c_ref[...] = next_c
    # TODO(synk): nn.Dropout is identity in eval mode; output == next_h (no third buffer).
    next_h_ref[...] = next_h


# ----------------------------- host-side one-time fusion -----------------------------
def fuse_params(p):
    """One-time algebraic fusion of the module's Linear layers. Call ONCE, outside the
    decode loop (review item: hoist param fusion out of the per-step wrapper)."""
    return dict(
        # both h->att projections stacked along the output dim; both alpha_net weights too
        w_hatt2=jnp.concatenate([p['w_h2att'], p['w_ph2att']], axis=1),      # (R, 2H)
        w_alpha2=jnp.concatenate([p['w_alpha'], p['w_palpha']], axis=1),     # (1, 2H)
        b_h2att=p['b_h2att'],          # folded into p_att_feats (prepare_att_inputs)
        b_ph2att=p['b_ph2att'],        # folded into p_prev_states (per-step prologue)
        # i2h and h2h fused over an in-kernel concat of [xt, h]
        w_gates=jnp.concatenate([p['w_i2h'], p['w_h2h']], axis=0),           # (E+R, 5R)
        b_gates=p['b_i2h'] + p['b_h2h'],                                     # (1, 5R)
        # attention_map folded into a2c: a single (2A, 2R) matmul in-kernel
        w_map=p['w_attmap'] @ p['w_a2c'],                                    # (2A, 2R)
        b_map=p['b_attmap'] @ p['w_a2c'] + p['b_a2c'],                       # (1, 2R)
        # alpha_net / prev alpha_net biases dropped: softmax is shift-invariant.
    )


def prepare_att_inputs(fp, att_feats, p_att_feats, att_masks=None,
                       stream_dtype=jnp.bfloat16, l_chunk=L_CHUNK):
    """Once-per-sequence prep of the attention stream: fold b_h2att into the precomputed
    p_att_feats, pad the key axis to a multiple of the kernel chunk, cast the big streamed
    tensors to bf16, reshape the mask to (B, L, 1) (keys in sublanes)."""
    B, L, _ = att_feats.shape
    Lp = _round_up(max(L, l_chunk), l_chunk)
    if att_masks is None:
        att_masks = jnp.ones((B, L), jnp.float32)
    att_feats_s = _pad_axis(att_feats, 1, Lp).astype(stream_dtype)
    p_att_s = _pad_axis(p_att_feats + fp['b_h2att'], 1, Lp).astype(stream_dtype)
    mask_s = _pad_axis(att_masks.astype(jnp.float32), 1, Lp)[..., None]
    return att_feats_s, p_att_s, mask_s


def _choose_batch_tile(B, Lp, Pp, A, H, E, R, stream_bytes, batch_tile,
                       vmem_stream_budget=32 * 1024 * 1024, max_tile=64):
    """Largest batch tile (multiple of 8) whose double-buffered streamed blocks fit the VMEM
    budget, capped at max_tile; keeps >=2 grid blocks when B allows so both v7x TensorCores
    get work (no-op on single-TC v5e/v6e)."""
    if batch_tile is None:
        per_row = (2 * (Lp + Pp) * (A + H + 2) * stream_bytes   # double-buffered att streams
                   + 2 * (E + 2 * R) * 4                        # xt, h, c
                   + 2 * 2 * R * 4)                             # next_h, next_c
        bt = vmem_stream_budget // max(per_row, 1)
        bt = int(max(8, min(max_tile, bt // 8 * 8)))
    else:
        bt = max(8, batch_tile // 8 * 8)
    bt = min(bt, _round_up(B, 8))
    if B > 8 and _cdiv(B, bt) < 2:
        bt = max(8, _round_up(_cdiv(B, 2), 8))
    return bt


# ----------------------------- per-step wrapper -----------------------------
def att2in_pair2_core(fp, xt, fc_feats, att_feats, p_att_feats, state, att_masks,
                      prev_states, p_prev_states, prev_states_masks,
                      *, batch_tile=None, l_chunk=L_CHUNK, stream_dtype=jnp.bfloat16,
                      vmem_limit_bytes=44 * 1024 * 1024):
    """One decode step.  `fp` = fuse_params(params) (computed once); the attention triplet
    (att_feats, p_att_feats, att_masks) must come from prepare_att_inputs (once per
    sequence).  fc_feats is accepted for signature fidelity but, as in PyTorch, unused."""
    del fc_feats
    h_prev = state[0][-1]
    c_prev = state[1][-1]
    B, R = h_prev.shape
    E = xt.shape[-1]
    Lp, A = att_feats.shape[1], att_feats.shape[2]
    H = p_att_feats.shape[-1]
    P = prev_states.shape[1]
    assert Lp % l_chunk == 0, "attention inputs must be prepared with the same l_chunk"

    # Per-step prologue for the (small) previous-states stream: fold bias, pad, cast, mask.
    Pp = _round_up(max(P, l_chunk), l_chunk)
    if prev_states_masks is None:
        prev_states_masks = jnp.ones((B, P), jnp.float32)
    prev_feats = _pad_axis(prev_states, 1, Pp).astype(stream_dtype)
    p_prev = _pad_axis(p_prev_states + fp['b_ph2att'], 1, Pp).astype(stream_dtype)
    prev_mask = _pad_axis(prev_states_masks.astype(jnp.float32), 1, Pp)[..., None]

    stream_bytes = np.dtype(stream_dtype).itemsize
    Bt = _choose_batch_tile(B, Lp, Pp, A, H, E, R, stream_bytes, batch_tile)
    num_b = _cdiv(B, Bt)

    def batched(*tail):
        n = len(tail)
        return pl.BlockSpec((Bt,) + tuple(tail), lambda b, n=n: (b,) + (0,) * n)

    def resident(arr):
        # full-array block, constant index -> stays VMEM-resident across grid steps
        n = arr.ndim
        return pl.BlockSpec(tuple(arr.shape), lambda b, n=n: (0,) * n)

    in_specs = [
        batched(E), batched(R), batched(R),
        batched(Lp, A), batched(Lp, H), batched(Lp, 1),
        batched(Pp, A), batched(Pp, H), batched(Pp, 1),
        resident(fp['w_hatt2']), resident(fp['w_alpha2']),
        resident(fp['w_gates']), resident(fp['b_gates']),
        resident(fp['w_map']), resident(fp['b_map']),
    ]
    out_specs = (pl.BlockSpec((Bt, R), lambda b: (b, 0)),
                 pl.BlockSpec((Bt, R), lambda b: (b, 0)))
    out_shape = (jax.ShapeDtypeStruct((B, R), jnp.float32),
                 jax.ShapeDtypeStruct((B, R), jnp.float32))

    next_h, next_c = pl.pallas_call(
        functools.partial(att2in_pair2_kernel, l_chunk=l_chunk),
        out_shape=out_shape,
        grid_spec=pltpu.PrefetchScalarGridSpec(
            num_scalar_prefetch=0,
            grid=(num_b,),
            in_specs=in_specs,
            out_specs=out_specs,
        ),
        compiler_params=pltpu.CompilerParams(
            dimension_semantics=("parallel",),          # megacore / v7x dual-TC sharding
            vmem_limit_bytes=vmem_limit_bytes,          # headroom under v7x's 64 MiB VMEM
        ),
    )(xt, h_prev, c_prev,
      att_feats, p_att_feats, att_masks,
      prev_feats, p_prev, prev_mask,
      fp['w_hatt2'], fp['w_alpha2'],
      fp['w_gates'], fp['b_gates'], fp['w_map'], fp['b_map'])

    # dropout is identity in eval mode -> output == next_h
    return next_h, (next_h[None], next_c[None])


# ---------------- pure-JAX reference (faithful to the PyTorch math, all f32) ----------------
def reference(params, xt, att_feats, p_att_feats, state, att_masks,
              prev_states, p_prev_states, prev_states_masks):
    h = state[0][-1]
    c = state[1][-1]
    R = h.shape[-1]

    def attn(feats, p_att, mask, wh, bh, wa, ba):
        att_h = h @ wh + bh
        dot = jnp.tanh(p_att + att_h[:, None, :])
        logits = jnp.einsum('blh,h->bl', dot, wa.reshape(-1)) + ba.reshape(())
        w = jax.nn.softmax(logits, axis=1)
        w = w * mask
        w = w / w.sum(1, keepdims=True)
        return jnp.einsum('bl,bla->ba', w, feats)

    att_res = attn(att_feats, p_att_feats, att_masks,
                   params['w_h2att'], params['b_h2att'], params['w_alpha'], params['b_alpha'])
    att_prev = attn(prev_states, p_prev_states, prev_states_masks,
                    params['w_ph2att'], params['b_ph2att'], params['w_palpha'], params['b_palpha'])
    att_map = jnp.concatenate([att_res, att_prev], 1) @ params['w_attmap'] + params['b_attmap']

    s = xt @ params['w_i2h'] + params['b_i2h'] + h @ params['w_h2h'] + params['b_h2h']
    sig = jax.nn.sigmoid(s[:, :3 * R])
    ig, fg, og = sig[:, :R], sig[:, R:2 * R], sig[:, 2 * R:3 * R]
    it = s[:, 3 * R:5 * R] + att_map @ params['w_a2c'] + params['b_a2c']
    itr = jnp.maximum(it[:, :R], it[:, R:])
    next_c = fg * c + ig * itr
    next_h = og * jnp.tanh(next_c)
    return next_h, next_h, next_c


if __name__ == "__main__":
    # small, lane-aligned feature sizes; L, P unpadded to exercise the key-axis padding path;
    # B=16 so the auto batch-tile picks Bt=8 -> 2 grid blocks (v7x dual-TC path).
    B, E, R, A, H, L, P = 16, 128, 128, 128, 128, 12, 6

    key = jax.random.PRNGKey(0)
    keys = jax.random.split(key, 32)
    f = lambda k, shape: jax.random.normal(k, shape, jnp.float32) * 0.05

    params = dict(
        w_h2att=f(keys[0], (R, H)),   b_h2att=f(keys[1], (1, H)),
        w_alpha=f(keys[2], (1, H)),   b_alpha=f(keys[3], (1, 1)),
        w_ph2att=f(keys[4], (R, H)),  b_ph2att=f(keys[5], (1, H)),
        w_palpha=f(keys[6], (1, H)),  b_palpha=f(keys[7], (1, 1)),
        w_attmap=f(keys[8], (2 * A, A)), b_attmap=f(keys[9], (1, A)),
        w_i2h=f(keys[10], (E, 5 * R)), b_i2h=f(keys[11], (1, 5 * R)),
        w_h2h=f(keys[12], (R, 5 * R)), b_h2h=f(keys[13], (1, 5 * R)),
        w_a2c=f(keys[14], (A, 2 * R)), b_a2c=f(keys[15], (1, 2 * R)),
    )

    xt = f(keys[16], (B, E))
    fc_feats = f(keys[17], (B, A))              # unused by the forward pass (kept for fidelity)
    att_feats = f(keys[18], (B, L, A))
    p_att_feats = f(keys[19], (B, L, H))
    state = (f(keys[20], (1, B, R)), f(keys[21], (1, B, R)))
    att_masks = (jax.random.uniform(keys[25], (B, L)) > 0.2).astype(jnp.float32)
    att_masks = att_masks.at[:, 0].set(1.0)     # at least one valid key per row
    prev_states = f(keys[22], (B, P, A))
    p_prev_states = f(keys[23], (B, P, H))
    prev_states_masks = (jax.random.uniform(keys[24], (B, P)) > 0.3).astype(jnp.float32)
    prev_states_masks = prev_states_masks.at[:, 0].set(1.0)

    # Hoisted out of the decode loop (review): param fusion once; att-stream prep once/seq.
    fp = fuse_params(params)
    att_feats_s, p_att_s, att_mask_s = prepare_att_inputs(fp, att_feats, p_att_feats, att_masks)

    out, (nh, nc) = att2in_pair2_core(fp, xt, fc_feats, att_feats_s, p_att_s, state,
                                      att_mask_s, prev_states, p_prev_states,
                                      prev_states_masks)
    jax.block_until_ready((out, nh, nc))

    ref_out, ref_h, ref_c = reference(params, xt, att_feats, p_att_feats, state,
                                      att_masks, prev_states, p_prev_states, prev_states_masks)
    # Tolerance covers bf16 streaming of the attention feature tensors plus fp-associativity
    # shifts from the algebraic pre-fusions; all matmul / softmax accumulation stays f32.
    assert jnp.allclose(out, ref_out, atol=2e-3, rtol=2e-2), float(jnp.max(jnp.abs(out - ref_out)))
    assert jnp.allclose(nh[0], ref_h, atol=2e-3, rtol=2e-2)
    assert jnp.allclose(nc[0], ref_c, atol=2e-3, rtol=2e-2)

    print("KERNEL_OK")
</pallas_src>

<mosaic_0001>
module attributes {stable_mosaic.version = 11 : i64} {
  func.func @att2in_pair2_kernel(%arg0: i32, %arg1: memref<8x128xf32, #tpu.memory_space<vmem>>, %arg2: memref<8x128xf32, #tpu.memory_space<vmem>>, %arg3: memref<8x128xf32, #tpu.memory_space<vmem>>, %arg4: memref<8x16x128xbf16, #tpu.memory_space<vmem>>, %arg5: memref<8x16x128xbf16, #tpu.memory_space<vmem>>, %arg6: memref<8x16x1xf32, #tpu.memory_space<vmem>>, %arg7: memref<8x16x128xbf16, #tpu.memory_space<vmem>>, %arg8: memref<8x16x128xbf16, #tpu.memory_space<vmem>>, %arg9: memref<8x16x1xf32, #tpu.memory_space<vmem>>, %arg10: memref<128x256xf32, #tpu.memory_space<vmem>>, %arg11: memref<1x256xf32, #tpu.memory_space<vmem>>, %arg12: memref<256x640xf32, #tpu.memory_space<vmem>>, %arg13: memref<1x640xf32, #tpu.memory_space<vmem>>, %arg14: memref<256x256xf32, #tpu.memory_space<vmem>>, %arg15: memref<1x256xf32, #tpu.memory_space<vmem>>, %arg16: memref<8x128xf32, #tpu.memory_space<vmem>>, %arg17: memref<8x128xf32, #tpu.memory_space<vmem>>) attributes {dimension_semantics = [#tpu.dimension_semantics<parallel>], iteration_bounds = array<i64: 2>, scalar_prefetch = 0 : i64, scratch_operands = 0 : i64, tpu.core_type = #tpu.core_type<tc>, window_params = [{transform_indices = @transform_0, window_bounds = array<i64: 8, 128>}, {transform_indices = @transform_1, window_bounds = array<i64: 8, 128>}, {transform_indices = @transform_2, window_bounds = array<i64: 8, 128>}, {transform_indices = @transform_3, window_bounds = array<i64: 8, 16, 128>}, {transform_indices = @transform_4, window_bounds = array<i64: 8, 16, 128>}, {transform_indices = @transform_5, window_bounds = array<i64: 8, 16, 1>}, {transform_indices = @transform_6, window_bounds = array<i64: 8, 16, 128>}, {transform_indices = @transform_7, window_bounds = array<i64: 8, 16, 128>}, {transform_indices = @transform_8, window_bounds = array<i64: 8, 16, 1>}, {pipeline_mode = #tpu.pipeline_mode<synchronous>, transform_indices = @transform_9, window_bounds = array<i64: 128, 256>}, {pipeline_mode = #tpu.pipeline_mode<synchronous>, transform_indices = @transform_10, window_bounds = array<i64: 1, 256>}, {pipeline_mode = #tpu.pipeline_mode<synchronous>, transform_indices = @transform_11, window_bounds = array<i64: 256, 640>}, {pipeline_mode = #tpu.pipeline_mode<synchronous>, transform_indices = @transform_12, window_bounds = array<i64: 1, 640>}, {pipeline_mode = #tpu.pipeline_mode<synchronous>, transform_indices = @transform_13, window_bounds = array<i64: 256, 256>}, {pipeline_mode = #tpu.pipeline_mode<synchronous>, transform_indices = @transform_14, window_bounds = array<i64: 1, 256>}, {transform_indices = @transform_15, window_bounds = array<i64: 8, 128>}, {transform_indices = @transform_16, window_bounds = array<i64: 8, 128>}]} {
    %c0 = arith.constant 0 : index
    %c0_0 = arith.constant 0 : index
    %0 = vector.load %arg1[%c0, %c0_0] : memref<8x128xf32, #tpu.memory_space<vmem>>, vector<8x128xf32>
    %c0_1 = arith.constant 0 : index
    %c0_2 = arith.constant 0 : index
    %1 = vector.load %arg2[%c0_1, %c0_2] : memref<8x128xf32, #tpu.memory_space<vmem>>, vector<8x128xf32>
    %c0_3 = arith.constant 0 : index
    %c0_4 = arith.constant 0 : index
    %2 = vector.load %arg10[%c0_3, %c0_4] : memref<128x256xf32, #tpu.memory_space<vmem>>, vector<128x256xf32>
    %cst = arith.constant dense<0.000000e+00> : vector<8x256xf32>
    %3 = tpu.matmul %1, %2, %cst {dimension_numbers = #tpu.dot_dimension_numbers<[1], [0], [0], [1], [0, 0, 1, 1], [], []>} : vector<8x128xf32>, vector<128x256xf32>, vector<8x256xf32> -> vector<8x256xf32>
    %4 = vector.extract_strided_slice %3 {offsets = [0, 0], sizes = [8, 128], strides = [1, 1]} : vector<8x256xf32> to vector<8x128xf32>
    %c0_5 = arith.constant 0 : index
    %c0_6 = arith.constant 0 : index
    %5 = vector.load %arg11[%c0_5, %c0_6] : memref<1x256xf32, #tpu.memory_space<vmem>>, vector<1x128xf32>
    %cst_7 = arith.constant -1.000000e+30 : f32
    %6 = vector.broadcast %cst_7 : f32 to vector<8x1xf32>
    %cst_8 = arith.constant 0.000000e+00 : f32
    %7 = vector.broadcast %cst_8 : f32 to vector<8x1xf32>
    %cst_9 = arith.constant 0.000000e+00 : f32
    %8 = vector.broadcast %cst_9 : f32 to vector<8x128xf32>
    %c0_i32 = arith.constant 0 : i32
    %c16_i32 = arith.constant 16 : i32
    %9 = arith.muli %c0_i32, %c16_i32 : i32
    %10 = tpu.assume_multiple %9, 16 : i32
    %c0_10 = arith.constant 0 : index
    %11 = arith.index_cast %10 : i32 to index
    %c0_11 = arith.constant 0 : index
    %12 = vector.load %arg5[%c0_10, %11, %c0_11] : memref<8x16x128xbf16, #tpu.memory_space<vmem>>, vector<8x16x128xbf16>
    %13 = arith.extf %12 : vector<8x16x128xbf16> to vector<8x16x128xf32>
    %c0_12 = arith.constant 0 : index
    %14 = arith.index_cast %10 : i32 to index
    %c0_13 = arith.constant 0 : index
    %15 = vector.load %arg4[%c0_12, %14, %c0_13] : memref<8x16x128xbf16, #tpu.memory_space<vmem>>, vector<8x16x128xbf16>
    %16 = arith.extf %15 : vector<8x16x128xbf16> to vector<8x16x128xf32>
    %c0_14 = arith.constant 0 : index
    %17 = arith.index_cast %10 : i32 to index
    %c0_15 = arith.constant 0 : index
    %18 = vector.load %arg6[%c0_14, %17, %c0_15] : memref<8x16x1xf32, #tpu.memory_space<vmem>>, vector<8x16x1xf32>
    %19 = vector.shape_cast %4 : vector<8x128xf32> to vector<8x1x128xf32>
    %20 = vector.broadcast %19 : vector<8x1x128xf32> to vector<8x16x128xf32>
    %21 = arith.addf %13, %20 : vector<8x16x128xf32>
    %22 = math.tanh %21 : vector<8x16x128xf32>
    %23 = vector.shape_cast %5 : vector<1x128xf32> to vector<1x1x128xf32>
    %24 = vector.broadcast %23 : vector<1x1x128xf32> to vector<8x16x128xf32>
    %25 = arith.mulf %22, %24 : vector<8x16x128xf32>
    %cst_16 = arith.constant dense<0.000000e+00> : vector<8x16xf32>
    %26 = vector.multi_reduction <add>, %25, %cst_16 [2] : vector<8x16x128xf32> to vector<8x16xf32>
    %27 = vector.shape_cast %26 : vector<8x16xf32> to vector<8x16x1xf32>
    %cst_17 = arith.constant dense<0xFF800000> : vector<8x1xf32>
    %28 = vector.multi_reduction <maximumf>, %27, %cst_17 [1] : vector<8x16x1xf32> to vector<8x1xf32>
    %29 = arith.maximumf %6, %28 : vector<8x1xf32>
    %30 = vector.shape_cast %29 : vector<8x1xf32> to vector<8x1x1xf32>
    %31 = vector.broadcast %30 : vector<8x1x1xf32> to vector<8x16x1xf32>
    %32 = arith.subf %27, %31 : vector<8x16x1xf32>
    %33 = math.exp %32 : vector<8x16x1xf32>
    %34 = arith.mulf %33, %18 : vector<8x16x1xf32>
    %35 = arith.subf %6, %29 : vector<8x1xf32>
    %36 = math.exp %35 : vector<8x1xf32>
    %37 = arith.mulf %36, %7 : vector<8x1xf32>
    %cst_18 = arith.constant dense<0.000000e+00> : vector<8x1xf32>
    %38 = vector.multi_reduction <add>, %34, %cst_18 [1] : vector<8x16x1xf32> to vector<8x1xf32>
    %39 = arith.addf %37, %38 : vector<8x1xf32>
    %40 = vector.broadcast %36 : vector<8x1xf32> to vector<8x128xf32>
    %41 = arith.mulf %40, %8 : vector<8x128xf32>
    %42 = vector.broadcast %34 : vector<8x16x1xf32> to vector<8x16x128xf32>
    %43 = arith.mulf %42, %16 : vector<8x16x128xf32>
    %cst_19 = arith.constant dense<0.000000e+00> : vector<8x128xf32>
    %44 = vector.multi_reduction <add>, %43, %cst_19 [1] : vector<8x16x128xf32> to vector<8x128xf32>
    %45 = arith.addf %41, %44 : vector<8x128xf32>
    %c1_i32 = arith.constant 1 : i32
    %46 = vector.broadcast %39 : vector<8x1xf32> to vector<8x128xf32>
    %47 = arith.divf %45, %46 : vector<8x128xf32>
    %48 = vector.extract_strided_slice %3 {offsets = [0, 128], sizes = [8, 128], strides = [1, 1]} : vector<8x256xf32> to vector<8x128xf32>
    %c0_20 = arith.constant 0 : index
    %c128 = arith.constant 128 : index
    %49 = vector.load %arg11[%c0_20, %c128] : memref<1x256xf32, #tpu.memory_space<vmem>>, vector<1x128xf32>
    %cst_21 = arith.constant -1.000000e+30 : f32
    %50 = vector.broadcast %cst_21 : f32 to vector<8x1xf32>
    %cst_22 = arith.constant 0.000000e+00 : f32
    %51 = vector.broadcast %cst_22 : f32 to vector<8x1xf32>
    %cst_23 = arith.constant 0.000000e+00 : f32
    %52 = vector.broadcast %cst_23 : f32 to vector<8x128xf32>
    %c0_i32_24 = arith.constant 0 : i32
    %c16_i32_25 = arith.constant 16 : i32
    %53 = arith.muli %c0_i32_24, %c16_i32_25 : i32
    %54 = tpu.assume_multiple %53, 16 : i32
    %c0_26 = arith.constant 0 : index
    %55 = arith.index_cast %54 : i32 to index
    %c0_27 = arith.constant 0 : index
    %56 = vector.load %arg8[%c0_26, %55, %c0_27] : memref<8x16x128xbf16, #tpu.memory_space<vmem>>, vector<8x16x128xbf16>
    %57 = arith.extf %56 : vector<8x16x128xbf16> to vector<8x16x128xf32>
    %c0_28 = arith.constant 0 : index
    %58 = arith.index_cast %54 : i32 to index
    %c0_29 = arith.constant 0 : index
    %59 = vector.load %arg7[%c0_28, %58, %c0_29] : memref<8x16x128xbf16, #tpu.memory_space<vmem>>, vector<8x16x128xbf16>
    %60 = arith.extf %59 : vector<8x16x128xbf16> to vector<8x16x128xf32>
    %c0_30 = arith.constant 0 : index
    %61 = arith.index_cast %54 : i32 to index
    %c0_31 = arith.constant 0 : index
    %62 = vector.load %arg9[%c0_30, %61, %c0_31] : memref<8x16x1xf32, #tpu.memory_space<vmem>>, vector<8x16x1xf32>
    %63 = vector.shape_cast %48 : vector<8x128xf32> to vector<8x1x128xf32>
    %64 = vector.broadcast %63 : vector<8x1x128xf32> to vector<8x16x128xf32>
    %65 = arith.addf %57, %64 : vector<8x16x128xf32>
    %66 = math.tanh %65 : vector<8x16x128xf32>
    %67 = vector.shape_cast %49 : vector<1x128xf32> to vector<1x1x128xf32>
    %68 = vector.broadcast %67 : vector<1x1x128xf32> to vector<8x16x128xf32>
    %69 = arith.mulf %66, %68 : vector<8x16x128xf32>
    %cst_32 = arith.constant dense<0.000000e+00> : vector<8x16xf32>
    %70 = vector.multi_reduction <add>, %69, %cst_32 [2] : vector<8x16x128xf32> to vector<8x16xf32>
    %71 = vector.shape_cast %70 : vector<8x16xf32> to vector<8x16x1xf32>
    %cst_33 = arith.constant dense<0xFF800000> : vector<8x1xf32>
    %72 = vector.multi_reduction <maximumf>, %71, %cst_33 [1] : vector<8x16x1xf32> to vector<8x1xf32>
    %73 = arith.maximumf %50, %72 : vector<8x1xf32>
    %74 = vector.shape_cast %73 : vector<8x1xf32> to vector<8x1x1xf32>
    %75 = vector.broadcast %74 : vector<8x1x1xf32> to vector<8x16x1xf32>
    %76 = arith.subf %71, %75 : vector<8x16x1xf32>
    %77 = math.exp %76 : vector<8x16x1xf32>
    %78 = arith.mulf %77, %62 : vector<8x16x1xf32>
    %79 = arith.subf %50, %73 : vector<8x1xf32>
    %80 = math.exp %79 : vector<8x1xf32>
    %81 = arith.mulf %80, %51 : vector<8x1xf32>
    %cst_34 = arith.constant dense<0.000000e+00> : vector<8x1xf32>
    %82 = vector.multi_reduction <add>, %78, %cst_34 [1] : vector<8x16x1xf32> to vector<8x1xf32>
    %83 = arith.addf %81, %82 : vector<8x1xf32>
    %84 = vector.broadcast %80 : vector<8x1xf32> to vector<8x128xf32>
    %85 = arith.mulf %84, %52 : vector<8x128xf32>
    %86 = vector.broadcast %78 : vector<8x16x1xf32> to vector<8x16x128xf32>
    %87 = arith.mulf %86, %60 : vector<8x16x128xf32>
    %cst_35 = arith.constant dense<0.000000e+00> : vector<8x128xf32>
    %88 = vector.multi_reduction <add>, %87, %cst_35 [1] : vector<8x16x128xf32> to vector<8x128xf32>
    %89 = arith.addf %85, %88 : vector<8x128xf32>
    %c1_i32_36 = arith.constant 1 : i32
    %90 = vector.broadcast %83 : vector<8x1xf32> to vector<8x128xf32>
    %91 = arith.divf %89, %90 : vector<8x128xf32>
    %92 = tpu.concatenate %0, %1 in 1 : vector<8x128xf32>, vector<8x128xf32> -> vector<8x256xf32>
    %c0_37 = arith.constant 0 : index
    %c0_38 = arith.constant 0 : index
    %93 = vector.load %arg12[%c0_37, %c0_38] : memref<256x640xf32, #tpu.memory_space<vmem>>, vector<256x640xf32>
    %cst_39 = arith.constant dense<0.000000e+00> : vector<8x640xf32>
    %94 = tpu.matmul %92, %93, %cst_39 {dimension_numbers = #tpu.dot_dimension_numbers<[1], [0], [0], [1], [0, 0, 1, 1], [], []>} : vector<8x256xf32>, vector<256x640xf32>, vector<8x640xf32> -> vector<8x640xf32>
    %c0_40 = arith.constant 0 : index
    %c0_41 = arith.constant 0 : index
    %95 = vector.load %arg13[%c0_40, %c0_41] : memref<1x640xf32, #tpu.memory_space<vmem>>, vector<1x640xf32>
    %96 = vector.broadcast %95 : vector<1x640xf32> to vector<8x640xf32>
    %97 = arith.addf %94, %96 : vector<8x640xf32>
    %98 = vector.extract_strided_slice %97 {offsets = [0, 0], sizes = [8, 384], strides = [1, 1]} : vector<8x640xf32> to vector<8x384xf32>
    %99 = arith.negf %98 : vector<8x384xf32>
    %100 = math.exp %99 : vector<8x384xf32>
    %cst_42 = arith.constant 1.000000e+00 : f32
    %101 = vector.broadcast %cst_42 : f32 to vector<8x384xf32>
    %102 = arith.addf %101, %100 : vector<8x384xf32>
    %103 = arith.divf %101, %102 : vector<8x384xf32>
    %104 = vector.extract_strided_slice %103 {offsets = [0, 0], sizes = [8, 128], strides = [1, 1]} : vector<8x384xf32> to vector<8x128xf32>
    %105 = vector.extract_strided_slice %103 {offsets = [0, 128], sizes = [8, 128], strides = [1, 1]} : vector<8x384xf32> to vector<8x128xf32>
    %106 = vector.extract_strided_slice %103 {offsets = [0, 256], sizes = [8, 128], strides = [1, 1]} : vector<8x384xf32> to vector<8x128xf32>
    %107 = vector.extract_strided_slice %97 {offsets = [0, 384], sizes = [8, 256], strides = [1, 1]} : vector<8x640xf32> to vector<8x256xf32>
    %108 = tpu.concatenate %47, %91 in 1 : vector<8x128xf32>, vector<8x128xf32> -> vector<8x256xf32>
    %c0_43 = arith.constant 0 : index
    %c0_44 = arith.constant 0 : index
    %109 = vector.load %arg14[%c0_43, %c0_44] : memref<256x256xf32, #tpu.memory_space<vmem>>, vector<256x256xf32>
    %cst_45 = arith.constant dense<0.000000e+00> : vector<8x256xf32>
    %110 = tpu.matmul %108, %109, %cst_45 {dimension_numbers = #tpu.dot_dimension_numbers<[1], [0], [0], [1], [0, 0, 1, 1], [], []>} : vector<8x256xf32>, vector<256x256xf32>, vector<8x256xf32> -> vector<8x256xf32>
    %111 = arith.addf %107, %110 : vector<8x256xf32>
    %c0_46 = arith.constant 0 : index
    %c0_47 = arith.constant 0 : index
    %112 = vector.load %arg15[%c0_46, %c0_47] : memref<1x256xf32, #tpu.memory_space<vmem>>, vector<1x256xf32>
    %113 = vector.broadcast %112 : vector<1x256xf32> to vector<8x256xf32>
    %114 = arith.addf %111, %113 : vector<8x256xf32>
    %115 = vector.extract_strided_slice %114 {offsets = [0, 0], sizes = [8, 128], strides = [1, 1]} : vector<8x256xf32> to vector<8x128xf32>
    %116 = vector.extract_strided_slice %114 {offsets = [0, 128], sizes = [8, 128], strides = [1, 1]} : vector<8x256xf32> to vector<8x128xf32>
    %117 = arith.maximumf %115, %116 : vector<8x128xf32>
    %c0_48 = arith.constant 0 : index
    %c0_49 = arith.constant 0 : index
    %118 = vector.load %arg3[%c0_48, %c0_49] : memref<8x128xf32, #tpu.memory_space<vmem>>, vector<8x128xf32>
    %119 = arith.mulf %105, %118 : vector<8x128xf32>
    %120 = arith.mulf %104, %117 : vector<8x128xf32>
    %121 = arith.addf %119, %120 : vector<8x128xf32>
    %122 = math.tanh %121 : vector<8x128xf32>
    %123 = arith.mulf %106, %122 : vector<8x128xf32>
    %c0_50 = arith.constant 0 : index
    %c0_51 = arith.constant 0 : index
    %124 = vector.load %arg17[%c0_50, %c0_51] : memref<8x128xf32, #tpu.memory_space<vmem>>, vector<8x128xf32>
    tpu.vector_store %arg17[%c0_50, %c0_51], %121 {strides = array<i32>} : memref<8x128xf32, #tpu.memory_space<vmem>>, vector<8x128xf32>,
    %c0_52 = arith.constant 0 : index
    %c0_53 = arith.constant 0 : index
    %125 = vector.load %arg16[%c0_52, %c0_53] : memref<8x128xf32, #tpu.memory_space<vmem>>, vector<8x128xf32>
    tpu.vector_store %arg16[%c0_52, %c0_53], %123 {strides = array<i32>} : memref<8x128xf32, #tpu.memory_space<vmem>>, vector<8x128xf32>,
    return
  }
  func.func @transform_0(%arg0: i32) -> (i32, i32) {
    %c0_i32 = arith.constant 0 : i32
    %c0_i32_0 = arith.constant 0 : i32
    return %arg0, %c0_i32 : i32, i32
  }
  func.func @transform_1(%arg0: i32) -> (i32, i32) {
    %c0_i32 = arith.constant 0 : i32
    %c0_i32_0 = arith.constant 0 : i32
    return %arg0, %c0_i32 : i32, i32
  }
  func.func @transform_2(%arg0: i32) -> (i32, i32) {
    %c0_i32 = arith.constant 0 : i32
    %c0_i32_0 = arith.constant 0 : i32
    return %arg0, %c0_i32 : i32, i32
  }
  func.func @transform_3(%arg0: i32) -> (i32, i32, i32) {
    %c0_i32 = arith.constant 0 : i32
    %c0_i32_0 = arith.constant 0 : i32
    %c0_i32_1 = arith.constant 0 : i32
    return %arg0, %c0_i32, %c0_i32_0 : i32, i32, i32
  }
  func.func @transform_4(%arg0: i32) -> (i32, i32, i32) {
    %c0_i32 = arith.constant 0 : i32
    %c0_i32_0 = arith.constant 0 : i32
    %c0_i32_1 = arith.constant 0 : i32
    return %arg0, %c0_i32, %c0_i32_0 : i32, i32, i32
  }
  func.func @transform_5(%arg0: i32) -> (i32, i32, i32) {
    %c0_i32 = arith.constant 0 : i32
    %c0_i32_0 = arith.constant 0 : i32
    %c0_i32_1 = arith.constant 0 : i32
    return %arg0, %c0_i32, %c0_i32_0 : i32, i32, i32
  }
  func.func @transform_6(%arg0: i32) -> (i32, i32, i32) {
    %c0_i32 = arith.constant 0 : i32
    %c0_i32_0 = arith.constant 0 : i32
    %c0_i32_1 = arith.constant 0 : i32
    return %arg0, %c0_i32, %c0_i32_0 : i32, i32, i32
  }
  func.func @transform_7(%arg0: i32) -> (i32, i32, i32) {
    %c0_i32 = arith.constant 0 : i32
    %c0_i32_0 = arith.constant 0 : i32
    %c0_i32_1 = arith.constant 0 : i32
    return %arg0, %c0_i32, %c0_i32_0 : i32, i32, i32
  }
  func.func @transform_8(%arg0: i32) -> (i32, i32, i32) {
    %c0_i32 = arith.constant 0 : i32
    %c0_i32_0 = arith.constant 0 : i32
    %c0_i32_1 = arith.constant 0 : i32
    return %arg0, %c0_i32, %c0_i32_0 : i32, i32, i32
  }
  func.func @transform_9(%arg0: i32) -> (i32, i32) {
    %c0_i32 = arith.constant 0 : i32
    %c0_i32_0 = arith.constant 0 : i32
    %c0_i32_1 = arith.constant 0 : i32
    return %c0_i32, %c0_i32_0 : i32, i32
  }
  func.func @transform_10(%arg0: i32) -> (i32, i32) {
    %c0_i32 = arith.constant 0 : i32
    %c0_i32_0 = arith.constant 0 : i32
    %c0_i32_1 = arith.constant 0 : i32
    return %c0_i32, %c0_i32_0 : i32, i32
  }
  func.func @transform_11(%arg0: i32) -> (i32, i32) {
    %c0_i32 = arith.constant 0 : i32
    %c0_i32_0 = arith.constant 0 : i32
    %c0_i32_1 = arith.constant 0 : i32
    return %c0_i32, %c0_i32_0 : i32, i32
  }
  func.func @transform_12(%arg0: i32) -> (i32, i32) {
    %c0_i32 = arith.constant 0 : i32
    %c0_i32_0 = arith.constant 0 : i32
    %c0_i32_1 = arith.constant 0 : i32
    return %c0_i32, %c0_i32_0 : i32, i32
  }
  func.func @transform_13(%arg0: i32) -> (i32, i32) {
    %c0_i32 = arith.constant 0 : i32
    %c0_i32_0 = arith.constant 0 : i32
    %c0_i32_1 = arith.constant 0 : i32
    return %c0_i32, %c0_i32_0 : i32, i32
  }
  func.func @transform_14(%arg0: i32) -> (i32, i32) {
    %c0_i32 = arith.constant 0 : i32
    %c0_i32_0 = arith.constant 0 : i32
    %c0_i32_1 = arith.constant 0 : i32
    return %c0_i32, %c0_i32_0 : i32, i32
  }
  func.func @transform_15(%arg0: i32) -> (i32, i32) {
    %c0_i32 = arith.constant 0 : i32
    %c0_i32_0 = arith.constant 0 : i32
    return %arg0, %c0_i32 : i32, i32
  }
  func.func @transform_16(%arg0: i32) -> (i32, i32) {
    %c0_i32 = arith.constant 0 : i32
    %c0_i32_0 = arith.constant 0 : i32
    return %arg0, %c0_i32 : i32, i32
  }
}

</mosaic_0001>

<llo_original>
// kernel: tpu_custom_call.1
$region0: #{tpu_custom_call.1}
  #allocation0 [shape = 'u32[]', space=smem, size = 0x4, offset = 0x4, fixed_abs, tag = 'smem constant byte address 0x4 - core index']
  #allocation1 [shape = 'u32[144,128]{1,0:T(1,128)}', space=vmem, size = 0x12000, scoped, tag = 'internal scratch']
  %s0 = inlined_call_operand.vmem [shape: f32[16,128], index: 0, kind: input, shape index: {}]
  %s1 = inlined_call_operand.vmem [shape: f32[16,128], index: 1, kind: input, shape index: {}]
  %s2 = inlined_call_operand.vmem [shape: f32[16,128], index: 2, kind: input, shape index: {}]
  %s3 = inlined_call_operand.hbm [shape: bf16[16,16,128], index: 3, kind: input, shape index: {}]
  %s4 = inlined_call_operand.hbm [shape: bf16[16,16,128], index: 4, kind: input, shape index: {}]
  %s5 = inlined_call_operand.vmem [shape: f32[16,16,1], index: 5, kind: input, shape index: {}]
  %s6 = inlined_call_operand.hbm [shape: bf16[16,16,128], index: 6, kind: input, shape index: {}]
  %s7 = inlined_call_operand.hbm [shape: bf16[16,16,128], index: 7, kind: input, shape index: {}]
  %s8 = inlined_call_operand.vmem [shape: f32[16,16,1], index: 8, kind: input, shape index: {}]
  %s9 = inlined_call_operand.hbm [shape: f32[128,256], index: 9, kind: input, shape index: {}]
  %s10 = inlined_call_operand.vmem [shape: f32[1,256], index: 10, kind: input, shape index: {}]
  %s11 = inlined_call_operand.hbm [shape: f32[256,640], index: 11, kind: input, shape index: {}]
  %s12 = inlined_call_operand.vmem [shape: f32[1,640], index: 12, kind: input, shape index: {}]
  %s13 = inlined_call_operand.vmem [shape: f32[256,256], index: 13, kind: input, shape index: {}]
  %s14 = inlined_call_operand.hbm [shape: f32[1,256], index: 14, kind: input, shape index: {}]
  %s15 = inlined_call_operand.hbm [shape: f32[16,128], index: 15, kind: output, shape index: {0}]
  %s16 = inlined_call_operand.hbm [shape: f32[16,128], index: 16, kind: output, shape index: {1}]
  %17 = xla_tuple %s15, %s16
  %s18 = sld [smem:[#allocation0]]
  $region129: #{tpu_custom_call.1} parent=0
    _
  %s20 = ssub.s32 1, %s18
  %s21 = scalar_select 0, %s20, %s18
  $region1: #{tpu_custom_call.1} parent=0
    #allocation2 [shape = 'u8[65536]{0}', space=vmem, size = 0x10000, scoped, tag = 'input window, operand 3']
    #allocation3 [shape = 's32[2]{0}', space=sflag, size = 0x8, scoped, tag = 'scoped memory for tpu_custom_call.1']
    #allocation4 [shape = 's32[2]{0}', space=sflag, size = 0x8, scoped, tag = 'scoped memory for tpu_custom_call.1']
    #allocation5 [shape = 'u8[65536]{0}', space=vmem, size = 0x10000, scoped, tag = 'input window, operand 4']
    #allocation6 [shape = 's32[2]{0}', space=sflag, size = 0x8, scoped, tag = 'scoped memory for tpu_custom_call.1']
    #allocation7 [shape = 'u8[65536]{0}', space=vmem, size = 0x10000, scoped, tag = 'input window, operand 6']
    #allocation8 [shape = 'u8[65536]{0}', space=vmem, size = 0x10000, scoped, tag = 'input window, operand 7']
    #allocation9 [shape = 's32[2]{0}', space=sflag, size = 0x8, scoped, tag = 'scoped memory for tpu_custom_call.1']
    #allocation10 [shape = 'u8[131072]{0}', space=vmem, size = 0x20000, scoped, tag = 'input window, operand 9, single buffered']
    #allocation11 [shape = 'u8[655360]{0}', space=vmem, size = 0xa0000, scoped, tag = 'input window, operand 11, single buffered']
    #allocation12 [shape = 's32[1]{0}', space=sflag, size = 0x4, scoped, tag = 'scoped memory for tpu_custom_call.1']
    #allocation13 [shape = 'u8[1024]{0}', space=vmem, size = 0x400, scoped, tag = 'input window, operand 14, single buffered']
    #allocation14 [shape = 'u8[8192]{0}', space=vmem, size = 0x2000, scoped, tag = 'output window, operand 0']
    #allocation15 [shape = 'u8[8192]{0}', space=vmem, size = 0x2000, scoped, tag = 'output window, operand 1']
    #allocation16 [shape = 's32[2]{0}', space=sflag, size = 0x8, scoped, tag = 'scoped memory for tpu_custom_call.1']
    %22 = vsyncpa [#allocation3], 0
    %s23 = scalar_lea.sflag [#allocation3], 1
    %24 = vsyncpa %s23, 0
    %25 = vsyncpa [#allocation6], 0
    %s26 = scalar_lea.sflag [#allocation6], 1
    %27 = vsyncpa %s26, 0
    %28 = vsyncpa [#allocation9], 0
    %s29 = scalar_lea.sflag [#allocation9], 1
    %30 = vsyncpa %s29, 0
    %31 = vsyncpa [#allocation12], 0
    %32 = vsyncpa [#allocation4], 0
    %s33 = scalar_lea.sflag [#allocation4], 1
    %34 = vsyncpa %s33, 0
    %35 = vsyncpa [#allocation16], 0
    %s36 = scalar_lea.sflag [#allocation16], 1
    %37 = vsyncpa %s36, 0
    loop: start=0, step=1, limit=4
    $region2: #{tpu_custom_call.1} parent=1 // loop_pre_header
      _
    $region3: #{tpu_custom_call.1} parent=1 // loop_header
      %s39 = sphi 0, %s43
      %p40 = scmp.ge.s32.totalorder %s39, 4
      %s49 = sphi 0, %s51
      %s52 = sphi 0, %s49
      %s53 = sphi 0, %s52
      %s69 = sphi 0, %s53
      %s75 = sphi 0, %s77
      %s78 = sphi 0, %s75
      %s79 = sphi 0, %s78
      %s95 = sphi 0, %s79
      %s101 = sphi 0, %s103
      %s104 = sphi 0, %s101
      %s105 = sphi 0, %s104
      %s121 = sphi 0, %s105
      %s127 = sphi 0, %s129
      %s130 = sphi 0, %s127
      %s131 = sphi 0, %s130
      %s147 = sphi 0, %s131
      %s153 = sphi 0, %s155
      %s156 = sphi 0, %s153
      %s157 = sphi 0, %s156
      %s173 = sphi 0, %s157
      %s179 = sphi 0, %s181
      %s182 = sphi 0, %s179
      %s183 = sphi 0, %s182
      %s199 = sphi 0, %s183
      %s205 = sphi 0, %s207
      %s208 = sphi 0, %s205
      %s209 = sphi 0, %s208
      %s225 = sphi 0, %s209
      %s231 = sphi 0, %s233
      %s234 = sphi 0, %s231
      %s235 = sphi 0, %s234
      %s251 = sphi 0, %s235
      %s257 = sphi 0, %s259
      %s260 = sphi 0, %s257
      %s261 = sphi 0, %s260
      %s277 = sphi 0, %s261
      %s281 = sphi 0, %s281
      %s283 = sphi 0, %s281
      %s284 = sphi 0, %s283
      %s298 = sphi 0, %s284
      %s302 = sphi 0, %s302
      %s304 = sphi 0, %s302
      %s305 = sphi 0, %s304
      %s319 = sphi 0, %s305
      %s323 = sphi 0, %s323
      %s325 = sphi 0, %s323
      %s326 = sphi 0, %s325
      %s340 = sphi 0, %s326
      %s344 = sphi 0, %s344
      %s346 = sphi 0, %s344
      %s347 = sphi 0, %s346
      %s361 = sphi 0, %s347
      %s365 = sphi 0, %s365
      %s367 = sphi 0, %s365
      %s368 = sphi 0, %s367
      %s382 = sphi 0, %s368
      %s386 = sphi 0, %s386
      %s388 = sphi 0, %s386
      %s389 = sphi 0, %s388
      %s403 = sphi 0, %s389
      %s409 = sphi 0, %s411
      %s412 = sphi 0, %s409
      %s413 = sphi 0, %s412
      %s429 = sphi 0, %s413
      %s435 = sphi 0, %s437
      %s438 = sphi 0, %s435
      %s439 = sphi 0, %s438
      %s455 = sphi 0, %s439
    $region4: #{tpu_custom_call.1} parent=1 // loop_header_branch
      %42 = sbr.rel (%p40) target = $region8
    $region5: #{tpu_custom_call.1} parent=1 // loop_body
      %s44 = ssub.s32 %s39, 1
      %s45 = ssub.s32 %s39, 2
      %s46 = sadd.s32 %s39, 1
      %s47 = ssub.s32 %s39, %s46
      %p48 = scmp.eq.s32.totalorder %s47, 0
      %s50 = sadd.s32 %s49, 1
      %s51 = scalar_select %p48, %s49, %s50
      %p54 = pneg %p48
      %p55 = scmp.eq.s32.totalorder %s39, 1
      %p56 = por %p54, %p55
      %p57 = scmp.ne.s32.totalorder %s49, %s52
      %p58 = scmp.eq.s32.totalorder %s39, 0
      %p59 = por %p57, %p58
      %p60 = scmp.ne.s32.totalorder %s49, %s52
      %p61 = scmp.eq.s32.totalorder %s44, 1
      %p62 = por %p60, %p61
      %p63 = scmp.ne.s32.totalorder %s52, %s53
      %p64 = scmp.eq.s32.totalorder %s44, 0
      %p65 = por %p63, %p64
      %p66 = scmp.ne.s32.totalorder %s52, %s53
      %p67 = scmp.eq.s32.totalorder %s45, 1
      %p68 = por %p66, %p67
      %p70 = scmp.ne.s32.totalorder %s53, %s69
      %p71 = scmp.eq.s32.totalorder %s45, 0
      %p72 = por %p70, %p71
      %s73 = ssub.s32 %s39, %s46
      %p74 = scmp.eq.s32.totalorder %s73, 0
      %s76 = sadd.s32 %s75, 1
      %s77 = scalar_select %p74, %s75, %s76
      %p80 = pneg %p74
      %p81 = scmp.eq.s32.totalorder %s39, 1
      %p82 = por %p80, %p81
      %p83 = scmp.ne.s32.totalorder %s75, %s78
      %p84 = scmp.eq.s32.totalorder %s39, 0
      %p85 = por %p83, %p84
      %p86 = scmp.ne.s32.totalorder %s75, %s78
      %p87 = scmp.eq.s32.totalorder %s44, 1
      %p88 = por %p86, %p87
      %p89 = scmp.ne.s32.totalorder %s78, %s79
      %p90 = scmp.eq.s32.totalorder %s44, 0
      %p91 = por %p89, %p90
      %p92 = scmp.ne.s32.totalorder %s78, %s79
      %p93 = scmp.eq.s32.totalorder %s45, 1
      %p94 = por %p92, %p93
      %p96 = scmp.ne.s32.totalorder %s79, %s95
      %p97 = scmp.eq.s32.totalorder %s45, 0
      %p98 = por %p96, %p97
      %s99 = ssub.s32 %s39, %s46
      %p100 = scmp.eq.s32.totalorder %s99, 0
      %s102 = sadd.s32 %s101, 1
      %s103 = scalar_select %p100, %s101, %s102
      %p106 = pneg %p100
      %p107 = scmp.eq.s32.totalorder %s39, 1
      %p108 = por %p106, %p107
      %p109 = scmp.ne.s32.totalorder %s101, %s104
      %p110 = scmp.eq.s32.totalorder %s39, 0
      %p111 = por %p109, %p110
      %p112 = scmp.ne.s32.totalorder %s101, %s104
      %p113 = scmp.eq.s32.totalorder %s44, 1
      %p114 = por %p112, %p113
      %p115 = scmp.ne.s32.totalorder %s104, %s105
      %p116 = scmp.eq.s32.totalorder %s44, 0
      %p117 = por %p115, %p116
      %p118 = scmp.ne.s32.totalorder %s104, %s105
      %p119 = scmp.eq.s32.totalorder %s45, 1
      %p120 = por %p118, %p119
      %p122 = scmp.ne.s32.totalorder %s105, %s121
      %p123 = scmp.eq.s32.totalorder %s45, 0
      %p124 = por %p122, %p123
      %s125 = ssub.s32 %s39, %s46
      %p126 = scmp.eq.s32.totalorder %s125, 0
      %s128 = sadd.s32 %s127, 1
      %s129 = scalar_select %p126, %s127, %s128
      %p132 = pneg %p126
      %p133 = scmp.eq.s32.totalorder %s39, 1
      %p134 = por %p132, %p133
      %p135 = scmp.ne.s32.totalorder %s127, %s130
      %p136 = scmp.eq.s32.totalorder %s39, 0
      %p137 = por %p135, %p136
      %p138 = scmp.ne.s32.totalorder %s127, %s130
      %p139 = scmp.eq.s32.totalorder %s44, 1
      %p140 = por %p138, %p139
      %p141 = scmp.ne.s32.totalorder %s130, %s131
      %p142 = scmp.eq.s32.totalorder %s44, 0
      %p143 = por %p141, %p142
      %p144 = scmp.ne.s32.totalorder %s130, %s131
      %p145 = scmp.eq.s32.totalorder %s45, 1
      %p146 = por %p144, %p145
      %p148 = scmp.ne.s32.totalorder %s131, %s147
      %p149 = scmp.eq.s32.totalorder %s45, 0
      %p150 = por %p148, %p149
      %s151 = ssub.s32 %s39, %s46
      %p152 = scmp.eq.s32.totalorder %s151, 0
      %s154 = sadd.s32 %s153, 1
      %s155 = scalar_select %p152, %s153, %s154
      %p158 = pneg %p152
      %p159 = scmp.eq.s32.totalorder %s39, 1
      %p160 = por %p158, %p159
      %p161 = scmp.ne.s32.totalorder %s153, %s156
      %p162 = scmp.eq.s32.totalorder %s39, 0
      %p163 = por %p161, %p162
      %p164 = scmp.ne.s32.totalorder %s153, %s156
      %p165 = scmp.eq.s32.totalorder %s44, 1
      %p166 = por %p164, %p165
      %p167 = scmp.ne.s32.totalorder %s156, %s157
      %p168 = scmp.eq.s32.totalorder %s44, 0
      %p169 = por %p167, %p168
      %p170 = scmp.ne.s32.totalorder %s156, %s157
      %p171 = scmp.eq.s32.totalorder %s45, 1
      %p172 = por %p170, %p171
      %p174 = scmp.ne.s32.totalorder %s157, %s173
      %p175 = scmp.eq.s32.totalorder %s45, 0
      %p176 = por %p174, %p175
      %s177 = ssub.s32 %s39, %s46
      %p178 = scmp.eq.s32.totalorder %s177, 0
      %s180 = sadd.s32 %s179, 1
      %s181 = scalar_select %p178, %s179, %s180
      %p184 = pneg %p178
      %p185 = scmp.eq.s32.totalorder %s39, 1
      %p186 = por %p184, %p185
      %p187 = scmp.ne.s32.totalorder %s179, %s182
      %p188 = scmp.eq.s32.totalorder %s39, 0
      %p189 = por %p187, %p188
      %p190 = scmp.ne.s32.totalorder %s179, %s182
      %p191 = scmp.eq.s32.totalorder %s44, 1
      %p192 = por %p190, %p191
      %p193 = scmp.ne.s32.totalorder %s182, %s183
      %p194 = scmp.eq.s32.totalorder %s44, 0
      %p195 = por %p193, %p194
      %p196 = scmp.ne.s32.totalorder %s182, %s183
      %p197 = scmp.eq.s32.totalorder %s45, 1
      %p198 = por %p196, %p197
      %p200 = scmp.ne.s32.totalorder %s183, %s199
      %p201 = scmp.eq.s32.totalorder %s45, 0
      %p202 = por %p200, %p201
      %s203 = ssub.s32 %s39, %s46
      %p204 = scmp.eq.s32.totalorder %s203, 0
      %s206 = sadd.s32 %s205, 1
      %s207 = scalar_select %p204, %s205, %s206
      %p210 = pneg %p204
      %p211 = scmp.eq.s32.totalorder %s39, 1
      %p212 = por %p210, %p211
      %p213 = scmp.ne.s32.totalorder %s205, %s208
      %p214 = scmp.eq.s32.totalorder %s39, 0
      %p215 = por %p213, %p214
      %p216 = scmp.ne.s32.totalorder %s205, %s208
      %p217 = scmp.eq.s32.totalorder %s44, 1
      %p218 = por %p216, %p217
      %p219 = scmp.ne.s32.totalorder %s208, %s209
      %p220 = scmp.eq.s32.totalorder %s44, 0
      %p221 = por %p219, %p220
      %p222 = scmp.ne.s32.totalorder %s208, %s209
      %p223 = scmp.eq.s32.totalorder %s45, 1
      %p224 = por %p222, %p223
      %p226 = scmp.ne.s32.totalorder %s209, %s225
      %p227 = scmp.eq.s32.totalorder %s45, 0
      %p228 = por %p226, %p227
      %s229 = ssub.s32 %s39, %s46
      %p230 = scmp.eq.s32.totalorder %s229, 0
      %s232 = sadd.s32 %s231, 1
      %s233 = scalar_select %p230, %s231, %s232
      %p236 = pneg %p230
      %p237 = scmp.eq.s32.totalorder %s39, 1
      %p238 = por %p236, %p237
      %p239 = scmp.ne.s32.totalorder %s231, %s234
      %p240 = scmp.eq.s32.totalorder %s39, 0
      %p241 = por %p239, %p240
      %p242 = scmp.ne.s32.totalorder %s231, %s234
      %p243 = scmp.eq.s32.totalorder %s44, 1
      %p244 = por %p242, %p243
      %p245 = scmp.ne.s32.totalorder %s234, %s235
      %p246 = scmp.eq.s32.totalorder %s44, 0
      %p247 = por %p245, %p246
      %p248 = scmp.ne.s32.totalorder %s234, %s235
      %p249 = scmp.eq.s32.totalorder %s45, 1
      %p250 = por %p248, %p249
      %p252 = scmp.ne.s32.totalorder %s235, %s251
      %p253 = scmp.eq.s32.totalorder %s45, 0
      %p254 = por %p252, %p253
      %s255 = ssub.s32 %s39, %s46
      %p256 = scmp.eq.s32.totalorder %s255, 0
      %s258 = sadd.s32 %s257, 1
      %s259 = scalar_select %p256, %s257, %s258
      %p262 = pneg %p256
      %p263 = scmp.eq.s32.totalorder %s39, 1
      %p264 = por %p262, %p263
      %p265 = scmp.ne.s32.totalorder %s257, %s260
      %p266 = scmp.eq.s32.totalorder %s39, 0
      %p267 = por %p265, %p266
      %p268 = scmp.ne.s32.totalorder %s257, %s260
      %p269 = scmp.eq.s32.totalorder %s44, 1
      %p270 = por %p268, %p269
      %p271 = scmp.ne.s32.totalorder %s260, %s261
      %p272 = scmp.eq.s32.totalorder %s44, 0
      %p273 = por %p271, %p272
      %p274 = scmp.ne.s32.totalorder %s260, %s261
      %p275 = scmp.eq.s32.totalorder %s45, 1
      %p276 = por %p274, %p275
      %p278 = scmp.ne.s32.totalorder %s261, %s277
      %p279 = scmp.eq.s32.totalorder %s45, 0
      %p280 = por %p278, %p279
      %s282 = sadd.s32 %s281, 1
      %p285 = scmp.eq.s32.totalorder %s39, 1
      %p286 = scmp.ne.s32.totalorder %s281, %s283
      %p287 = scmp.eq.s32.totalorder %s39, 0
      %p288 = por %p286, %p287
      %p289 = scmp.ne.s32.totalorder %s281, %s283
      %p290 = scmp.eq.s32.totalorder %s44, 1
      %p291 = por %p289, %p290
      %p292 = scmp.ne.s32.totalorder %s283, %s284
      %p293 = scmp.eq.s32.totalorder %s44, 0
      %p294 = por %p292, %p293
      %p295 = scmp.ne.s32.totalorder %s283, %s284
      %p296 = scmp.eq.s32.totalorder %s45, 1
      %p297 = por %p295, %p296
      %p299 = scmp.ne.s32.totalorder %s284, %s298
      %p300 = scmp.eq.s32.totalorder %s45, 0
      %p301 = por %p299, %p300
      %s303 = sadd.s32 %s302, 1
      %p306 = scmp.eq.s32.totalorder %s39, 1
      %p307 = scmp.ne.s32.totalorder %s302, %s304
      %p308 = scmp.eq.s32.totalorder %s39, 0
      %p309 = por %p307, %p308
      %p310 = scmp.ne.s32.totalorder %s302, %s304
      %p311 = scmp.eq.s32.totalorder %s44, 1
      %p312 = por %p310, %p311
      %p313 = scmp.ne.s32.totalorder %s304, %s305
      %p314 = scmp.eq.s32.totalorder %s44, 0
      %p315 = por %p313, %p314
      %p316 = scmp.ne.s32.totalorder %s304, %s305
      %p317 = scmp.eq.s32.totalorder %s45, 1
      %p318 = por %p316, %p317
      %p320 = scmp.ne.s32.totalorder %s305, %s319
      %p321 = scmp.eq.s32.totalorder %s45, 0
      %p322 = por %p320, %p321
      %s324 = sadd.s32 %s323, 1
      %p327 = scmp.eq.s32.totalorder %s39, 1
      %p328 = scmp.ne.s32.totalorder %s323, %s325
      %p329 = scmp.eq.s32.totalorder %s39, 0
      %p330 = por %p328, %p329
      %p331 = scmp.ne.s32.totalorder %s323, %s325
      %p332 = scmp.eq.s32.totalorder %s44, 1
      %p333 = por %p331, %p332
      %p334 = scmp.ne.s32.totalorder %s325, %s326
      %p335 = scmp.eq.s32.totalorder %s44, 0
      %p336 = por %p334, %p335
      %p337 = scmp.ne.s32.totalorder %s325, %s326
      %p338 = scmp.eq.s32.totalorder %s45, 1
      %p339 = por %p337, %p338
      %p341 = scmp.ne.s32.totalorder %s326, %s340
      %p342 = scmp.eq.s32.totalorder %s45, 0
      %p343 = por %p341, %p342
      %s345 = sadd.s32 %s344, 1
      %p348 = scmp.eq.s32.totalorder %s39, 1
      %p349 = scmp.ne.s32.totalorder %s344, %s346
      %p350 = scmp.eq.s32.totalorder %s39, 0
      %p351 = por %p349, %p350
      %p352 = scmp.ne.s32.totalorder %s344, %s346
      %p353 = scmp.eq.s32.totalorder %s44, 1
      %p354 = por %p352, %p353
      %p355 = scmp.ne.s32.totalorder %s346, %s347
      %p356 = scmp.eq.s32.totalorder %s44, 0
      %p357 = por %p355, %p356
      %p358 = scmp.ne.s32.totalorder %s346, %s347
      %p359 = scmp.eq.s32.totalorder %s45, 1
      %p360 = por %p358, %p359
      %p362 = scmp.ne.s32.totalorder %s347, %s361
      %p363 = scmp.eq.s32.totalorder %s45, 0
      %p364 = por %p362, %p363
      %s366 = sadd.s32 %s365, 1
      %p369 = scmp.eq.s32.totalorder %s39, 1
      %p370 = scmp.ne.s32.totalorder %s365, %s367
      %p371 = scmp.eq.s32.totalorder %s39, 0
      %p372 = por %p370, %p371
      %p373 = scmp.ne.s32.totalorder %s365, %s367
      %p374 = scmp.eq.s32.totalorder %s44, 1
      %p375 = por %p373, %p374
      %p376 = scmp.ne.s32.totalorder %s367, %s368
      %p377 = scmp.eq.s32.totalorder %s44, 0
      %p378 = por %p376, %p377
      %p379 = scmp.ne.s32.totalorder %s367, %s368
      %p380 = scmp.eq.s32.totalorder %s45, 1
      %p381 = por %p379, %p380
      %p383 = scmp.ne.s32.totalorder %s368, %s382
      %p384 = scmp.eq.s32.totalorder %s45, 0
      %p385 = por %p383, %p384
      %s387 = sadd.s32 %s386, 1
      %p390 = scmp.eq.s32.totalorder %s39, 1
      %p391 = scmp.ne.s32.totalorder %s386, %s388
      %p392 = scmp.eq.s32.totalorder %s39, 0
      %p393 = por %p391, %p392
      %p394 = scmp.ne.s32.totalorder %s386, %s388
      %p395 = scmp.eq.s32.totalorder %s44, 1
      %p396 = por %p394, %p395
      %p397 = scmp.ne.s32.totalorder %s388, %s389
      %p398 = scmp.eq.s32.totalorder %s44, 0
      %p399 = por %p397, %p398
      %p400 = scmp.ne.s32.totalorder %s388, %s389
      %p401 = scmp.eq.s32.totalorder %s45, 1
      %p402 = por %p400, %p401
      %p404 = scmp.ne.s32.totalorder %s389, %s403
      %p405 = scmp.eq.s32.totalorder %s45, 0
      %p406 = por %p404, %p405
      %s407 = ssub.s32 %s39, %s46
      %p408 = scmp.eq.s32.totalorder %s407, 0
      %s410 = sadd.s32 %s409, 1
      %s411 = scalar_select %p408, %s409, %s410
      %p414 = pneg %p408
      %p415 = scmp.eq.s32.totalorder %s39, 1
      %p416 = por %p414, %p415
      %p417 = scmp.ne.s32.totalorder %s409, %s412
      %p418 = scmp.eq.s32.totalorder %s39, 0
      %p419 = por %p417, %p418
      %p420 = scmp.ne.s32.totalorder %s409, %s412
      %p421 = scmp.eq.s32.totalorder %s44, 1
      %p422 = por %p420, %p421
      %p423 = scmp.ne.s32.totalorder %s412, %s413
      %p424 = scmp.eq.s32.totalorder %s44, 0
      %p425 = por %p423, %p424
      %p426 = scmp.ne.s32.totalorder %s412, %s413
      %p427 = scmp.eq.s32.totalorder %s45, 1
      %p428 = por %p426, %p427
      %p430 = scmp.ne.s32.totalorder %s413, %s429
      %p431 = scmp.eq.s32.totalorder %s45, 0
      %p432 = por %p430, %p431
      %s433 = ssub.s32 %s39, %s46
      %p434 = scmp.eq.s32.totalorder %s433, 0
      %s436 = sadd.s32 %s435, 1
      %s437 = scalar_select %p434, %s435, %s436
      %p440 = pneg %p434
      %p441 = scmp.eq.s32.totalorder %s39, 1
      %p442 = por %p440, %p441
      %p443 = scmp.ne.s32.totalorder %s435, %s438
      %p444 = scmp.eq.s32.totalorder %s39, 0
      %p445 = por %p443, %p444
      %p446 = scmp.ne.s32.totalorder %s435, %s438
      %p447 = scmp.eq.s32.totalorder %s44, 1
      %p448 = por %p446, %p447
      %p449 = scmp.ne.s32.totalorder %s438, %s439
      %p450 = scmp.eq.s32.totalorder %s44, 0
      %p451 = por %p449, %p450
      %p452 = scmp.ne.s32.totalorder %s438, %s439
      %p453 = scmp.eq.s32.totalorder %s45, 1
      %p454 = por %p452, %p453
      %p456 = scmp.ne.s32.totalorder %s439, %s455
      %p457 = scmp.eq.s32.totalorder %s45, 0
      %p458 = por %p456, %p457
      %p459 = scmp.le.s32.totalorder 1, %s39
      %p460 = scmp.lt.s32.totalorder %s39, 3
      %p461 = pnand %p459, %p460
      %p462 = pneg %p461
      // Predicated region
      $region9: #{tpu_custom_call.1} parent=5 // pred_check
        _
      $region10: #{tpu_custom_call.1} parent=5 // pred_check_branch
        %464 = sbr.rel (%p461) target = $region12
      $region11: #{tpu_custom_call.1} parent=5 // pred_region
        %s465 = ssub.s32 %s39, 1
        // Predicated region
        $region13: #{tpu_custom_call.1} parent=11 // pred_check
          %p466 = pneg %p294
        $region14: #{tpu_custom_call.1} parent=11 // pred_check_branch
          %468 = sbr.rel (%p466) target = $region16
        $region15: #{tpu_custom_call.1} parent=11 // pred_region
          %s470 = ssub.s32 4096, 4096
          %471 = vsyncadd [#allocation9], %s470
          %s472 = sshll.u32 [#allocation10], 4
          %s473 = int_to_ptr.vmem [resolvable:$true] %s472
          %478 = dma.hbm_to_vmem [thread:$0]  %s9, 4096, %s473, [#allocation9], 256, 256, 16
        $region16: #{tpu_custom_call.1} parent=11 // pred_fallthru
          _
        // Predicated region
        $region17: #{tpu_custom_call.1} parent=11 // pred_check
          %p479 = pneg %p315
        $region18: #{tpu_custom_call.1} parent=11 // pred_check_branch
          %481 = sbr.rel (%p479) target = $region20
        $region19: #{tpu_custom_call.1} parent=11 // pred_region
          _
        $region20: #{tpu_custom_call.1} parent=11 // pred_fallthru
          _
        // Predicated region
        $region21: #{tpu_custom_call.1} parent=11 // pred_check
          %p482 = pneg %p336
        $region22: #{tpu_custom_call.1} parent=11 // pred_check_branch
          %484 = sbr.rel (%p482) target = $region24
        $region23: #{tpu_custom_call.1} parent=11 // pred_region
          %s486 = ssub.s32 20480, 20480
          %487 = vsyncadd [#allocation12], %s486
          %s488 = sshll.u32 [#allocation11], 4
          %s489 = int_to_ptr.vmem [resolvable:$true] %s488
          %494 = dma.hbm_to_vmem [thread:$0]  %s11, 20480, %s489, [#allocation12], 640, 640, 40
        $region24: #{tpu_custom_call.1} parent=11 // pred_fallthru
          _
        // Predicated region
        $region25: #{tpu_custom_call.1} parent=11 // pred_check
          %p495 = pneg %p357
        $region26: #{tpu_custom_call.1} parent=11 // pred_check_branch
          %497 = sbr.rel (%p495) target = $region28
        $region27: #{tpu_custom_call.1} parent=11 // pred_region
          _
        $region28: #{tpu_custom_call.1} parent=11 // pred_fallthru
          _
        // Predicated region
        $region29: #{tpu_custom_call.1} parent=11 // pred_check
          %p498 = pneg %p378
        $region30: #{tpu_custom_call.1} parent=11 // pred_check_branch
          %500 = sbr.rel (%p498) target = $region32
        $region31: #{tpu_custom_call.1} parent=11 // pred_region
          _
        $region32: #{tpu_custom_call.1} parent=11 // pred_fallthru
          _
        // Predicated region
        $region33: #{tpu_custom_call.1} parent=11 // pred_check
          %p501 = pneg %p399
        $region34: #{tpu_custom_call.1} parent=11 // pred_check_branch
          %503 = sbr.rel (%p501) target = $region36
        $region35: #{tpu_custom_call.1} parent=11 // pred_region
          %s505 = ssub.s32 32, 32
          %506 = vsyncadd [#allocation12], %s505
          %s508 = sshll.u32 [#allocation13], 4
          %s509 = int_to_ptr.vmem [resolvable:$true] %s508
          %511 = dma.hbm_to_vmem [thread:$0]  %s14, 32, %s509, [#allocation12]
        $region36: #{tpu_custom_call.1} parent=11 // pred_fallthru
          _
      $region12: #{tpu_custom_call.1} parent=5 // pred_fallthru
        _
      %p512 = scmp.lt.s32.totalorder %s39, 2
      // Predicated region
      $region37: #{tpu_custom_call.1} parent=5 // pred_check
        %p513 = pneg %p512
      $region38: #{tpu_custom_call.1} parent=5 // pred_check_branch
        %515 = sbr.rel (%p513) target = $region40
      $region39: #{tpu_custom_call.1} parent=5 // pred_region
        // Predicated region
        $region41: #{tpu_custom_call.1} parent=39 // pred_check
          %p516 = pneg %p59
        $region42: #{tpu_custom_call.1} parent=39 // pred_check_branch
          %518 = sbr.rel (%p516) target = $region44
        $region43: #{tpu_custom_call.1} parent=39 // pred_region
          %p519 = scmp.lt.s32.totalorder %s39, 1
          %s520 = scalar_select %p519, %s39, 1
          %s521 = smul.addr %s520, 8
          %s522 = scalar_lea.vmem %s0, %s521
        $region44: #{tpu_custom_call.1} parent=39 // pred_fallthru
          _
        // Predicated region
        $region45: #{tpu_custom_call.1} parent=39 // pred_check
          %p523 = pneg %p85
        $region46: #{tpu_custom_call.1} parent=39 // pred_check_branch
          %525 = sbr.rel (%p523) target = $region48
        $region47: #{tpu_custom_call.1} parent=39 // pred_region
          %p526 = scmp.lt.s32.totalorder %s39, 1
          %s527 = scalar_select %p526, %s39, 1
          %s528 = smul.addr %s527, 8
          %s529 = scalar_lea.vmem %s1, %s528
        $region48: #{tpu_custom_call.1} parent=39 // pred_fallthru
          _
        // Predicated region
        $region49: #{tpu_custom_call.1} parent=39 // pred_check
          %p530 = pneg %p111
        $region50: #{tpu_custom_call.1} parent=39 // pred_check_branch
          %532 = sbr.rel (%p530) target = $region52
        $region51: #{tpu_custom_call.1} parent=39 // pred_region
          %p533 = scmp.lt.s32.totalorder %s39, 1
          %s534 = scalar_select %p533, %s39, 1
          %s535 = smul.addr %s534, 8
          %s536 = scalar_lea.vmem %s2, %s535
        $region52: #{tpu_custom_call.1} parent=39 // pred_fallthru
          _
        // Predicated region
        $region53: #{tpu_custom_call.1} parent=39 // pred_check
          %p537 = pneg %p137
        $region54: #{tpu_custom_call.1} parent=39 // pred_check_branch
          %539 = sbr.rel (%p537) target = $region56
        $region55: #{tpu_custom_call.1} parent=39 // pred_region
          %s540 = sand.u32 %s127, 1
          %s541 = scalar_lea.sflag [#allocation3], %s540
          %s542 = sand.u32 %s127, 1
          %s543 = smul.addr %s542, 64
          %s544 = scalar_lea.vmem [#allocation2], %s543
          %s545 = smul.u32 8, %s39
          %s547 = ssub.s32 1024, 1024
          %548 = vsyncadd %s541, %s547
          %s549 = smul.addr %s545, 2
          %s550 = smul.addr %s549, 64
          %s551 = scalar_lea.hbm %s3, %s550
          %s552 = sshll.u32 %s544, 4
          %s553 = int_to_ptr.vmem [resolvable:$true] %s552
          %558 = dma.hbm_to_vmem [thread:$0]  %s551, 1024, %s553, %s541, 64, 64, 4
        $region56: #{tpu_custom_call.1} parent=39 // pred_fallthru
          _
        // Predicated region
        $region57: #{tpu_custom_call.1} parent=39 // pred_check
          %p559 = pneg %p163
        $region58: #{tpu_custom_call.1} parent=39 // pred_check_branch
          %561 = sbr.rel (%p559) target = $region60
        $region59: #{tpu_custom_call.1} parent=39 // pred_region
          %s562 = sand.u32 %s39, 1
          %s563 = scalar_lea.sflag [#allocation6], %s562
          %s564 = sand.u32 %s153, 1
          %s565 = smul.addr %s564, 64
          %s566 = scalar_lea.vmem [#allocation5], %s565
          %s567 = smul.u32 8, %s39
          %s569 = ssub.s32 1024, 1024
          %570 = vsyncadd %s563, %s569
          %s571 = smul.addr %s567, 2
          %s572 = smul.addr %s571, 64
          %s573 = scalar_lea.hbm %s4, %s572
          %s574 = sshll.u32 %s566, 4
          %s575 = int_to_ptr.vmem [resolvable:$true] %s574
          %580 = dma.hbm_to_vmem [thread:$0]  %s573, 1024, %s575, %s563, 64, 64, 4
        $region60: #{tpu_custom_call.1} parent=39 // pred_fallthru
          _
        // Predicated region
        $region61: #{tpu_custom_call.1} parent=39 // pred_check
          %p581 = pneg %p189
        $region62: #{tpu_custom_call.1} parent=39 // pred_check_branch
          %583 = sbr.rel (%p581) target = $region64
        $region63: #{tpu_custom_call.1} parent=39 // pred_region
          %s584 = smul.u32 8, %s39
          %p585 = scmp.lt.s32.totalorder %s584, 15
          %s586 = scalar_select %p585, %s584, 15
          %s587 = smul.addr %s586, 2
          %s588 = smul.addr %s587, 8
          %s589 = scalar_lea.vmem %s5, %s588
          %s590 = smul.u32 8, %s39
        $region64: #{tpu_custom_call.1} parent=39 // pred_fallthru
          _
        // Predicated region
        $region65: #{tpu_custom_call.1} parent=39 // pred_check
          %p591 = pneg %p215
        $region66: #{tpu_custom_call.1} parent=39 // pred_check_branch
          %593 = sbr.rel (%p591) target = $region68
        $region67: #{tpu_custom_call.1} parent=39 // pred_region
          %s594 = sand.u32 %s39, 1
          %s595 = scalar_lea.sflag [#allocation6], %s594
          %s596 = sand.u32 %s205, 1
          %s597 = smul.addr %s596, 64
          %s598 = scalar_lea.vmem [#allocation7], %s597
          %s599 = smul.u32 8, %s39
          %s601 = ssub.s32 1024, 1024
          %602 = vsyncadd %s595, %s601
          %s603 = smul.addr %s599, 2
          %s604 = smul.addr %s603, 64
          %s605 = scalar_lea.hbm %s6, %s604
          %s606 = sshll.u32 %s598, 4
          %s607 = int_to_ptr.vmem [resolvable:$true] %s606
          %612 = dma.hbm_to_vmem [thread:$0]  %s605, 1024, %s607, %s595, 64, 64, 4
        $region68: #{tpu_custom_call.1} parent=39 // pred_fallthru
          _
        // Predicated region
        $region69: #{tpu_custom_call.1} parent=39 // pred_check
          %p613 = pneg %p241
        $region70: #{tpu_custom_call.1} parent=39 // pred_check_branch
          %615 = sbr.rel (%p613) target = $region72
        $region71: #{tpu_custom_call.1} parent=39 // pred_region
          %s616 = sand.u32 %s39, 1
          %s617 = scalar_lea.sflag [#allocation9], %s616
          %s618 = sand.u32 %s231, 1
          %s619 = smul.addr %s618, 64
          %s620 = scalar_lea.vmem [#allocation8], %s619
          %s621 = smul.u32 8, %s39
          %s623 = ssub.s32 1024, 1024
          %624 = vsyncadd %s617, %s623
          %s625 = smul.addr %s621, 2
          %s626 = smul.addr %s625, 64
          %s627 = scalar_lea.hbm %s7, %s626
          %s628 = sshll.u32 %s620, 4
          %s629 = int_to_ptr.vmem [resolvable:$true] %s628
          %634 = dma.hbm_to_vmem [thread:$0]  %s627, 1024, %s629, %s617, 64, 64, 4
        $region72: #{tpu_custom_call.1} parent=39 // pred_fallthru
          _
        // Predicated region
        $region73: #{tpu_custom_call.1} parent=39 // pred_check
          %p635 = pneg %p267
        $region74: #{tpu_custom_call.1} parent=39 // pred_check_branch
          %637 = sbr.rel (%p635) target = $region76
        $region75: #{tpu_custom_call.1} parent=39 // pred_region
          %s638 = smul.u32 8, %s39
          %p639 = scmp.lt.s32.totalorder %s638, 15
          %s640 = scalar_select %p639, %s638, 15
          %s641 = smul.addr %s640, 2
          %s642 = smul.addr %s641, 8
          %s643 = scalar_lea.vmem %s8, %s642
          %s644 = smul.u32 8, %s39
        $region76: #{tpu_custom_call.1} parent=39 // pred_fallthru
          _
      $region40: #{tpu_custom_call.1} parent=5 // pred_fallthru
        _
      %p645 = scmp.le.s32.totalorder 1, %s39
      %p646 = scmp.lt.s32.totalorder %s39, 3
      %p647 = pnand %p645, %p646
      %p648 = pneg %p647
      // Predicated region
      $region77: #{tpu_custom_call.1} parent=5 // pred_check
        _
      $region78: #{tpu_custom_call.1} parent=5 // pred_check_branch
        %650 = sbr.rel (%p647) target = $region80
      $region79: #{tpu_custom_call.1} parent=5 // pred_region
        %s651 = ssub.s32 %s39, 1
        %s652 = sand.u32 %s130, 1
        %s653 = scalar_lea.sflag [#allocation3], %s652
        %s654 = sand.u32 %s130, 1
        %s655 = smul.addr %s654, 64
        %s656 = scalar_lea.vmem [#allocation2], %s655
        // Predicated region
        $region81: #{tpu_custom_call.1} parent=79 // pred_check
          %p657 = pneg %p143
        $region82: #{tpu_custom_call.1} parent=79 // pred_check_branch
          %659 = sbr.rel (%p657) target = $region84
        $region83: #{tpu_custom_call.1} parent=79 // pred_region
          %660 = dma.done %s653, 1024
        $region84: #{tpu_custom_call.1} parent=79 // pred_fallthru
          _
        %s661 = sand.u32 %s44, 1
        %s662 = scalar_lea.sflag [#allocation6], %s661
        %s663 = sand.u32 %s156, 1
        %s664 = smul.addr %s663, 64
        %s665 = scalar_lea.vmem [#allocation5], %s664
        // Predicated region
        $region85: #{tpu_custom_call.1} parent=79 // pred_check
          %p666 = pneg %p169
        $region86: #{tpu_custom_call.1} parent=79 // pred_check_branch
          %668 = sbr.rel (%p666) target = $region88
        $region87: #{tpu_custom_call.1} parent=79 // pred_region
          %669 = dma.done %s662, 1024
        $region88: #{tpu_custom_call.1} parent=79 // pred_fallthru
          _
        %s670 = sand.u32 %s44, 1
        %s671 = scalar_lea.sflag [#allocation6], %s670
        %s672 = sand.u32 %s208, 1
        %s673 = smul.addr %s672, 64
        %s674 = scalar_lea.vmem [#allocation7], %s673
        // Predicated region
        $region89: #{tpu_custom_call.1} parent=79 // pred_check
          %p675 = pneg %p221
        $region90: #{tpu_custom_call.1} parent=79 // pred_check_branch
          %677 = sbr.rel (%p675) target = $region92
        $region91: #{tpu_custom_call.1} parent=79 // pred_region
          %678 = dma.done %s671, 1024
        $region92: #{tpu_custom_call.1} parent=79 // pred_fallthru
          _
        %s679 = sand.u32 %s44, 1
        %s680 = scalar_lea.sflag [#allocation9], %s679
        %s681 = sand.u32 %s234, 1
        %s682 = smul.addr %s681, 64
        %s683 = scalar_lea.vmem [#allocation8], %s682
        // Predicated region
        $region93: #{tpu_custom_call.1} parent=79 // pred_check
          %p684 = pneg %p247
        $region94: #{tpu_custom_call.1} parent=79 // pred_check_branch
          %686 = sbr.rel (%p684) target = $region96
        $region95: #{tpu_custom_call.1} parent=79 // pred_region
          %687 = dma.done %s680, 1024
        $region96: #{tpu_custom_call.1} parent=79 // pred_fallthru
          _
        // Predicated region
        $region97: #{tpu_custom_call.1} parent=79 // pred_check
          %p688 = pneg %p294
        $region98: #{tpu_custom_call.1} parent=79 // pred_check_branch
          %690 = sbr.rel (%p688) target = $region100
        $region99: #{tpu_custom_call.1} parent=79 // pred_region
          %691 = dma.done [#allocation9], 4096
        $region100: #{tpu_custom_call.1} parent=79 // pred_fallthru
          _
        // Predicated region
        $region101: #{tpu_custom_call.1} parent=79 // pred_check
          %p692 = pneg %p336
        $region102: #{tpu_custom_call.1} parent=79 // pred_check_branch
          %694 = sbr.rel (%p692) target = $region104
        $region103: #{tpu_custom_call.1} parent=79 // pred_region
          %695 = dma.done [#allocation12], 20480
        $region104: #{tpu_custom_call.1} parent=79 // pred_fallthru
          _
        // Predicated region
        $region105: #{tpu_custom_call.1} parent=79 // pred_check
          %p696 = pneg %p399
        $region106: #{tpu_custom_call.1} parent=79 // pred_check_branch
          %698 = sbr.rel (%p696) target = $region108
        $region107: #{tpu_custom_call.1} parent=79 // pred_region
          %699 = dma.done [#allocation12], 32
        $region108: #{tpu_custom_call.1} parent=79 // pred_fallthru
          _
        %p700 = scmp.lt.s32.totalorder %s44, 1
        %s701 = scalar_select %p700, %s44, 1
        %s702 = smul.addr %s701, 8
        %s703 = scalar_lea.vmem %s0, %s702
        %p704 = pneg %p65
        %p705 = pneg %p62
        %p706 = scmp.lt.s32.totalorder %s44, 1
        %s707 = scalar_select %p706, %s44, 1
        %s708 = smul.addr %s707, 8
        %s709 = scalar_lea.vmem %s1, %s708
        %p710 = pneg %p91
        %p711 = pneg %p88
        %p712 = scmp.lt.s32.totalorder %s44, 1
        %s713 = scalar_select %p712, %s44, 1
        %s714 = smul.addr %s713, 8
        %s715 = scalar_lea.vmem %s2, %s714
        %p716 = pneg %p117
        %p717 = pneg %p114
        %s718 = sand.u32 %s130, 1
        %s719 = scalar_lea.sflag [#allocation3], %s718
        %s720 = sand.u32 %s130, 1
        %s721 = smul.addr %s720, 64
        %s722 = scalar_lea.vmem [#allocation2], %s721
        %p723 = pneg %p143
        %p724 = pneg %p140
        %s725 = sand.u32 %s44, 1
        %s726 = scalar_lea.sflag [#allocation6], %s725
        %s727 = sand.u32 %s156, 1
        %s728 = smul.addr %s727, 64
        %s729 = scalar_lea.vmem [#allocation5], %s728
        %p730 = pneg %p169
        %p731 = pneg %p166
        %s732 = smul.u32 8, %s44
        %p733 = scmp.lt.s32.totalorder %s732, 15
        %s734 = scalar_select %p733, %s732, 15
        %s735 = smul.addr %s734, 2
        %s736 = smul.addr %s735, 8
        %s737 = scalar_lea.vmem %s5, %s736
        %p738 = pneg %p195
        %p739 = pneg %p192
        %s740 = sand.u32 %s44, 1
        %s741 = scalar_lea.sflag [#allocation6], %s740
        %s742 = sand.u32 %s208, 1
        %s743 = smul.addr %s742, 64
        %s744 = scalar_lea.vmem [#allocation7], %s743
        %p745 = pneg %p221
        %p746 = pneg %p218
        %s747 = sand.u32 %s44, 1
        %s748 = scalar_lea.sflag [#allocation9], %s747
        %s749 = sand.u32 %s234, 1
        %s750 = smul.addr %s749, 64
        %s751 = scalar_lea.vmem [#allocation8], %s750
        %p752 = pneg %p247
        %p753 = pneg %p244
        %s754 = smul.u32 8, %s44
        %p755 = scmp.lt.s32.totalorder %s754, 15
        %s756 = scalar_select %p755, %s754, 15
        %s757 = smul.addr %s756, 2
        %s758 = smul.addr %s757, 8
        %s759 = scalar_lea.vmem %s8, %s758
        %p760 = pneg %p273
        %p761 = pneg %p270
        %p762 = pneg %p294
        %p763 = pneg %p291
        %p764 = pneg %p315
        %p765 = pneg %p312
        %p766 = pneg %p336
        %p767 = pneg %p333
        %p768 = pneg %p357
        %p769 = pneg %p354
        %p770 = pneg %p378
        %p771 = pneg %p375
        %p772 = pneg %p399
        %p773 = pneg %p396
        %p774 = pneg %p425
        %p775 = pneg %p422
        %s776 = sand.u32 %s412, 1
        %s777 = scalar_lea.sflag [#allocation4], %s776
        %s778 = sand.u32 %s412, 1
        %s779 = smul.addr %s778, 8
        %s780 = scalar_lea.vmem [#allocation14], %s779
        %p781 = pneg %p451
        %p782 = pneg %p448
        %s783 = sand.u32 %s438, 1
        %s784 = scalar_lea.sflag [#allocation16], %s783
        %s785 = sand.u32 %s438, 1
        %s786 = smul.addr %s785, 8
        %s787 = scalar_lea.vmem [#allocation15], %s786
        %p788 = scmp.lt.s32.totalorder %s44, 1
        %s789 = scalar_select %p788, %s44, 1
        %s790 = smul.addr %s789, 8
        %s791 = scalar_lea.vmem %s0, %s790
        %p792 = scmp.lt.s32.totalorder %s44, 1
        %s793 = scalar_select %p792, %s44, 1
        %s794 = smul.addr %s793, 8
        %s795 = scalar_lea.vmem %s1, %s794
        %p796 = scmp.lt.s32.totalorder %s44, 1
        %s797 = scalar_select %p796, %s44, 1
        %s798 = smul.addr %s797, 8
        %s799 = scalar_lea.vmem %s2, %s798
        %s800 = smul.u32 8, %s44
        %s801 = smul.u32 8, %s44
        %s802 = smul.u32 8, %s44
        %p803 = scmp.lt.s32.totalorder %s802, 15
        %s804 = scalar_select %p803, %s802, 15
        %s805 = smul.addr %s804, 2
        %s806 = smul.addr %s805, 8
        %s807 = scalar_lea.vmem %s5, %s806
        %s808 = smul.u32 8, %s44
        %s809 = smul.u32 8, %s44
        %s810 = smul.u32 8, %s44
        %s811 = smul.u32 8, %s44
        %p812 = scmp.lt.s32.totalorder %s811, 15
        %s813 = scalar_select %p812, %s811, 15
        %s814 = smul.addr %s813, 2
        %s815 = smul.addr %s814, 8
        %s816 = scalar_lea.vmem %s8, %s815
        %s817 = smul.u32 8, %s44
        %v818 = vld [vmem:[%s791] sm:$0xff]
        %v819 = vld [vmem:[%s795] sm:$0xff]
        %v820 = vld [vmem:[#allocation10] sm:$0xff]
        %v821 = vld [vmem:[#allocation10 + $0x8] sm:$0xff]
        %v822 = vld [vmem:[#allocation10 + $0x10] sm:$0xff]
        %v823 = vld [vmem:[#allocation10 + $0x18] sm:$0xff]
        %v824 = vld [vmem:[#allocation10 + $0x20] sm:$0xff]
        %v825 = vld [vmem:[#allocation10 + $0x28] sm:$0xff]
        %v826 = vld [vmem:[#allocation10 + $0x30] sm:$0xff]
        %v827 = vld [vmem:[#allocation10 + $0x38] sm:$0xff]
        %v828 = vld [vmem:[#allocation10 + $0x40] sm:$0xff]
        %v829 = vld [vmem:[#allocation10 + $0x48] sm:$0xff]
        %v830 = vld [vmem:[#allocation10 + $0x50] sm:$0xff]
        %v831 = vld [vmem:[#allocation10 + $0x58] sm:$0xff]
        %v832 = vld [vmem:[#allocation10 + $0x60] sm:$0xff]
        %v833 = vld [vmem:[#allocation10 + $0x68] sm:$0xff]
        %v834 = vld [vmem:[#allocation10 + $0x70] sm:$0xff]
        %v835 = vld [vmem:[#allocation10 + $0x78] sm:$0xff]
        %v836 = vld [vmem:[#allocation10 + $0x80] sm:$0xff]
        %v837 = vld [vmem:[#allocation10 + $0x88] sm:$0xff]
        %v838 = vld [vmem:[#allocation10 + $0x90] sm:$0xff]
        %v839 = vld [vmem:[#allocation10 + $0x98] sm:$0xff]
        %v840 = vld [vmem:[#allocation10 + $0xa0] sm:$0xff]
        %v841 = vld [vmem:[#allocation10 + $0xa8] sm:$0xff]
        %v842 = vld [vmem:[#allocation10 + $0xb0] sm:$0xff]
        %v843 = vld [vmem:[#allocation10 + $0xb8] sm:$0xff]
        %v844 = vld [vmem:[#allocation10 + $0xc0] sm:$0xff]
        %v845 = vld [vmem:[#allocation10 + $0xc8] sm:$0xff]
        %v846 = vld [vmem:[#allocation10 + $0xd0] sm:$0xff]
        %v847 = vld [vmem:[#allocation10 + $0xd8] sm:$0xff]
        %v848 = vld [vmem:[#allocation10 + $0xe0] sm:$0xff]
        %v849 = vld [vmem:[#allocation10 + $0xe8] sm:$0xff]
        %v850 = vld [vmem:[#allocation10 + $0xf0] sm:$0xff]
        %v851 = vld [vmem:[#allocation10 + $0xf8] sm:$0xff]
        %852 = vmatprep.subr.mxu0 %v851
        %853 = vmatpush1.msra.mxu0 %v850
        %854 = vmatprep.subr.mxu0 %v849
        %855 = vmatpush1.msra.mxu0 %v848
        %856 = vmatprep.subr.mxu0 %v847
        %857 = vmatpush1.msra.mxu0 %v846
        %858 = vmatprep.subr.mxu0 %v845
        %859 = vmatpush1.msra.mxu0 %v844
        %860 = vmatprep.subr.mxu0 %v843
        %861 = vmatpush1.msra.mxu0 %v842
        %862 = vmatprep.subr.mxu0 %v841
        %863 = vmatpush1.msra.mxu0 %v840
        %864 = vmatprep.subr.mxu0 %v839
        %865 = vmatpush1.msra.mxu0 %v838
        %866 = vmatprep.subr.mxu0 %v837
        %867 = vmatpush1.msra.mxu0 %v836
        %868 = vmatprep.subr.mxu0 %v835
        %869 = vmatpush1.msra.mxu0 %v834
        %870 = vmatprep.subr.mxu0 %v833
        %871 = vmatpush1.msra.mxu0 %v832
        %872 = vmatprep.subr.mxu0 %v831
        %873 = vmatpush1.msra.mxu0 %v830
        %874 = vmatprep.subr.mxu0 %v829
        %875 = vmatpush1.msra.mxu0 %v828
        %876 = vmatprep.subr.mxu0 %v827
        %877 = vmatpush1.msra.mxu0 %v826
        %878 = vmatprep.subr.mxu0 %v825
        %879 = vmatpush1.msra.mxu0 %v824
        %880 = vmatprep.subr.mxu0 %v823
        %881 = vmatpush1.msra.mxu0 %v822
        %882 = vmatprep.subr.mxu0 %v821
        %883 = vmatpush1.msra.mxu0 %v820
        %884 = vmatprep.subr.mxu0 0.0
        %885 = vmatpush2.msra.mxu0 0.0
        %886 = vmatprep.subr.mxu0 0.0
        %887 = vmatpush2.msra.mxu0 0.0
        %888 = vmatprep.subr.mxu0 0.0
        %889 = vmatpush2.msra.mxu0 0.0
        %890 = vmatprep.subr.mxu0 0.0
        %891 = vmatpush2.msra.mxu0 0.0
        %892 = vmatprep.subr.mxu0 0.0
        %893 = vmatpush2.msra.mxu0 0.0
        %894 = vmatprep.subr.mxu0 0.0
        %895 = vmatpush2.msra.mxu0 0.0
        %896 = vmatprep.subr.mxu0 0.0
        %897 = vmatpush2.msra.mxu0 0.0
        %898 = vmatprep.subr.mxu0 0.0
        %899 = vmatpush2.msra.mxu0 0.0
        %900 = vmatprep.subr.mxu0 0.0
        %901 = vmatpush2.msra.mxu0 0.0
        %902 = vmatprep.subr.mxu0 0.0
        %903 = vmatpush2.msra.mxu0 0.0
        %904 = vmatprep.subr.mxu0 0.0
        %905 = vmatpush2.msra.mxu0 0.0
        %906 = vmatprep.subr.mxu0 0.0
        %907 = vmatpush2.msra.mxu0 0.0
        %908 = vmatprep.subr.mxu0 0.0
        %909 = vmatpush2.msra.mxu0 0.0
        %910 = vmatprep.subr.mxu0 0.0
        %911 = vmatpush2.msra.mxu0 0.0
        %912 = vmatprep.subr.mxu0 0.0
        %913 = vmatpush2.msra.mxu0 0.0
        %914 = vmatprep.subr.mxu0 0.0
        %915 = vmatpush2.msra.mxu0 0.0
        %916 = vmatprep.mubr.f32.mxu0 0.0
        %917 = vmatmul.mubr.f32.gmra.mxu0 %v819
        %v918 = vpop.f32.mrf.mxu0
        %v919 = vadd.f32 0.0, %v918
        %v920 = vpop.f32.mrf.mxu0
        %v921 = vadd.f32 0.0, %v920
        %922 = vdwg.mxu0
        %v923 = vld [vmem:[%s10] sm:$0x1]
        %v924 = vld [vmem:[%s665] sm:$0xf]
        %v925 = vld [vmem:[%s665 + $0x4] sm:$0xf]
        %v926 = vld [vmem:[%s665 + $0x8] sm:$0xf]
        %v927 = vld [vmem:[%s665 + $0xc] sm:$0xf]
        %v928 = vld [vmem:[%s665 + $0x10] sm:$0xf]
        %v929 = vld [vmem:[%s665 + $0x14] sm:$0xf]
        %v930 = vld [vmem:[%s665 + $0x18] sm:$0xf]
        %v931 = vld [vmem:[%s665 + $0x1c] sm:$0xf]
        %v932 = vld [vmem:[%s665 + $0x20] sm:$0xf]
        %v933 = vld [vmem:[%s665 + $0x24] sm:$0xf]
        %v934 = vld [vmem:[%s665 + $0x28] sm:$0xf]
        %v935 = vld [vmem:[%s665 + $0x2c] sm:$0xf]
        %v936 = vld [vmem:[%s665 + $0x30] sm:$0xf]
        %v937 = vld [vmem:[%s665 + $0x34] sm:$0xf]
        %v938 = vld [vmem:[%s665 + $0x38] sm:$0xf]
        %v939 = vld [vmem:[%s665 + $0x3c] sm:$0xf]
        %v940 = vunpack.c.l.bf16 %v924
        %v941 = vunpack.c.l.bf16 %v925
        %v942 = vunpack.c.l.bf16 %v926
        %v943 = vunpack.c.l.bf16 %v927
        %v944 = vunpack.c.l.bf16 %v928
        %v945 = vunpack.c.l.bf16 %v929
        %v946 = vunpack.c.l.bf16 %v930
        %v947 = vunpack.c.l.bf16 %v931
        %v948 = vunpack.c.l.bf16 %v932
        %v949 = vunpack.c.l.bf16 %v933
        %v950 = vunpack.c.l.bf16 %v934
        %v951 = vunpack.c.l.bf16 %v935
        %v952 = vunpack.c.l.bf16 %v936
        %v953 = vunpack.c.l.bf16 %v937
        %v954 = vunpack.c.l.bf16 %v938
        %v955 = vunpack.c.l.bf16 %v939
        %v956 = vld [vmem:[%s656] sm:$0xf]
        %v957 = vld [vmem:[%s656 + $0x4] sm:$0xf]
        %v958 = vld [vmem:[%s656 + $0x8] sm:$0xf]
        %v959 = vld [vmem:[%s656 + $0xc] sm:$0xf]
        %v960 = vld [vmem:[%s656 + $0x10] sm:$0xf]
        %v961 = vld [vmem:[%s656 + $0x14] sm:$0xf]
        %v962 = vld [vmem:[%s656 + $0x18] sm:$0xf]
        %v963 = vld [vmem:[%s656 + $0x1c] sm:$0xf]
        %v964 = vld [vmem:[%s656 + $0x20] sm:$0xf]
        %v965 = vld [vmem:[%s656 + $0x24] sm:$0xf]
        %v966 = vld [vmem:[%s656 + $0x28] sm:$0xf]
        %v967 = vld [vmem:[%s656 + $0x2c] sm:$0xf]
        %v968 = vld [vmem:[%s656 + $0x30] sm:$0xf]
        %v969 = vld [vmem:[%s656 + $0x34] sm:$0xf]
        %v970 = vld [vmem:[%s656 + $0x38] sm:$0xf]
        %v971 = vld [vmem:[%s656 + $0x3c] sm:$0xf]
        %v972 = vunpack.c.l.bf16 %v956
        %v973 = vunpack.c.l.bf16 %v957
        %v974 = vunpack.c.l.bf16 %v958
        %v975 = vunpack.c.l.bf16 %v959
        %v976 = vunpack.c.l.bf16 %v960
        %v977 = vunpack.c.l.bf16 %v961
        %v978 = vunpack.c.l.bf16 %v962
        %v979 = vunpack.c.l.bf16 %v963
        %v980 = vunpack.c.l.bf16 %v964
        %v981 = vunpack.c.l.bf16 %v965
        %v982 = vunpack.c.l.bf16 %v966
        %v983 = vunpack.c.l.bf16 %v967
        %v984 = vunpack.c.l.bf16 %v968
        %v985 = vunpack.c.l.bf16 %v969
        %v986 = vunpack.c.l.bf16 %v970
        %v987 = vunpack.c.l.bf16 %v971
        %v988 = vld [vmem:[%s807] sm:$0xff]
        %v989 = vld [vmem:[%s807 + $0x8] sm:$0xff]
        %v990 = vld [vmem:[%s807 + $0x10] sm:$0xff]
        %v991 = vld [vmem:[%s807 + $0x18] sm:$0xff]
        %v992 = vld [vmem:[%s807 + $0x20] sm:$0xff]
        %v993 = vld [vmem:[%s807 + $0x28] sm:$0xff]
        %v994 = vld [vmem:[%s807 + $0x30] sm:$0xff]
        %v995 = vld [vmem:[%s807 + $0x38] sm:$0xff]
        %v996 = vld [vmem:[%s807 + $0x40] sm:$0xff]
        %v997 = vld [vmem:[%s807 + $0x48] sm:$0xff]
        %v998 = vld [vmem:[%s807 + $0x50] sm:$0xff]
        %v999 = vld [vmem:[%s807 + $0x58] sm:$0xff]
        %v1000 = vld [vmem:[%s807 + $0x60] sm:$0xff]
        %v1001 = vld [vmem:[%s807 + $0x68] sm:$0xff]
        %v1002 = vld [vmem:[%s807 + $0x70] sm:$0xff]
        %v1003 = vld [vmem:[%s807 + $0x78] sm:$0xff]
        %v1005 = vcombine.high %v919, %v919
        %v1007 = vunpack.c.l.s4 1966171168
        %v1008 = vunpack.c.0.s8 %v1007
        %v1009 = vlaneseq
        %v1010 = vshrl.u32 %v1009, 7
        %v1011 = vsub.s32 %v1008, %v1010
        %v1012 = vrot.slane %v919, %v1011
        %v1014 = vunpack.c.l.s4 1966171168
        %v1015 = vunpack.c.0.s8 %v1014
        %v1016 = vlaneseq
        %v1017 = vshrl.u32 %v1016, 7
        %v1018 = vsub.s32 %v1015, %v1017
        %v1019 = vrot.slane %v1005, %v1018
        %v1020 = vcombine.high %v1012, %v1012
        %v1021 = vcombine.high %v1019, %v1019
        %v1023 = vunpack.c.l.s4 1966171168
        %v1024 = vunpack.c.0.s8 %v1023
        %v1025 = vlaneseq
        %v1026 = vshrl.u32 %v1025, 7
        %v1027 = vsub.s32 %v1024, %v1026
        %v1028 = vrot.slane %v1012, %v1027
        %v1030 = vunpack.c.l.s4 1966171168
        %v1031 = vunpack.c.0.s8 %v1030
        %v1032 = vlaneseq
        %v1033 = vshrl.u32 %v1032, 7
        %v1034 = vsub.s32 %v1031, %v1033
        %v1035 = vrot.slane %v1019, %v1034
        %v1037 = vunpack.c.l.s4 1966171168
        %v1038 = vunpack.c.0.s8 %v1037
        %v1039 = vlaneseq
        %v1040 = vshrl.u32 %v1039, 7
        %v1041 = vsub.s32 %v1038, %v1040
        %v1042 = vrot.slane %v1020, %v1041
        %v1044 = vunpack.c.l.s4 1966171168
        %v1045 = vunpack.c.0.s8 %v1044
        %v1046 = vlaneseq
        %v1047 = vshrl.u32 %v1046, 7
        %v1048 = vsub.s32 %v1045, %v1047
        %v1049 = vrot.slane %v1021, %v1048
        %v1050 = vcombine.high %v1028, %v1028
        %v1051 = vcombine.high %v1035, %v1035
        %v1052 = vcombine.high %v1042, %v1042
        %v1053 = vcombine.high %v1049, %v1049
        %v1054 = vlaneseq
        %v1055 = vshrl.u32 %v1054, 7
        %v1056 = vsub.s32 0, %v1055
        %v1057 = vrot.slane %v1028, %v1056
        %v1058 = vlaneseq
        %v1059 = vshrl.u32 %v1058, 7
        %v1060 = vsub.s32 0, %v1059
        %v1061 = vrot.slane %v1042, %v1060
        %v1062 = vlaneseq
        %v1063 = vshrl.u32 %v1062, 7
        %v1064 = vsub.s32 0, %v1063
        %v1065 = vrot.slane %v1050, %v1064
        %v1066 = vlaneseq
        %v1067 = vshrl.u32 %v1066, 7
        %v1068 = vsub.s32 0, %v1067
        %v1069 = vrot.slane %v1052, %v1068
        %v1070 = vlaneseq
        %v1071 = vshrl.u32 %v1070, 7
        %v1072 = vsub.s32 0, %v1071
        %v1073 = vrot.slane %v1035, %v1072
        %v1074 = vlaneseq
        %v1075 = vshrl.u32 %v1074, 7
        %v1076 = vsub.s32 0, %v1075
        %v1077 = vrot.slane %v1049, %v1076
        %v1078 = vlaneseq
        %v1079 = vshrl.u32 %v1078, 7
        %v1080 = vsub.s32 0, %v1079
        %v1081 = vrot.slane %v1051, %v1080
        %v1082 = vlaneseq
        %v1083 = vshrl.u32 %v1082, 7
        %v1084 = vsub.s32 0, %v1083
        %v1085 = vrot.slane %v1053, %v1084
        %v1094 = vadd.f32 %v940, %v1057
        %v1095 = vadd.f32 %v941, %v1057
        %v1096 = vadd.f32 %v942, %v1061
        %v1097 = vadd.f32 %v943, %v1061
        %v1098 = vadd.f32 %v944, %v1065
        %v1099 = vadd.f32 %v945, %v1065
        %v1100 = vadd.f32 %v946, %v1069
        %v1101 = vadd.f32 %v947, %v1069
        %v1102 = vadd.f32 %v948, %v1073
        %v1103 = vadd.f32 %v949, %v1073
        %v1104 = vadd.f32 %v950, %v1077
        %v1105 = vadd.f32 %v951, %v1077
        %v1106 = vadd.f32 %v952, %v1081
        %v1107 = vadd.f32 %v953, %v1081
        %v1108 = vadd.f32 %v954, %v1085
        %v1109 = vadd.f32 %v955, %v1085
        %v1110 = vtanh.pop %v1094
        %v1111 = vtanh.pop %v1095
        %v1112 = vtanh.pop %v1096
        %v1113 = vtanh.pop %v1097
        %v1114 = vtanh.pop %v1098
        %v1115 = vtanh.pop %v1099
        %v1116 = vtanh.pop %v1100
        %v1117 = vtanh.pop %v1101
        %v1118 = vtanh.pop %v1102
        %v1119 = vtanh.pop %v1103
        %v1120 = vtanh.pop %v1104
        %v1121 = vtanh.pop %v1105
        %v1122 = vtanh.pop %v1106
        %v1123 = vtanh.pop %v1107
        %v1124 = vtanh.pop %v1108
        %v1125 = vtanh.pop %v1109
        %v1127 = vlaneseq
        %v1128 = vshrl.u32 %v1127, 7
        %v1129 = vsub.s32 0, %v1128
        %v1130 = vrot.slane %v923, %v1129
        %v1132 = vmul.f32 %v1110, %v1130
        %v1133 = vmul.f32 %v1111, %v1130
        %v1134 = vmul.f32 %v1112, %v1130
        %v1135 = vmul.f32 %v1113, %v1130
        %v1136 = vmul.f32 %v1114, %v1130
        %v1137 = vmul.f32 %v1115, %v1130
        %v1138 = vmul.f32 %v1116, %v1130
        %v1139 = vmul.f32 %v1117, %v1130
        %v1140 = vmul.f32 %v1118, %v1130
        %v1141 = vmul.f32 %v1119, %v1130
        %v1142 = vmul.f32 %v1120, %v1130
        %v1143 = vmul.f32 %v1121, %v1130
        %v1144 = vmul.f32 %v1122, %v1130
        %v1145 = vmul.f32 %v1123, %v1130
        %v1146 = vmul.f32 %v1124, %v1130
        %v1147 = vmul.f32 %v1125, %v1130
        %1148 = vadd.xlane.f32.xlu0 %v1132
        %v1149 = vpop.xlane.xlu0 %1148
        %1150 = vadd.xlane.f32.xlu0 %v1133
        %v1151 = vpop.xlane.xlu0 %1150
        %1152 = vadd.xlane.f32.xlu0 %v1134
        %v1153 = vpop.xlane.xlu0 %1152
        %1154 = vadd.xlane.f32.xlu0 %v1135
        %v1155 = vpop.xlane.xlu0 %1154
        %1156 = vadd.xlane.f32.xlu0 %v1136
        %v1157 = vpop.xlane.xlu0 %1156
        %1158 = vadd.xlane.f32.xlu0 %v1137
        %v1159 = vpop.xlane.xlu0 %1158
        %1160 = vadd.xlane.f32.xlu0 %v1138
        %v1161 = vpop.xlane.xlu0 %1160
        %1162 = vadd.xlane.f32.xlu0 %v1139
        %v1163 = vpop.xlane.xlu0 %1162
        %1164 = vadd.xlane.f32.xlu0 %v1140
        %v1165 = vpop.xlane.xlu0 %1164
        %1166 = vadd.xlane.f32.xlu0 %v1141
        %v1167 = vpop.xlane.xlu0 %1166
        %1168 = vadd.xlane.f32.xlu0 %v1142
        %v1169 = vpop.xlane.xlu0 %1168
        %1170 = vadd.xlane.f32.xlu0 %v1143
        %v1171 = vpop.xlane.xlu0 %1170
        %1172 = vadd.xlane.f32.xlu0 %v1144
        %v1173 = vpop.xlane.xlu0 %1172
        %1174 = vadd.xlane.f32.xlu0 %v1145
        %v1175 = vpop.xlane.xlu0 %1174
        %1176 = vadd.xlane.f32.xlu0 %v1146
        %v1177 = vpop.xlane.xlu0 %1176
        %1178 = vadd.xlane.f32.xlu0 %v1147
        %v1179 = vpop.xlane.xlu0 %1178
        %v1180 = vmax.f32 %v1149, %v1151
        %v1181 = vrot.slane %v1180, 4
        %v1182 = vmax.f32 %v1180, %v1181
        %v1183 = vrot.slane %v1182, 2
        %v1184 = vmax.f32 %v1182, %v1183
        %v1185 = vrot.slane %v1184, 1
        %v1186 = vmax.f32 %v1184, %v1185
        %v1187 = vmax.f32 %v1153, %v1155
        %v1188 = vrot.slane %v1187, 4
        %v1189 = vmax.f32 %v1187, %v1188
        %v1190 = vrot.slane %v1189, 2
        %v1191 = vmax.f32 %v1189, %v1190
        %v1192 = vrot.slane %v1191, 1
        %v1193 = vmax.f32 %v1191, %v1192
        %v1194 = vmax.f32 %v1157, %v1159
        %v1195 = vrot.slane %v1194, 4
        %v1196 = vmax.f32 %v1194, %v1195
        %v1197 = vrot.slane %v1196, 2
        %v1198 = vmax.f32 %v1196, %v1197
        %v1199 = vrot.slane %v1198, 1
        %v1200 = vmax.f32 %v1198, %v1199
        %v1201 = vmax.f32 %v1161, %v1163
        %v1202 = vrot.slane %v1201, 4
        %v1203 = vmax.f32 %v1201, %v1202
        %v1204 = vrot.slane %v1203, 2
        %v1205 = vmax.f32 %v1203, %v1204
        %v1206 = vrot.slane %v1205, 1
        %v1207 = vmax.f32 %v1205, %v1206
        %v1208 = vmax.f32 %v1165, %v1167
        %v1209 = vrot.slane %v1208, 4
        %v1210 = vmax.f32 %v1208, %v1209
        %v1211 = vrot.slane %v1210, 2
        %v1212 = vmax.f32 %v1210, %v1211
        %v1213 = vrot.slane %v1212, 1
        %v1214 = vmax.f32 %v1212, %v1213
        %v1215 = vmax.f32 %v1169, %v1171
        %v1216 = vrot.slane %v1215, 4
        %v1217 = vmax.f32 %v1215, %v1216
        %v1218 = vrot.slane %v1217, 2
        %v1219 = vmax.f32 %v1217, %v1218
        %v1220 = vrot.slane %v1219, 1
        %v1221 = vmax.f32 %v1219, %v1220
        %v1222 = vmax.f32 %v1173, %v1175
        %v1223 = vrot.slane %v1222, 4
        %v1224 = vmax.f32 %v1222, %v1223
        %v1225 = vrot.slane %v1224, 2
        %v1226 = vmax.f32 %v1224, %v1225
        %v1227 = vrot.slane %v1226, 1
        %v1228 = vmax.f32 %v1226, %v1227
        %v1229 = vmax.f32 %v1177, %v1179
        %v1230 = vrot.slane %v1229, 4
        %v1231 = vmax.f32 %v1229, %v1230
        %v1232 = vrot.slane %v1231, 2
        %v1233 = vmax.f32 %v1231, %v1232
        %v1234 = vrot.slane %v1233, 1
        %v1235 = vmax.f32 %v1233, %v1234
        %v1236 = vmax.f32 %v1186, -1e+30
        %v1237 = vmax.f32 %v1193, -1e+30
        %v1238 = vmax.f32 %v1200, -1e+30
        %v1239 = vmax.f32 %v1207, -1e+30
        %v1240 = vmax.f32 %v1214, -1e+30
        %v1241 = vmax.f32 %v1221, -1e+30
        %v1242 = vmax.f32 %v1228, -1e+30
        %v1243 = vmax.f32 %v1235, -1e+30
        %v1244 = vsub.f32 %v1149, %v1236
        %v1245 = vsub.f32 %v1151, %v1236
        %v1246 = vsub.f32 %v1153, %v1237
        %v1247 = vsub.f32 %v1155, %v1237
        %v1248 = vsub.f32 %v1157, %v1238
        %v1249 = vsub.f32 %v1159, %v1238
        %v1250 = vsub.f32 %v1161, %v1239
        %v1251 = vsub.f32 %v1163, %v1239
        %v1252 = vsub.f32 %v1165, %v1240
        %v1253 = vsub.f32 %v1167, %v1240
        %v1254 = vsub.f32 %v1169, %v1241
        %v1255 = vsub.f32 %v1171, %v1241
        %v1256 = vsub.f32 %v1173, %v1242
        %v1257 = vsub.f32 %v1175, %v1242
        %v1258 = vsub.f32 %v1177, %v1243
        %v1259 = vsub.f32 %v1179, %v1243
        %v1260 = vmul.f32 %v1244, 1.442695
        %v1261 = vpow.pop %v1260
        %v1262 = vmul.f32 %v1245, 1.442695
        %v1263 = vpow.pop %v1262
        %v1264 = vmul.f32 %v1246, 1.442695
        %v1265 = vpow.pop %v1264
        %v1266 = vmul.f32 %v1247, 1.442695
        %v1267 = vpow.pop %v1266
        %v1268 = vmul.f32 %v1248, 1.442695
        %v1269 = vpow.pop %v1268
        %v1270 = vmul.f32 %v1249, 1.442695
        %v1271 = vpow.pop %v1270
        %v1272 = vmul.f32 %v1250, 1.442695
        %v1273 = vpow.pop %v1272
        %v1274 = vmul.f32 %v1251, 1.442695
        %v1275 = vpow.pop %v1274
        %v1276 = vmul.f32 %v1252, 1.442695
        %v1277 = vpow.pop %v1276
        %v1278 = vmul.f32 %v1253, 1.442695
        %v1279 = vpow.pop %v1278
        %v1280 = vmul.f32 %v1254, 1.442695
        %v1281 = vpow.pop %v1280
        %v1282 = vmul.f32 %v1255, 1.442695
        %v1283 = vpow.pop %v1282
        %v1284 = vmul.f32 %v1256, 1.442695
        %v1285 = vpow.pop %v1284
        %v1286 = vmul.f32 %v1257, 1.442695
        %v1287 = vpow.pop %v1286
        %v1288 = vmul.f32 %v1258, 1.442695
        %v1289 = vpow.pop %v1288
        %v1290 = vmul.f32 %v1259, 1.442695
        %v1291 = vpow.pop %v1290
        %v1292 = vmul.f32 %v1261, %v988
        %v1293 = vmul.f32 %v1263, %v989
        %v1294 = vmul.f32 %v1265, %v990
        %v1295 = vmul.f32 %v1267, %v991
        %v1296 = vmul.f32 %v1269, %v992
        %v1297 = vmul.f32 %v1271, %v993
        %v1298 = vmul.f32 %v1273, %v994
        %v1299 = vmul.f32 %v1275, %v995
        %v1300 = vmul.f32 %v1277, %v996
        %v1301 = vmul.f32 %v1279, %v997
        %v1302 = vmul.f32 %v1281, %v998
        %v1303 = vmul.f32 %v1283, %v999
        %v1304 = vmul.f32 %v1285, %v1000
        %v1305 = vmul.f32 %v1287, %v1001
        %v1306 = vmul.f32 %v1289, %v1002
        %v1307 = vmul.f32 %v1291, %v1003
        %v1308 = vsub.f32 -1e+30, %v1236
        %v1309 = vsub.f32 -1e+30, %v1237
        %v1310 = vsub.f32 -1e+30, %v1238
        %v1311 = vsub.f32 -1e+30, %v1239
        %v1312 = vsub.f32 -1e+30, %v1240
        %v1313 = vsub.f32 -1e+30, %v1241
        %v1314 = vsub.f32 -1e+30, %v1242
        %v1315 = vsub.f32 -1e+30, %v1243
        %v1316 = vmul.f32 %v1308, 1.442695
        %v1317 = vpow.pop %v1316
        %v1318 = vmul.f32 %v1309, 1.442695
        %v1319 = vpow.pop %v1318
        %v1320 = vmul.f32 %v1310, 1.442695
        %v1321 = vpow.pop %v1320
        %v1322 = vmul.f32 %v1311, 1.442695
        %v1323 = vpow.pop %v1322
        %v1324 = vmul.f32 %v1312, 1.442695
        %v1325 = vpow.pop %v1324
        %v1326 = vmul.f32 %v1313, 1.442695
        %v1327 = vpow.pop %v1326
        %v1328 = vmul.f32 %v1314, 1.442695
        %v1329 = vpow.pop %v1328
        %v1330 = vmul.f32 %v1315, 1.442695
        %v1331 = vpow.pop %v1330
        %v1332 = vmul.f32 %v1317, 0.0
        %v1333 = vmul.f32 %v1319, 0.0
        %v1334 = vmul.f32 %v1321, 0.0
        %v1335 = vmul.f32 %v1323, 0.0
        %v1336 = vmul.f32 %v1325, 0.0
        %v1337 = vmul.f32 %v1327, 0.0
        %v1338 = vmul.f32 %v1329, 0.0
        %v1339 = vmul.f32 %v1331, 0.0
        %vm1340 = vcmask 7168
        %v1341 = vsel %vm1340, %v1292, 0.0
        %v1342 = vsel %vm1340, %v1293, 0.0
        %v1343 = vadd.f32 %v1341, %v1342
        %v1344 = vrot.slane %v1343, 4
        %v1345 = vadd.f32 %v1343, %v1344
        %v1346 = vrot.slane %v1345, 2
        %v1347 = vadd.f32 %v1345, %v1346
        %v1348 = vrot.slane %v1347, 1
        %v1349 = vadd.f32 %v1347, %v1348
        %v1350 = vsel %vm1340, %v1294, 0.0
        %v1351 = vsel %vm1340, %v1295, 0.0
        %v1352 = vadd.f32 %v1350, %v1351
        %v1353 = vrot.slane %v1352, 4
        %v1354 = vadd.f32 %v1352, %v1353
        %v1355 = vrot.slane %v1354, 2
        %v1356 = vadd.f32 %v1354, %v1355
        %v1357 = vrot.slane %v1356, 1
        %v1358 = vadd.f32 %v1356, %v1357
        %v1359 = vsel %vm1340, %v1296, 0.0
        %v1360 = vsel %vm1340, %v1297, 0.0
        %v1361 = vadd.f32 %v1359, %v1360
        %v1362 = vrot.slane %v1361, 4
        %v1363 = vadd.f32 %v1361, %v1362
        %v1364 = vrot.slane %v1363, 2
        %v1365 = vadd.f32 %v1363, %v1364
        %v1366 = vrot.slane %v1365, 1
        %v1367 = vadd.f32 %v1365, %v1366
        %v1368 = vsel %vm1340, %v1298, 0.0
        %v1369 = vsel %vm1340, %v1299, 0.0
        %v1370 = vadd.f32 %v1368, %v1369
        %v1371 = vrot.slane %v1370, 4
        %v1372 = vadd.f32 %v1370, %v1371
        %v1373 = vrot.slane %v1372, 2
        %v1374 = vadd.f32 %v1372, %v1373
        %v1375 = vrot.slane %v1374, 1
        %v1376 = vadd.f32 %v1374, %v1375
        %v1377 = vsel %vm1340, %v1300, 0.0
        %v1378 = vsel %vm1340, %v1301, 0.0
        %v1379 = vadd.f32 %v1377, %v1378
        %v1380 = vrot.slane %v1379, 4
        %v1381 = vadd.f32 %v1379, %v1380
        %v1382 = vrot.slane %v1381, 2
        %v1383 = vadd.f32 %v1381, %v1382
        %v1384 = vrot.slane %v1383, 1
        %v1385 = vadd.f32 %v1383, %v1384
        %v1386 = vsel %vm1340, %v1302, 0.0
        %v1387 = vsel %vm1340, %v1303, 0.0
        %v1388 = vadd.f32 %v1386, %v1387
        %v1389 = vrot.slane %v1388, 4
        %v1390 = vadd.f32 %v1388, %v1389
        %v1391 = vrot.slane %v1390, 2
        %v1392 = vadd.f32 %v1390, %v1391
        %v1393 = vrot.slane %v1392, 1
        %v1394 = vadd.f32 %v1392, %v1393
        %v1395 = vsel %vm1340, %v1304, 0.0
        %v1396 = vsel %vm1340, %v1305, 0.0
        %v1397 = vadd.f32 %v1395, %v1396
        %v1398 = vrot.slane %v1397, 4
        %v1399 = vadd.f32 %v1397, %v1398
        %v1400 = vrot.slane %v1399, 2
        %v1401 = vadd.f32 %v1399, %v1400
        %v1402 = vrot.slane %v1401, 1
        %v1403 = vadd.f32 %v1401, %v1402
        %v1404 = vsel %vm1340, %v1306, 0.0
        %v1405 = vsel %vm1340, %v1307, 0.0
        %v1406 = vadd.f32 %v1404, %v1405
        %v1407 = vrot.slane %v1406, 4
        %v1408 = vadd.f32 %v1406, %v1407
        %v1409 = vrot.slane %v1408, 2
        %v1410 = vadd.f32 %v1408, %v1409
        %v1411 = vrot.slane %v1410, 1
        %v1412 = vadd.f32 %v1410, %v1411
        %v1413 = vadd.f32 %v1332, %v1349
        %v1414 = vadd.f32 %v1333, %v1358
        %v1415 = vadd.f32 %v1334, %v1367
        %v1416 = vadd.f32 %v1335, %v1376
        %v1417 = vadd.f32 %v1336, %v1385
        %v1418 = vadd.f32 %v1337, %v1394
        %v1419 = vadd.f32 %v1338, %v1403
        %v1420 = vadd.f32 %v1339, %v1412
        %1422 = vset.pattern.permute.xlu0 0
        %1423 = vperm.xlu0 %1422, %v1292
        %v1424 = vpop.permute.xlu0 %1423
        %1427 = vset.pattern.permute.xlu0 0
        %1428 = vperm.xlu0 %1427, %v1293
        %v1429 = vpop.permute.xlu0 %1428
        %1432 = vset.pattern.permute.xlu0 0
        %1433 = vperm.xlu0 %1432, %v1294
        %v1434 = vpop.permute.xlu0 %1433
        %1437 = vset.pattern.permute.xlu0 0
        %1438 = vperm.xlu0 %1437, %v1295
        %v1439 = vpop.permute.xlu0 %1438
        %1442 = vset.pattern.permute.xlu0 0
        %1443 = vperm.xlu0 %1442, %v1296
        %v1444 = vpop.permute.xlu0 %1443
        %1447 = vset.pattern.permute.xlu0 0
        %1448 = vperm.xlu0 %1447, %v1297
        %v1449 = vpop.permute.xlu0 %1448
        %1452 = vset.pattern.permute.xlu0 0
        %1453 = vperm.xlu0 %1452, %v1298
        %v1454 = vpop.permute.xlu0 %1453
        %1457 = vset.pattern.permute.xlu0 0
        %1458 = vperm.xlu0 %1457, %v1299
        %v1459 = vpop.permute.xlu0 %1458
        %1462 = vset.pattern.permute.xlu0 0
        %1463 = vperm.xlu0 %1462, %v1300
        %v1464 = vpop.permute.xlu0 %1463
        %1467 = vset.pattern.permute.xlu0 0
        %1468 = vperm.xlu0 %1467, %v1301
        %v1469 = vpop.permute.xlu0 %1468
        %1472 = vset.pattern.permute.xlu0 0
        %1473 = vperm.xlu0 %1472, %v1302
        %v1474 = vpop.permute.xlu0 %1473
        %1477 = vset.pattern.permute.xlu0 0
        %1478 = vperm.xlu0 %1477, %v1303
        %v1479 = vpop.permute.xlu0 %1478
        %1482 = vset.pattern.permute.xlu0 0
        %1483 = vperm.xlu0 %1482, %v1304
        %v1484 = vpop.permute.xlu0 %1483
        %1487 = vset.pattern.permute.xlu0 0
        %1488 = vperm.xlu0 %1487, %v1305
        %v1489 = vpop.permute.xlu0 %1488
        %1492 = vset.pattern.permute.xlu0 0
        %1493 = vperm.xlu0 %1492, %v1306
        %v1494 = vpop.permute.xlu0 %1493
        %1497 = vset.pattern.permute.xlu0 0
        %1498 = vperm.xlu0 %1497, %v1307
        %v1499 = vpop.permute.xlu0 %1498
        %v1501 = vmul.f32 %v1424, %v972
        %v1502 = vmul.f32 %v1429, %v973
        %v1503 = vmul.f32 %v1434, %v974
        %v1504 = vmul.f32 %v1439, %v975
        %v1505 = vmul.f32 %v1444, %v976
        %v1506 = vmul.f32 %v1449, %v977
        %v1507 = vmul.f32 %v1454, %v978
        %v1508 = vmul.f32 %v1459, %v979
        %v1509 = vmul.f32 %v1464, %v980
        %v1510 = vmul.f32 %v1469, %v981
        %v1511 = vmul.f32 %v1474, %v982
        %v1512 = vmul.f32 %v1479, %v983
        %v1513 = vmul.f32 %v1484, %v984
        %v1514 = vmul.f32 %v1489, %v985
        %v1515 = vmul.f32 %v1494, %v986
        %v1516 = vmul.f32 %v1499, %v987
        %v1517 = vadd.f32 %v1501, %v1502
        %v1518 = vrot.slane %v1517, 4
        %v1519 = vadd.f32 %v1517, %v1518
        %v1520 = vrot.slane %v1519, 2
        %v1521 = vadd.f32 %v1519, %v1520
        %v1522 = vrot.slane %v1521, 1
        %v1523 = vadd.f32 %v1521, %v1522
        %v1524 = vadd.f32 %v1503, %v1504
        %v1525 = vrot.slane %v1524, 4
        %v1526 = vadd.f32 %v1524, %v1525
        %v1527 = vrot.slane %v1526, 2
        %v1528 = vadd.f32 %v1526, %v1527
        %v1529 = vrot.slane %v1528, 1
        %v1530 = vadd.f32 %v1528, %v1529
        %v1531 = vadd.f32 %v1505, %v1506
        %v1532 = vrot.slane %v1531, 4
        %v1533 = vadd.f32 %v1531, %v1532
        %v1534 = vrot.slane %v1533, 2
        %v1535 = vadd.f32 %v1533, %v1534
        %v1536 = vrot.slane %v1535, 1
        %v1537 = vadd.f32 %v1535, %v1536
        %v1538 = vadd.f32 %v1507, %v1508
        %v1539 = vrot.slane %v1538, 4
        %v1540 = vadd.f32 %v1538, %v1539
        %v1541 = vrot.slane %v1540, 2
        %v1542 = vadd.f32 %v1540, %v1541
        %v1543 = vrot.slane %v1542, 1
        %v1544 = vadd.f32 %v1542, %v1543
        %v1545 = vadd.f32 %v1509, %v1510
        %v1546 = vrot.slane %v1545, 4
        %v1547 = vadd.f32 %v1545, %v1546
        %v1548 = vrot.slane %v1547, 2
        %v1549 = vadd.f32 %v1547, %v1548
        %v1550 = vrot.slane %v1549, 1
        %v1551 = vadd.f32 %v1549, %v1550
        %v1552 = vadd.f32 %v1511, %v1512
        %v1553 = vrot.slane %v1552, 4
        %v1554 = vadd.f32 %v1552, %v1553
        %v1555 = vrot.slane %v1554, 2
        %v1556 = vadd.f32 %v1554, %v1555
        %v1557 = vrot.slane %v1556, 1
        %v1558 = vadd.f32 %v1556, %v1557
        %v1559 = vadd.f32 %v1513, %v1514
        %v1560 = vrot.slane %v1559, 4
        %v1561 = vadd.f32 %v1559, %v1560
        %v1562 = vrot.slane %v1561, 2
        %v1563 = vadd.f32 %v1561, %v1562
        %v1564 = vrot.slane %v1563, 1
        %v1565 = vadd.f32 %v1563, %v1564
        %v1566 = vadd.f32 %v1515, %v1516
        %v1567 = vrot.slane %v1566, 4
        %v1568 = vadd.f32 %v1566, %v1567
        %v1569 = vrot.slane %v1568, 2
        %v1570 = vadd.f32 %v1568, %v1569
        %v1571 = vrot.slane %v1570, 1
        %v1572 = vadd.f32 %v1570, %v1571
        %v1573 = vadd.f32 %v1332, %v1523
        %v1574 = vadd.f32 %v1333, %v1530
        %v1575 = vadd.f32 %v1334, %v1537
        %v1576 = vadd.f32 %v1335, %v1544
        %v1577 = vadd.f32 %v1336, %v1551
        %v1578 = vadd.f32 %v1337, %v1558
        %v1579 = vadd.f32 %v1338, %v1565
        %v1580 = vadd.f32 %v1339, %v1572
        %1582 = vset.pattern.permute.xlu0 0
        %1583 = vperm.xlu0 %1582, %v1413
        %v1584 = vpop.permute.xlu0 %1583
        %1587 = vset.pattern.permute.xlu0 0
        %1588 = vperm.xlu0 %1587, %v1414
        %v1589 = vpop.permute.xlu0 %1588
        %1592 = vset.pattern.permute.xlu0 0
        %1593 = vperm.xlu0 %1592, %v1415
        %v1594 = vpop.permute.xlu0 %1593
        %1597 = vset.pattern.permute.xlu0 0
        %1598 = vperm.xlu0 %1597, %v1416
        %v1599 = vpop.permute.xlu0 %1598
        %1602 = vset.pattern.permute.xlu0 0
        %1603 = vperm.xlu0 %1602, %v1417
        %v1604 = vpop.permute.xlu0 %1603
        %1607 = vset.pattern.permute.xlu0 0
        %1608 = vperm.xlu0 %1607, %v1418
        %v1609 = vpop.permute.xlu0 %1608
        %1612 = vset.pattern.permute.xlu0 0
        %1613 = vperm.xlu0 %1612, %v1419
        %v1614 = vpop.permute.xlu0 %1613
        %1617 = vset.pattern.permute.xlu0 0
        %1618 = vperm.xlu0 %1617, %v1420
        %v1619 = vpop.permute.xlu0 %1618
        %v1621 = vrcp.pop %v1584
        %v1622 = vmul.f32 %v1573, %v1621
        %v1623 = vrcp.pop %v1589
        %v1624 = vmul.f32 %v1574, %v1623
        %v1625 = vrcp.pop %v1594
        %v1626 = vmul.f32 %v1575, %v1625
        %v1627 = vrcp.pop %v1599
        %v1628 = vmul.f32 %v1576, %v1627
        %v1629 = vrcp.pop %v1604
        %v1630 = vmul.f32 %v1577, %v1629
        %v1631 = vrcp.pop %v1609
        %v1632 = vmul.f32 %v1578, %v1631
        %v1633 = vrcp.pop %v1614
        %v1634 = vmul.f32 %v1579, %v1633
        %v1635 = vrcp.pop %v1619
        %v1636 = vmul.f32 %v1580, %v1635
        %v1637 = vld [vmem:[%s10 + $0x1] sm:$0x1]
        %v1638 = vld [vmem:[%s683] sm:$0xf]
        %v1639 = vld [vmem:[%s683 + $0x4] sm:$0xf]
        %v1640 = vld [vmem:[%s683 + $0x8] sm:$0xf]
        %v1641 = vld [vmem:[%s683 + $0xc] sm:$0xf]
        %v1642 = vld [vmem:[%s683 + $0x10] sm:$0xf]
        %v1643 = vld [vmem:[%s683 + $0x14] sm:$0xf]
        %v1644 = vld [vmem:[%s683 + $0x18] sm:$0xf]
        %v1645 = vld [vmem:[%s683 + $0x1c] sm:$0xf]
        %v1646 = vld [vmem:[%s683 + $0x20] sm:$0xf]
        %v1647 = vld [vmem:[%s683 + $0x24] sm:$0xf]
        %v1648 = vld [vmem:[%s683 + $0x28] sm:$0xf]
        %v1649 = vld [vmem:[%s683 + $0x2c] sm:$0xf]
        %v1650 = vld [vmem:[%s683 + $0x30] sm:$0xf]
        %v1651 = vld [vmem:[%s683 + $0x34] sm:$0xf]
        %v1652 = vld [vmem:[%s683 + $0x38] sm:$0xf]
        %v1653 = vld [vmem:[%s683 + $0x3c] sm:$0xf]
        %v1654 = vunpack.c.l.bf16 %v1638
        %v1655 = vunpack.c.l.bf16 %v1639
        %v1656 = vunpack.c.l.bf16 %v1640
        %v1657 = vunpack.c.l.bf16 %v1641
        %v1658 = vunpack.c.l.bf16 %v1642
        %v1659 = vunpack.c.l.bf16 %v1643
        %v1660 = vunpack.c.l.bf16 %v1644
        %v1661 = vunpack.c.l.bf16 %v1645
        %v1662 = vunpack.c.l.bf16 %v1646
        %v1663 = vunpack.c.l.bf16 %v1647
        %v1664 = vunpack.c.l.bf16 %v1648
        %v1665 = vunpack.c.l.bf16 %v1649
        %v1666 = vunpack.c.l.bf16 %v1650
        %v1667 = vunpack.c.l.bf16 %v1651
        %v1668 = vunpack.c.l.bf16 %v1652
        %v1669 = vunpack.c.l.bf16 %v1653
        %v1670 = vld [vmem:[%s674] sm:$0xf]
        %v1671 = vld [vmem:[%s674 + $0x4] sm:$0xf]
        %v1672 = vld [vmem:[%s674 + $0x8] sm:$0xf]
        %v1673 = vld [vmem:[%s674 + $0xc] sm:$0xf]
        %v1674 = vld [vmem:[%s674 + $0x10] sm:$0xf]
        %v1675 = vld [vmem:[%s674 + $0x14] sm:$0xf]
        %v1676 = vld [vmem:[%s674 + $0x18] sm:$0xf]
        %v1677 = vld [vmem:[%s674 + $0x1c] sm:$0xf]
        %v1678 = vld [vmem:[%s674 + $0x20] sm:$0xf]
        %v1679 = vld [vmem:[%s674 + $0x24] sm:$0xf]
        %v1680 = vld [vmem:[%s674 + $0x28] sm:$0xf]
        %v1681 = vld [vmem:[%s674 + $0x2c] sm:$0xf]
        %v1682 = vld [vmem:[%s674 + $0x30] sm:$0xf]
        %v1683 = vld [vmem:[%s674 + $0x34] sm:$0xf]
        %v1684 = vld [vmem:[%s674 + $0x38] sm:$0xf]
        %v1685 = vld [vmem:[%s674 + $0x3c] sm:$0xf]
        %v1686 = vunpack.c.l.bf16 %v1670
        %v1687 = vunpack.c.l.bf16 %v1671
        %v1688 = vunpack.c.l.bf16 %v1672
        %v1689 = vunpack.c.l.bf16 %v1673
        %v1690 = vunpack.c.l.bf16 %v1674
        %v1691 = vunpack.c.l.bf16 %v1675
        %v1692 = vunpack.c.l.bf16 %v1676
        %v1693 = vunpack.c.l.bf16 %v1677
        %v1694 = vunpack.c.l.bf16 %v1678
        %v1695 = vunpack.c.l.bf16 %v1679
        %v1696 = vunpack.c.l.bf16 %v1680
        %v1697 = vunpack.c.l.bf16 %v1681
        %v1698 = vunpack.c.l.bf16 %v1682
        %v1699 = vunpack.c.l.bf16 %v1683
        %v1700 = vunpack.c.l.bf16 %v1684
        %v1701 = vunpack.c.l.bf16 %v1685
        %v1702 = vld [vmem:[%s816] sm:$0xff]
        %v1703 = vld [vmem:[%s816 + $0x8] sm:$0xff]
        %v1704 = vld [vmem:[%s816 + $0x10] sm:$0xff]
        %v1705 = vld [vmem:[%s816 + $0x18] sm:$0xff]
        %v1706 = vld [vmem:[%s816 + $0x20] sm:$0xff]
        %v1707 = vld [vmem:[%s816 + $0x28] sm:$0xff]
        %v1708 = vld [vmem:[%s816 + $0x30] sm:$0xff]
        %v1709 = vld [vmem:[%s816 + $0x38] sm:$0xff]
        %v1710 = vld [vmem:[%s816 + $0x40] sm:$0xff]
        %v1711 = vld [vmem:[%s816 + $0x48] sm:$0xff]
        %v1712 = vld [vmem:[%s816 + $0x50] sm:$0xff]
        %v1713 = vld [vmem:[%s816 + $0x58] sm:$0xff]
        %v1714 = vld [vmem:[%s816 + $0x60] sm:$0xff]
        %v1715 = vld [vmem:[%s816 + $0x68] sm:$0xff]
        %v1716 = vld [vmem:[%s816 + $0x70] sm:$0xff]
        %v1717 = vld [vmem:[%s816 + $0x78] sm:$0xff]
        %v1719 = vcombine.high %v921, %v921
        %v1721 = vunpack.c.l.s4 1966171168
        %v1722 = vunpack.c.0.s8 %v1721
        %v1723 = vlaneseq
        %v1724 = vshrl.u32 %v1723, 7
        %v1725 = vsub.s32 %v1722, %v1724
        %v1726 = vrot.slane %v921, %v1725
        %v1728 = vunpack.c.l.s4 1966171168
        %v1729 = vunpack.c.0.s8 %v1728
        %v1730 = vlaneseq
        %v1731 = vshrl.u32 %v1730, 7
        %v1732 = vsub.s32 %v1729, %v1731
        %v1733 = vrot.slane %v1719, %v1732
        %v1734 = vcombine.high %v1726, %v1726
        %v1735 = vcombine.high %v1733, %v1733
        %v1737 = vunpack.c.l.s4 1966171168
        %v1738 = vunpack.c.0.s8 %v1737
        %v1739 = vlaneseq
        %v1740 = vshrl.u32 %v1739, 7
        %v1741 = vsub.s32 %v1738, %v1740
        %v1742 = vrot.slane %v1726, %v1741
        %v1744 = vunpack.c.l.s4 1966171168
        %v1745 = vunpack.c.0.s8 %v1744
        %v1746 = vlaneseq
        %v1747 = vshrl.u32 %v1746, 7
        %v1748 = vsub.s32 %v1745, %v1747
        %v1749 = vrot.slane %v1733, %v1748
        %v1751 = vunpack.c.l.s4 1966171168
        %v1752 = vunpack.c.0.s8 %v1751
        %v1753 = vlaneseq
        %v1754 = vshrl.u32 %v1753, 7
        %v1755 = vsub.s32 %v1752, %v1754
        %v1756 = vrot.slane %v1734, %v1755
        %v1758 = vunpack.c.l.s4 1966171168
        %v1759 = vunpack.c.0.s8 %v1758
        %v1760 = vlaneseq
        %v1761 = vshrl.u32 %v1760, 7
        %v1762 = vsub.s32 %v1759, %v1761
        %v1763 = vrot.slane %v1735, %v1762
        %v1764 = vcombine.high %v1742, %v1742
        %v1765 = vcombine.high %v1749, %v1749
        %v1766 = vcombine.high %v1756, %v1756
        %v1767 = vcombine.high %v1763, %v1763
        %v1768 = vlaneseq
        %v1769 = vshrl.u32 %v1768, 7
        %v1770 = vsub.s32 0, %v1769
        %v1771 = vrot.slane %v1742, %v1770
        %v1772 = vlaneseq
        %v1773 = vshrl.u32 %v1772, 7
        %v1774 = vsub.s32 0, %v1773
        %v1775 = vrot.slane %v1756, %v1774
        %v1776 = vlaneseq
        %v1777 = vshrl.u32 %v1776, 7
        %v1778 = vsub.s32 0, %v1777
        %v1779 = vrot.slane %v1764, %v1778
        %v1780 = vlaneseq
        %v1781 = vshrl.u32 %v1780, 7
        %v1782 = vsub.s32 0, %v1781
        %v1783 = vrot.slane %v1766, %v1782
        %v1784 = vlaneseq
        %v1785 = vshrl.u32 %v1784, 7
        %v1786 = vsub.s32 0, %v1785
        %v1787 = vrot.slane %v1749, %v1786
        %v1788 = vlaneseq
        %v1789 = vshrl.u32 %v1788, 7
        %v1790 = vsub.s32 0, %v1789
        %v1791 = vrot.slane %v1763, %v1790
        %v1792 = vlaneseq
        %v1793 = vshrl.u32 %v1792, 7
        %v1794 = vsub.s32 0, %v1793
        %v1795 = vrot.slane %v1765, %v1794
        %v1796 = vlaneseq
        %v1797 = vshrl.u32 %v1796, 7
        %v1798 = vsub.s32 0, %v1797
        %v1799 = vrot.slane %v1767, %v1798
        %v1808 = vadd.f32 %v1654, %v1771
        %v1809 = vadd.f32 %v1655, %v1771
        %v1810 = vadd.f32 %v1656, %v1775
        %v1811 = vadd.f32 %v1657, %v1775
        %v1812 = vadd.f32 %v1658, %v1779
        %v1813 = vadd.f32 %v1659, %v1779
        %v1814 = vadd.f32 %v1660, %v1783
        %v1815 = vadd.f32 %v1661, %v1783
        %v1816 = vadd.f32 %v1662, %v1787
        %v1817 = vadd.f32 %v1663, %v1787
        %v1818 = vadd.f32 %v1664, %v1791
        %v1819 = vadd.f32 %v1665, %v1791
        %v1820 = vadd.f32 %v1666, %v1795
        %v1821 = vadd.f32 %v1667, %v1795
        %v1822 = vadd.f32 %v1668, %v1799
        %v1823 = vadd.f32 %v1669, %v1799
        %v1824 = vtanh.pop %v1808
        %v1825 = vtanh.pop %v1809
        %v1826 = vtanh.pop %v1810
        %v1827 = vtanh.pop %v1811
        %v1828 = vtanh.pop %v1812
        %v1829 = vtanh.pop %v1813
        %v1830 = vtanh.pop %v1814
        %v1831 = vtanh.pop %v1815
        %v1832 = vtanh.pop %v1816
        %v1833 = vtanh.pop %v1817
        %v1834 = vtanh.pop %v1818
        %v1835 = vtanh.pop %v1819
        %v1836 = vtanh.pop %v1820
        %v1837 = vtanh.pop %v1821
        %v1838 = vtanh.pop %v1822
        %v1839 = vtanh.pop %v1823
        %v1841 = vlaneseq
        %v1842 = vshrl.u32 %v1841, 7
        %v1843 = vsub.s32 0, %v1842
        %v1844 = vrot.slane %v1637, %v1843
        %v1846 = vmul.f32 %v1824, %v1844
        %v1847 = vmul.f32 %v1825, %v1844
        %v1848 = vmul.f32 %v1826, %v1844
        %v1849 = vmul.f32 %v1827, %v1844
        %v1850 = vmul.f32 %v1828, %v1844
        %v1851 = vmul.f32 %v1829, %v1844
        %v1852 = vmul.f32 %v1830, %v1844
        %v1853 = vmul.f32 %v1831, %v1844
        %v1854 = vmul.f32 %v1832, %v1844
        %v1855 = vmul.f32 %v1833, %v1844
        %v1856 = vmul.f32 %v1834, %v1844
        %v1857 = vmul.f32 %v1835, %v1844
        %v1858 = vmul.f32 %v1836, %v1844
        %v1859 = vmul.f32 %v1837, %v1844
        %v1860 = vmul.f32 %v1838, %v1844
        %v1861 = vmul.f32 %v1839, %v1844
        %1862 = vadd.xlane.f32.xlu0 %v1846
        %v1863 = vpop.xlane.xlu0 %1862
        %1864 = vadd.xlane.f32.xlu0 %v1847
        %v1865 = vpop.xlane.xlu0 %1864
        %1866 = vadd.xlane.f32.xlu0 %v1848
        %v1867 = vpop.xlane.xlu0 %1866
        %1868 = vadd.xlane.f32.xlu0 %v1849
        %v1869 = vpop.xlane.xlu0 %1868
        %1870 = vadd.xlane.f32.xlu0 %v1850
        %v1871 = vpop.xlane.xlu0 %1870
        %1872 = vadd.xlane.f32.xlu0 %v1851
        %v1873 = vpop.xlane.xlu0 %1872
        %1874 = vadd.xlane.f32.xlu0 %v1852
        %v1875 = vpop.xlane.xlu0 %1874
        %1876 = vadd.xlane.f32.xlu0 %v1853
        %v1877 = vpop.xlane.xlu0 %1876
        %1878 = vadd.xlane.f32.xlu0 %v1854
        %v1879 = vpop.xlane.xlu0 %1878
        %1880 = vadd.xlane.f32.xlu0 %v1855
        %v1881 = vpop.xlane.xlu0 %1880
        %1882 = vadd.xlane.f32.xlu0 %v1856
        %v1883 = vpop.xlane.xlu0 %1882
        %1884 = vadd.xlane.f32.xlu0 %v1857
        %v1885 = vpop.xlane.xlu0 %1884
        %1886 = vadd.xlane.f32.xlu0 %v1858
        %v1887 = vpop.xlane.xlu0 %1886
        %1888 = vadd.xlane.f32.xlu0 %v1859
        %v1889 = vpop.xlane.xlu0 %1888
        %1890 = vadd.xlane.f32.xlu0 %v1860
        %v1891 = vpop.xlane.xlu0 %1890
        %1892 = vadd.xlane.f32.xlu0 %v1861
        %v1893 = vpop.xlane.xlu0 %1892
        %v1894 = vmax.f32 %v1863, %v1865
        %v1895 = vrot.slane %v1894, 4
        %v1896 = vmax.f32 %v1894, %v1895
        %v1897 = vrot.slane %v1896, 2
        %v1898 = vmax.f32 %v1896, %v1897
        %v1899 = vrot.slane %v1898, 1
        %v1900 = vmax.f32 %v1898, %v1899
        %v1901 = vmax.f32 %v1867, %v1869
        %v1902 = vrot.slane %v1901, 4
        %v1903 = vmax.f32 %v1901, %v1902
        %v1904 = vrot.slane %v1903, 2
        %v1905 = vmax.f32 %v1903, %v1904
        %v1906 = vrot.slane %v1905, 1
        %v1907 = vmax.f32 %v1905, %v1906
        %v1908 = vmax.f32 %v1871, %v1873
        %v1909 = vrot.slane %v1908, 4
        %v1910 = vmax.f32 %v1908, %v1909
        %v1911 = vrot.slane %v1910, 2
        %v1912 = vmax.f32 %v1910, %v1911
        %v1913 = vrot.slane %v1912, 1
        %v1914 = vmax.f32 %v1912, %v1913
        %v1915 = vmax.f32 %v1875, %v1877
        %v1916 = vrot.slane %v1915, 4
        %v1917 = vmax.f32 %v1915, %v1916
        %v1918 = vrot.slane %v1917, 2
        %v1919 = vmax.f32 %v1917, %v1918
        %v1920 = vrot.slane %v1919, 1
        %v1921 = vmax.f32 %v1919, %v1920
        %v1922 = vmax.f32 %v1879, %v1881
        %v1923 = vrot.slane %v1922, 4
        %v1924 = vmax.f32 %v1922, %v1923
        %v1925 = vrot.slane %v1924, 2
        %v1926 = vmax.f32 %v1924, %v1925
        %v1927 = vrot.slane %v1926, 1
        %v1928 = vmax.f32 %v1926, %v1927
        %v1929 = vmax.f32 %v1883, %v1885
        %v1930 = vrot.slane %v1929, 4
        %v1931 = vmax.f32 %v1929, %v1930
        %v1932 = vrot.slane %v1931, 2
        %v1933 = vmax.f32 %v1931, %v1932
        %v1934 = vrot.slane %v1933, 1
        %v1935 = vmax.f32 %v1933, %v1934
        %v1936 = vmax.f32 %v1887, %v1889
        %v1937 = vrot.slane %v1936, 4
        %v1938 = vmax.f32 %v1936, %v1937
        %v1939 = vrot.slane %v1938, 2
        %v1940 = vmax.f32 %v1938, %v1939
        %v1941 = vrot.slane %v1940, 1
        %v1942 = vmax.f32 %v1940, %v1941
        %v1943 = vmax.f32 %v1891, %v1893
        %v1944 = vrot.slane %v1943, 4
        %v1945 = vmax.f32 %v1943, %v1944
        %v1946 = vrot.slane %v1945, 2
        %v1947 = vmax.f32 %v1945, %v1946
        %v1948 = vrot.slane %v1947, 1
        %v1949 = vmax.f32 %v1947, %v1948
        %v1950 = vmax.f32 %v1900, -1e+30
        %v1951 = vmax.f32 %v1907, -1e+30
        %v1952 = vmax.f32 %v1914, -1e+30
        %v1953 = vmax.f32 %v1921, -1e+30
        %v1954 = vmax.f32 %v1928, -1e+30
        %v1955 = vmax.f32 %v1935, -1e+30
        %v1956 = vmax.f32 %v1942, -1e+30
        %v1957 = vmax.f32 %v1949, -1e+30
        %v1958 = vsub.f32 %v1863, %v1950
        %v1959 = vsub.f32 %v1865, %v1950
        %v1960 = vsub.f32 %v1867, %v1951
        %v1961 = vsub.f32 %v1869, %v1951
        %v1962 = vsub.f32 %v1871, %v1952
        %v1963 = vsub.f32 %v1873, %v1952
        %v1964 = vsub.f32 %v1875, %v1953
        %v1965 = vsub.f32 %v1877, %v1953
        %v1966 = vsub.f32 %v1879, %v1954
        %v1967 = vsub.f32 %v1881, %v1954
        %v1968 = vsub.f32 %v1883, %v1955
        %v1969 = vsub.f32 %v1885, %v1955
        %v1970 = vsub.f32 %v1887, %v1956
        %v1971 = vsub.f32 %v1889, %v1956
        %v1972 = vsub.f32 %v1891, %v1957
        %v1973 = vsub.f32 %v1893, %v1957
        %v1974 = vmul.f32 %v1958, 1.442695
        %v1975 = vpow.pop %v1974
        %v1976 = vmul.f32 %v1959, 1.442695
        %v1977 = vpow.pop %v1976
        %v1978 = vmul.f32 %v1960, 1.442695
        %v1979 = vpow.pop %v1978
        %v1980 = vmul.f32 %v1961, 1.442695
        %v1981 = vpow.pop %v1980
        %v1982 = vmul.f32 %v1962, 1.442695
        %v1983 = vpow.pop %v1982
        %v1984 = vmul.f32 %v1963, 1.442695
        %v1985 = vpow.pop %v1984
        %v1986 = vmul.f32 %v1964, 1.442695
        %v1987 = vpow.pop %v1986
        %v1988 = vmul.f32 %v1965, 1.442695
        %v1989 = vpow.pop %v1988
        %v1990 = vmul.f32 %v1966, 1.442695
        %v1991 = vpow.pop %v1990
        %v1992 = vmul.f32 %v1967, 1.442695
        %v1993 = vpow.pop %v1992
        %v1994 = vmul.f32 %v1968, 1.442695
        %v1995 = vpow.pop %v1994
        %v1996 = vmul.f32 %v1969, 1.442695
        %v1997 = vpow.pop %v1996
        %v1998 = vmul.f32 %v1970, 1.442695
        %v1999 = vpow.pop %v1998
        %v2000 = vmul.f32 %v1971, 1.442695
        %v2001 = vpow.pop %v2000
        %v2002 = vmul.f32 %v1972, 1.442695
        %v2003 = vpow.pop %v2002
        %v2004 = vmul.f32 %v1973, 1.442695
        %v2005 = vpow.pop %v2004
        %v2006 = vmul.f32 %v1975, %v1702
        %v2007 = vmul.f32 %v1977, %v1703
        %v2008 = vmul.f32 %v1979, %v1704
        %v2009 = vmul.f32 %v1981, %v1705
        %v2010 = vmul.f32 %v1983, %v1706
        %v2011 = vmul.f32 %v1985, %v1707
        %v2012 = vmul.f32 %v1987, %v1708
        %v2013 = vmul.f32 %v1989, %v1709
        %v2014 = vmul.f32 %v1991, %v1710
        %v2015 = vmul.f32 %v1993, %v1711
        %v2016 = vmul.f32 %v1995, %v1712
        %v2017 = vmul.f32 %v1997, %v1713
        %v2018 = vmul.f32 %v1999, %v1714
        %v2019 = vmul.f32 %v2001, %v1715
        %v2020 = vmul.f32 %v2003, %v1716
        %v2021 = vmul.f32 %v2005, %v1717
        %v2022 = vsub.f32 -1e+30, %v1950
        %v2023 = vsub.f32 -1e+30, %v1951
        %v2024 = vsub.f32 -1e+30, %v1952
        %v2025 = vsub.f32 -1e+30, %v1953
        %v2026 = vsub.f32 -1e+30, %v1954
        %v2027 = vsub.f32 -1e+30, %v1955
        %v2028 = vsub.f32 -1e+30, %v1956
        %v2029 = vsub.f32 -1e+30, %v1957
        %v2030 = vmul.f32 %v2022, 1.442695
        %v2031 = vpow.pop %v2030
        %v2032 = vmul.f32 %v2023, 1.442695
        %v2033 = vpow.pop %v2032
        %v2034 = vmul.f32 %v2024, 1.442695
        %v2035 = vpow.pop %v2034
        %v2036 = vmul.f32 %v2025, 1.442695
        %v2037 = vpow.pop %v2036
        %v2038 = vmul.f32 %v2026, 1.442695
        %v2039 = vpow.pop %v2038
        %v2040 = vmul.f32 %v2027, 1.442695
        %v2041 = vpow.pop %v2040
        %v2042 = vmul.f32 %v2028, 1.442695
        %v2043 = vpow.pop %v2042
        %v2044 = vmul.f32 %v2029, 1.442695
        %v2045 = vpow.pop %v2044
        %v2046 = vmul.f32 %v2031, 0.0
        %v2047 = vmul.f32 %v2033, 0.0
        %v2048 = vmul.f32 %v2035, 0.0
        %v2049 = vmul.f32 %v2037, 0.0
        %v2050 = vmul.f32 %v2039, 0.0
        %v2051 = vmul.f32 %v2041, 0.0
        %v2052 = vmul.f32 %v2043, 0.0
        %v2053 = vmul.f32 %v2045, 0.0
        %v2054 = vsel %vm1340, %v2006, 0.0
        %v2055 = vsel %vm1340, %v2007, 0.0
        %v2056 = vadd.f32 %v2054, %v2055
        %v2057 = vrot.slane %v2056, 4
        %v2058 = vadd.f32 %v2056, %v2057
        %v2059 = vrot.slane %v2058, 2
        %v2060 = vadd.f32 %v2058, %v2059
        %v2061 = vrot.slane %v2060, 1
        %v2062 = vadd.f32 %v2060, %v2061
        %v2063 = vsel %vm1340, %v2008, 0.0
        %v2064 = vsel %vm1340, %v2009, 0.0
        %v2065 = vadd.f32 %v2063, %v2064
        %v2066 = vrot.slane %v2065, 4
        %v2067 = vadd.f32 %v2065, %v2066
        %v2068 = vrot.slane %v2067, 2
        %v2069 = vadd.f32 %v2067, %v2068
        %v2070 = vrot.slane %v2069, 1
        %v2071 = vadd.f32 %v2069, %v2070
        %v2072 = vsel %vm1340, %v2010, 0.0
        %v2073 = vsel %vm1340, %v2011, 0.0
        %v2074 = vadd.f32 %v2072, %v2073
        %v2075 = vrot.slane %v2074, 4
        %v2076 = vadd.f32 %v2074, %v2075
        %v2077 = vrot.slane %v2076, 2
        %v2078 = vadd.f32 %v2076, %v2077
        %v2079 = vrot.slane %v2078, 1
        %v2080 = vadd.f32 %v2078, %v2079
        %v2081 = vsel %vm1340, %v2012, 0.0
        %v2082 = vsel %vm1340, %v2013, 0.0
        %v2083 = vadd.f32 %v2081, %v2082
        %v2084 = vrot.slane %v2083, 4
        %v2085 = vadd.f32 %v2083, %v2084
        %v2086 = vrot.slane %v2085, 2
        %v2087 = vadd.f32 %v2085, %v2086
        %v2088 = vrot.slane %v2087, 1
        %v2089 = vadd.f32 %v2087, %v2088
        %v2090 = vsel %vm1340, %v2014, 0.0
        %v2091 = vsel %vm1340, %v2015, 0.0
        %v2092 = vadd.f32 %v2090, %v2091
        %v2093 = vrot.slane %v2092, 4
        %v2094 = vadd.f32 %v2092, %v2093
        %v2095 = vrot.slane %v2094, 2
        %v2096 = vadd.f32 %v2094, %v2095
        %v2097 = vrot.slane %v2096, 1
        %v2098 = vadd.f32 %v2096, %v2097
        %v2099 = vsel %vm1340, %v2016, 0.0
        %v2100 = vsel %vm1340, %v2017, 0.0
        %v2101 = vadd.f32 %v2099, %v2100
        %v2102 = vrot.slane %v2101, 4
        %v2103 = vadd.f32 %v2101, %v2102
        %v2104 = vrot.slane %v2103, 2
        %v2105 = vadd.f32 %v2103, %v2104
        %v2106 = vrot.slane %v2105, 1
        %v2107 = vadd.f32 %v2105, %v2106
        %v2108 = vsel %vm1340, %v2018, 0.0
        %v2109 = vsel %vm1340, %v2019, 0.0
        %v2110 = vadd.f32 %v2108, %v2109
        %v2111 = vrot.slane %v2110, 4
        %v2112 = vadd.f32 %v2110, %v2111
        %v2113 = vrot.slane %v2112, 2
        %v2114 = vadd.f32 %v2112, %v2113
        %v2115 = vrot.slane %v2114, 1
        %v2116 = vadd.f32 %v2114, %v2115
        %v2117 = vsel %vm1340, %v2020, 0.0
        %v2118 = vsel %vm1340, %v2021, 0.0
        %v2119 = vadd.f32 %v2117, %v2118
        %v2120 = vrot.slane %v2119, 4
        %v2121 = vadd.f32 %v2119, %v2120
        %v2122 = vrot.slane %v2121, 2
        %v2123 = vadd.f32 %v2121, %v2122
        %v2124 = vrot.slane %v2123, 1
        %v2125 = vadd.f32 %v2123, %v2124
        %v2126 = vadd.f32 %v2046, %v2062
        %v2127 = vadd.f32 %v2047, %v2071
        %v2128 = vadd.f32 %v2048, %v2080
        %v2129 = vadd.f32 %v2049, %v2089
        %v2130 = vadd.f32 %v2050, %v2098
        %v2131 = vadd.f32 %v2051, %v2107
        %v2132 = vadd.f32 %v2052, %v2116
        %v2133 = vadd.f32 %v2053, %v2125
        %2135 = vset.pattern.permute.xlu0 0
        %2136 = vperm.xlu0 %2135, %v2006
        %v2137 = vpop.permute.xlu0 %2136
        %2140 = vset.pattern.permute.xlu0 0
        %2141 = vperm.xlu0 %2140, %v2007
        %v2142 = vpop.permute.xlu0 %2141
        %2145 = vset.pattern.permute.xlu0 0
        %2146 = vperm.xlu0 %2145, %v2008
        %v2147 = vpop.permute.xlu0 %2146
        %2150 = vset.pattern.permute.xlu0 0
        %2151 = vperm.xlu0 %2150, %v2009
        %v2152 = vpop.permute.xlu0 %2151
        %2155 = vset.pattern.permute.xlu0 0
        %2156 = vperm.xlu0 %2155, %v2010
        %v2157 = vpop.permute.xlu0 %2156
        %2160 = vset.pattern.permute.xlu0 0
        %2161 = vperm.xlu0 %2160, %v2011
        %v2162 = vpop.permute.xlu0 %2161
        %2165 = vset.pattern.permute.xlu0 0
        %2166 = vperm.xlu0 %2165, %v2012
        %v2167 = vpop.permute.xlu0 %2166
        %2170 = vset.pattern.permute.xlu0 0
        %2171 = vperm.xlu0 %2170, %v2013
        %v2172 = vpop.permute.xlu0 %2171
        %2175 = vset.pattern.permute.xlu0 0
        %2176 = vperm.xlu0 %2175, %v2014
        %v2177 = vpop.permute.xlu0 %2176
        %2180 = vset.pattern.permute.xlu0 0
        %2181 = vperm.xlu0 %2180, %v2015
        %v2182 = vpop.permute.xlu0 %2181
        %2185 = vset.pattern.permute.xlu0 0
        %2186 = vperm.xlu0 %2185, %v2016
        %v2187 = vpop.permute.xlu0 %2186
        %2190 = vset.pattern.permute.xlu0 0
        %2191 = vperm.xlu0 %2190, %v2017
        %v2192 = vpop.permute.xlu0 %2191
        %2195 = vset.pattern.permute.xlu0 0
        %2196 = vperm.xlu0 %2195, %v2018
        %v2197 = vpop.permute.xlu0 %2196
        %2200 = vset.pattern.permute.xlu0 0
        %2201 = vperm.xlu0 %2200, %v2019
        %v2202 = vpop.permute.xlu0 %2201
        %2205 = vset.pattern.permute.xlu0 0
        %2206 = vperm.xlu0 %2205, %v2020
        %v2207 = vpop.permute.xlu0 %2206
        %2210 = vset.pattern.permute.xlu0 0
        %2211 = vperm.xlu0 %2210, %v2021
        %v2212 = vpop.permute.xlu0 %2211
        %v2214 = vmul.f32 %v2137, %v1686
        %v2215 = vmul.f32 %v2142, %v1687
        %v2216 = vmul.f32 %v2147, %v1688
        %v2217 = vmul.f32 %v2152, %v1689
        %v2218 = vmul.f32 %v2157, %v1690
        %v2219 = vmul.f32 %v2162, %v1691
        %v2220 = vmul.f32 %v2167, %v1692
        %v2221 = vmul.f32 %v2172, %v1693
        %v2222 = vmul.f32 %v2177, %v1694
        %v2223 = vmul.f32 %v2182, %v1695
        %v2224 = vmul.f32 %v2187, %v1696
        %v2225 = vmul.f32 %v2192, %v1697
        %v2226 = vmul.f32 %v2197, %v1698
        %v2227 = vmul.f32 %v2202, %v1699
        %v2228 = vmul.f32 %v2207, %v1700
        %v2229 = vmul.f32 %v2212, %v1701
        %v2230 = vadd.f32 %v2214, %v2215
        %v2231 = vrot.slane %v2230, 4
        %v2232 = vadd.f32 %v2230, %v2231
        %v2233 = vrot.slane %v2232, 2
        %v2234 = vadd.f32 %v2232, %v2233
        %v2235 = vrot.slane %v2234, 1
        %v2236 = vadd.f32 %v2234, %v2235
        %v2237 = vadd.f32 %v2216, %v2217
        %v2238 = vrot.slane %v2237, 4
        %v2239 = vadd.f32 %v2237, %v2238
        %v2240 = vrot.slane %v2239, 2
        %v2241 = vadd.f32 %v2239, %v2240
        %v2242 = vrot.slane %v2241, 1
        %v2243 = vadd.f32 %v2241, %v2242
        %v2244 = vadd.f32 %v2218, %v2219
        %v2245 = vrot.slane %v2244, 4
        %v2246 = vadd.f32 %v2244, %v2245
        %v2247 = vrot.slane %v2246, 2
        %v2248 = vadd.f32 %v2246, %v2247
        %v2249 = vrot.slane %v2248, 1
        %v2250 = vadd.f32 %v2248, %v2249
        %v2251 = vadd.f32 %v2220, %v2221
        %v2252 = vrot.slane %v2251, 4
        %v2253 = vadd.f32 %v2251, %v2252
        %v2254 = vrot.slane %v2253, 2
        %v2255 = vadd.f32 %v2253, %v2254
        %v2256 = vrot.slane %v2255, 1
        %v2257 = vadd.f32 %v2255, %v2256
        %v2258 = vadd.f32 %v2222, %v2223
        %v2259 = vrot.slane %v2258, 4
        %v2260 = vadd.f32 %v2258, %v2259
        %v2261 = vrot.slane %v2260, 2
        %v2262 = vadd.f32 %v2260, %v2261
        %v2263 = vrot.slane %v2262, 1
        %v2264 = vadd.f32 %v2262, %v2263
        %v2265 = vadd.f32 %v2224, %v2225
        %v2266 = vrot.slane %v2265, 4
        %v2267 = vadd.f32 %v2265, %v2266
        %v2268 = vrot.slane %v2267, 2
        %v2269 = vadd.f32 %v2267, %v2268
        %v2270 = vrot.slane %v2269, 1
        %v2271 = vadd.f32 %v2269, %v2270
        %v2272 = vadd.f32 %v2226, %v2227
        %v2273 = vrot.slane %v2272, 4
        %v2274 = vadd.f32 %v2272, %v2273
        %v2275 = vrot.slane %v2274, 2
        %v2276 = vadd.f32 %v2274, %v2275
        %v2277 = vrot.slane %v2276, 1
        %v2278 = vadd.f32 %v2276, %v2277
        %v2279 = vadd.f32 %v2228, %v2229
        %v2280 = vrot.slane %v2279, 4
        %v2281 = vadd.f32 %v2279, %v2280
        %v2282 = vrot.slane %v2281, 2
        %v2283 = vadd.f32 %v2281, %v2282
        %v2284 = vrot.slane %v2283, 1
        %v2285 = vadd.f32 %v2283, %v2284
        %v2286 = vadd.f32 %v2046, %v2236
        %v2287 = vadd.f32 %v2047, %v2243
        %v2288 = vadd.f32 %v2048, %v2250
        %v2289 = vadd.f32 %v2049, %v2257
        %v2290 = vadd.f32 %v2050, %v2264
        %v2291 = vadd.f32 %v2051, %v2271
        %v2292 = vadd.f32 %v2052, %v2278
        %v2293 = vadd.f32 %v2053, %v2285
        %2295 = vset.pattern.permute.xlu0 0
        %2296 = vperm.xlu0 %2295, %v2126
        %v2297 = vpop.permute.xlu0 %2296
        %2300 = vset.pattern.permute.xlu0 0
        %2301 = vperm.xlu0 %2300, %v2127
        %v2302 = vpop.permute.xlu0 %2301
        %2305 = vset.pattern.permute.xlu0 0
        %2306 = vperm.xlu0 %2305, %v2128
        %v2307 = vpop.permute.xlu0 %2306
        %2310 = vset.pattern.permute.xlu0 0
        %2311 = vperm.xlu0 %2310, %v2129
        %v2312 = vpop.permute.xlu0 %2311
        %2315 = vset.pattern.permute.xlu0 0
        %2316 = vperm.xlu0 %2315, %v2130
        %v2317 = vpop.permute.xlu0 %2316
        %2320 = vset.pattern.permute.xlu0 0
        %2321 = vperm.xlu0 %2320, %v2131
        %v2322 = vpop.permute.xlu0 %2321
        %2325 = vset.pattern.permute.xlu0 0
        %2326 = vperm.xlu0 %2325, %v2132
        %v2327 = vpop.permute.xlu0 %2326
        %2330 = vset.pattern.permute.xlu0 0
        %2331 = vperm.xlu0 %2330, %v2133
        %v2332 = vpop.permute.xlu0 %2331
        %v2334 = vrcp.pop %v2297
        %v2335 = vmul.f32 %v2286, %v2334
        %v2336 = vrcp.pop %v2302
        %v2337 = vmul.f32 %v2287, %v2336
        %v2338 = vrcp.pop %v2307
        %v2339 = vmul.f32 %v2288, %v2338
        %v2340 = vrcp.pop %v2312
        %v2341 = vmul.f32 %v2289, %v2340
        %v2342 = vrcp.pop %v2317
        %v2343 = vmul.f32 %v2290, %v2342
        %v2344 = vrcp.pop %v2322
        %v2345 = vmul.f32 %v2291, %v2344
        %v2346 = vrcp.pop %v2327
        %v2347 = vmul.f32 %v2292, %v2346
        %v2348 = vrcp.pop %v2332
        %v2349 = vmul.f32 %v2293, %v2348
        %v2350 = vld [vmem:[#allocation11] sm:$0xff]
        %v2351 = vld [vmem:[#allocation11 + $0x8] sm:$0xff]
        %v2352 = vld [vmem:[#allocation11 + $0x10] sm:$0xff]
        %v2353 = vld [vmem:[#allocation11 + $0x18] sm:$0xff]
        %v2354 = vld [vmem:[#allocation11 + $0x20] sm:$0xff]
        %v2355 = vld [vmem:[#allocation11 + $0x28] sm:$0xff]
        %v2356 = vld [vmem:[#allocation11 + $0x30] sm:$0xff]
        %v2357 = vld [vmem:[#allocation11 + $0x38] sm:$0xff]
        %v2358 = vld [vmem:[#allocation11 + $0x40] sm:$0xff]
        %v2359 = vld [vmem:[#allocation11 + $0x48] sm:$0xff]
        %v2360 = vld [vmem:[#allocation11 + $0x50] sm:$0xff]
        %v2361 = vld [vmem:[#allocation11 + $0x58] sm:$0xff]
        %v2362 = vld [vmem:[#allocation11 + $0x60] sm:$0xff]
        %v2363 = vld [vmem:[#allocation11 + $0x68] sm:$0xff]
        %v2364 = vld [vmem:[#allocation11 + $0x70] sm:$0xff]
        %v2365 = vld [vmem:[#allocation11 + $0x78] sm:$0xff]
        %v2366 = vld [vmem:[#allocation11 + $0x80] sm:$0xff]
        %v2367 = vld [vmem:[#allocation11 + $0x88] sm:$0xff]
        %v2368 = vld [vmem:[#allocation11 + $0x90] sm:$0xff]
        %v2369 = vld [vmem:[#allocation11 + $0x98] sm:$0xff]
        %v2370 = vld [vmem:[#allocation11 + $0xa0] sm:$0xff]
        %v2371 = vld [vmem:[#allocation11 + $0xa8] sm:$0xff]
        %v2372 = vld [vmem:[#allocation11 + $0xb0] sm:$0xff]
        %v2373 = vld [vmem:[#allocation11 + $0xb8] sm:$0xff]
        %v2374 = vld [vmem:[#allocation11 + $0xc0] sm:$0xff]
        %v2375 = vld [vmem:[#allocation11 + $0xc8] sm:$0xff]
        %v2376 = vld [vmem:[#allocation11 + $0xd0] sm:$0xff]
        %v2377 = vld [vmem:[#allocation11 + $0xd8] sm:$0xff]
        %v2378 = vld [vmem:[#allocation11 + $0xe0] sm:$0xff]
        %v2379 = vld [vmem:[#allocation11 + $0xe8] sm:$0xff]
        %v2380 = vld [vmem:[#allocation11 + $0xf0] sm:$0xff]
        %v2381 = vld [vmem:[#allocation11 + $0xf8] sm:$0xff]
        %v2382 = vld [vmem:[#allocation11 + $0x100] sm:$0xff]
        %v2383 = vld [vmem:[#allocation11 + $0x108] sm:$0xff]
        %v2384 = vld [vmem:[#allocation11 + $0x110] sm:$0xff]
        %v2385 = vld [vmem:[#allocation11 + $0x118] sm:$0xff]
        %v2386 = vld [vmem:[#allocation11 + $0x120] sm:$0xff]
        %v2387 = vld [vmem:[#allocation11 + $0x128] sm:$0xff]
        %v2388 = vld [vmem:[#allocation11 + $0x130] sm:$0xff]
        %v2389 = vld [vmem:[#allocation11 + $0x138] sm:$0xff]
        %v2390 = vld [vmem:[#allocation11 + $0x140] sm:$0xff]
        %v2391 = vld [vmem:[#allocation11 + $0x148] sm:$0xff]
        %v2392 = vld [vmem:[#allocation11 + $0x150] sm:$0xff]
        %v2393 = vld [vmem:[#allocation11 + $0x158] sm:$0xff]
        %v2394 = vld [vmem:[#allocation11 + $0x160] sm:$0xff]
        %v2395 = vld [vmem:[#allocation11 + $0x168] sm:$0xff]
        %v2396 = vld [vmem:[#allocation11 + $0x170] sm:$0xff]
        %v2397 = vld [vmem:[#allocation11 + $0x178] sm:$0xff]
        %v2398 = vld [vmem:[#allocation11 + $0x180] sm:$0xff]
        %v2399 = vld [vmem:[#allocation11 + $0x188] sm:$0xff]
        %v2400 = vld [vmem:[#allocation11 + $0x190] sm:$0xff]
        %v2401 = vld [vmem:[#allocation11 + $0x198] sm:$0xff]
        %v2402 = vld [vmem:[#allocation11 + $0x1a0] sm:$0xff]
        %v2403 = vld [vmem:[#allocation11 + $0x1a8] sm:$0xff]
        %v2404 = vld [vmem:[#allocation11 + $0x1b0] sm:$0xff]
        %v2405 = vld [vmem:[#allocation11 + $0x1b8] sm:$0xff]
        %v2406 = vld [vmem:[#allocation11 + $0x1c0] sm:$0xff]
        %v2407 = vld [vmem:[#allocation11 + $0x1c8] sm:$0xff]
        %v2408 = vld [vmem:[#allocation11 + $0x1d0] sm:$0xff]
        %v2409 = vld [vmem:[#allocation11 + $0x1d8] sm:$0xff]
        %v2410 = vld [vmem:[#allocation11 + $0x1e0] sm:$0xff]
        %v2411 = vld [vmem:[#allocation11 + $0x1e8] sm:$0xff]
        %v2412 = vld [vmem:[#allocation11 + $0x1f0] sm:$0xff]
        %v2413 = vld [vmem:[#allocation11 + $0x1f8] sm:$0xff]
        %v2414 = vld [vmem:[#allocation11 + $0x200] sm:$0xff]
        %v2415 = vld [vmem:[#allocation11 + $0x208] sm:$0xff]
        %v2416 = vld [vmem:[#allocation11 + $0x210] sm:$0xff]
        %v2417 = vld [vmem:[#allocation11 + $0x218] sm:$0xff]
        %v2418 = vld [vmem:[#allocation11 + $0x220] sm:$0xff]
        %v2419 = vld [vmem:[#allocation11 + $0x228] sm:$0xff]
        %v2420 = vld [vmem:[#allocation11 + $0x230] sm:$0xff]
        %v2421 = vld [vmem:[#allocation11 + $0x238] sm:$0xff]
        %v2422 = vld [vmem:[#allocation11 + $0x240] sm:$0xff]
        %v2423 = vld [vmem:[#allocation11 + $0x248] sm:$0xff]
        %v2424 = vld [vmem:[#allocation11 + $0x250] sm:$0xff]
        %v2425 = vld [vmem:[#allocation11 + $0x258] sm:$0xff]
        %v2426 = vld [vmem:[#allocation11 + $0x260] sm:$0xff]
        %v2427 = vld [vmem:[#allocation11 + $0x268] sm:$0xff]
        %v2428 = vld [vmem:[#allocation11 + $0x270] sm:$0xff]
        %v2429 = vld [vmem:[#allocation11 + $0x278] sm:$0xff]
        %v2430 = vld [vmem:[#allocation11 + $0x280] sm:$0xff]
        %v2431 = vld [vmem:[#allocation11 + $0x288] sm:$0xff]
        %v2432 = vld [vmem:[#allocation11 + $0x290] sm:$0xff]
        %v2433 = vld [vmem:[#allocation11 + $0x298] sm:$0xff]
        %v2434 = vld [vmem:[#allocation11 + $0x2a0] sm:$0xff]
        %v2435 = vld [vmem:[#allocation11 + $0x2a8] sm:$0xff]
        %v2436 = vld [vmem:[#allocation11 + $0x2b0] sm:$0xff]
        %v2437 = vld [vmem:[#allocation11 + $0x2b8] sm:$0xff]
        %v2438 = vld [vmem:[#allocation11 + $0x2c0] sm:$0xff]
        %v2439 = vld [vmem:[#allocation11 + $0x2c8] sm:$0xff]
        %v2440 = vld [vmem:[#allocation11 + $0x2d0] sm:$0xff]
        %v2441 = vld [vmem:[#allocation11 + $0x2d8] sm:$0xff]
        %v2442 = vld [vmem:[#allocation11 + $0x2e0] sm:$0xff]
        %v2443 = vld [vmem:[#allocation11 + $0x2e8] sm:$0xff]
        %v2444 = vld [vmem:[#allocation11 + $0x2f0] sm:$0xff]
        %v2445 = vld [vmem:[#allocation11 + $0x2f8] sm:$0xff]
        %v2446 = vld [vmem:[#allocation11 + $0x300] sm:$0xff]
        %v2447 = vld [vmem:[#allocation11 + $0x308] sm:$0xff]
        %v2448 = vld [vmem:[#allocation11 + $0x310] sm:$0xff]
        %v2449 = vld [vmem:[#allocation11 + $0x318] sm:$0xff]
        %v2450 = vld [vmem:[#allocation11 + $0x320] sm:$0xff]
        %v2451 = vld [vmem:[#allocation11 + $0x328] sm:$0xff]
        %v2452 = vld [vmem:[#allocation11 + $0x330] sm:$0xff]
        %v2453 = vld [vmem:[#allocation11 + $0x338] sm:$0xff]
        %v2454 = vld [vmem:[#allocation11 + $0x340] sm:$0xff]
        %v2455 = vld [vmem:[#allocation11 + $0x348] sm:$0xff]
        %v2456 = vld [vmem:[#allocation11 + $0x350] sm:$0xff]
        %v2457 = vld [vmem:[#allocation11 + $0x358] sm:$0xff]
        %v2458 = vld [vmem:[#allocation11 + $0x360] sm:$0xff]
        %v2459 = vld [vmem:[#allocation11 + $0x368] sm:$0xff]
        %v2460 = vld [vmem:[#allocation11 + $0x370] sm:$0xff]
        %v2461 = vld [vmem:[#allocation11 + $0x378] sm:$0xff]
        %v2462 = vld [vmem:[#allocation11 + $0x380] sm:$0xff]
        %v2463 = vld [vmem:[#allocation11 + $0x388] sm:$0xff]
        %v2464 = vld [vmem:[#allocation11 + $0x390] sm:$0xff]
        %v2465 = vld [vmem:[#allocation11 + $0x398] sm:$0xff]
        %v2466 = vld [vmem:[#allocation11 + $0x3a0] sm:$0xff]
        %v2467 = vld [vmem:[#allocation11 + $0x3a8] sm:$0xff]
        %v2468 = vld [vmem:[#allocation11 + $0x3b0] sm:$0xff]
        %v2469 = vld [vmem:[#allocation11 + $0x3b8] sm:$0xff]
        %v2470 = vld [vmem:[#allocation11 + $0x3c0] sm:$0xff]
        %v2471 = vld [vmem:[#allocation11 + $0x3c8] sm:$0xff]
        %v2472 = vld [vmem:[#allocation11 + $0x3d0] sm:$0xff]
        %v2473 = vld [vmem:[#allocation11 + $0x3d8] sm:$0xff]
        %v2474 = vld [vmem:[#allocation11 + $0x3e0] sm:$0xff]
        %v2475 = vld [vmem:[#allocation11 + $0x3e8] sm:$0xff]
        %v2476 = vld [vmem:[#allocation11 + $0x3f0] sm:$0xff]
        %v2477 = vld [vmem:[#allocation11 + $0x3f8] sm:$0xff]
        %v2478 = vld [vmem:[#allocation11 + $0x400] sm:$0xff]
        %v2479 = vld [vmem:[#allocation11 + $0x408] sm:$0xff]
        %v2480 = vld [vmem:[#allocation11 + $0x410] sm:$0xff]
        %v2481 = vld [vmem:[#allocation11 + $0x418] sm:$0xff]
        %v2482 = vld [vmem:[#allocation11 + $0x420] sm:$0xff]
        %v2483 = vld [vmem:[#allocation11 + $0x428] sm:$0xff]
        %v2484 = vld [vmem:[#allocation11 + $0x430] sm:$0xff]
        %v2485 = vld [vmem:[#allocation11 + $0x438] sm:$0xff]
        %v2486 = vld [vmem:[#allocation11 + $0x440] sm:$0xff]
        %v2487 = vld [vmem:[#allocation11 + $0x448] sm:$0xff]
        %v2488 = vld [vmem:[#allocation11 + $0x450] sm:$0xff]
        %v2489 = vld [vmem:[#allocation11 + $0x458] sm:$0xff]
        %v2490 = vld [vmem:[#allocation11 + $0x460] sm:$0xff]
        %v2491 = vld [vmem:[#allocation11 + $0x468] sm:$0xff]
        %v2492 = vld [vmem:[#allocation11 + $0x470] sm:$0xff]
        %v2493 = vld [vmem:[#allocation11 + $0x478] sm:$0xff]
        %v2494 = vld [vmem:[#allocation11 + $0x480] sm:$0xff]
        %v2495 = vld [vmem:[#allocation11 + $0x488] sm:$0xff]
        %v2496 = vld [vmem:[#allocation11 + $0x490] sm:$0xff]
        %v2497 = vld [vmem:[#allocation11 + $0x498] sm:$0xff]
        %v2498 = vld [vmem:[#allocation11 + $0x4a0] sm:$0xff]
        %v2499 = vld [vmem:[#allocation11 + $0x4a8] sm:$0xff]
        %v2500 = vld [vmem:[#allocation11 + $0x4b0] sm:$0xff]
        %v2501 = vld [vmem:[#allocation11 + $0x4b8] sm:$0xff]
        %v2502 = vld [vmem:[#allocation11 + $0x4c0] sm:$0xff]
        %v2503 = vld [vmem:[#allocation11 + $0x4c8] sm:$0xff]
        %v2504 = vld [vmem:[#allocation11 + $0x4d0] sm:$0xff]
        %v2505 = vld [vmem:[#allocation11 + $0x4d8] sm:$0xff]
        %v2506 = vld [vmem:[#allocation11 + $0x4e0] sm:$0xff]
        %v2507 = vld [vmem:[#allocation11 + $0x4e8] sm:$0xff]
        %v2508 = vld [vmem:[#allocation11 + $0x4f0] sm:$0xff]
        %v2509 = vld [vmem:[#allocation11 + $0x4f8] sm:$0xff]
        %v2510 = vld [vmem:[%s12] sm:$0x1f]
        %v2512 = vlaneseq
        %v2513 = vshrl.u32 %v2512, 7
        %v2514 = vsub.s32 0, %v2513
        %v2515 = vrot.slane %v2510, %v2514
        %v2516 = vlaneseq
        %v2517 = vshrl.u32 %v2516, 7
        %v2518 = vsub.s32 1, %v2517
        %v2519 = vrot.slane %v2510, %v2518
        %v2520 = vlaneseq
        %v2521 = vshrl.u32 %v2520, 7
        %v2522 = vsub.s32 2, %v2521
        %v2523 = vrot.slane %v2510, %v2522
        %v2524 = vlaneseq
        %v2525 = vshrl.u32 %v2524, 7
        %v2526 = vsub.s32 3, %v2525
        %v2527 = vrot.slane %v2510, %v2526
        %v2528 = vlaneseq
        %v2529 = vshrl.u32 %v2528, 7
        %v2530 = vsub.s32 4, %v2529
        %v2531 = vrot.slane %v2510, %v2530
        %2537 = vmatprep.subr.mxu0 %v2426
        %2538 = vmatpush1.msra.mxu0 %v2425
        %2539 = vmatprep.subr.mxu0 %v2421
        %2540 = vmatpush1.msra.mxu0 %v2420
        %2541 = vmatprep.subr.mxu0 %v2416
        %2542 = vmatpush1.msra.mxu0 %v2415
        %2543 = vmatprep.subr.mxu0 %v2411
        %2544 = vmatpush1.msra.mxu0 %v2410
        %2545 = vmatprep.subr.mxu0 %v2406
        %2546 = vmatpush1.msra.mxu0 %v2405
        %2547 = vmatprep.subr.mxu0 %v2401
        %2548 = vmatpush1.msra.mxu0 %v2400
        %2549 = vmatprep.subr.mxu0 %v2396
        %2550 = vmatpush1.msra.mxu0 %v2395
        %2551 = vmatprep.subr.mxu0 %v2391
        %2552 = vmatpush1.msra.mxu0 %v2390
        %2553 = vmatprep.subr.mxu0 %v2386
        %2554 = vmatpush1.msra.mxu0 %v2385
        %2555 = vmatprep.subr.mxu0 %v2381
        %2556 = vmatpush1.msra.mxu0 %v2380
        %2557 = vmatprep.subr.mxu0 %v2376
        %2558 = vmatpush1.msra.mxu0 %v2375
        %2559 = vmatprep.subr.mxu0 %v2371
        %2560 = vmatpush1.msra.mxu0 %v2370
        %2561 = vmatprep.subr.mxu0 %v2366
        %2562 = vmatpush1.msra.mxu0 %v2365
        %2563 = vmatprep.subr.mxu0 %v2361
        %2564 = vmatpush1.msra.mxu0 %v2360
        %2565 = vmatprep.subr.mxu0 %v2356
        %2566 = vmatpush1.msra.mxu0 %v2355
        %2567 = vmatprep.subr.mxu0 %v2351
        %2568 = vmatpush1.msra.mxu0 %v2350
        %2569 = vmatprep.subr.mxu0 %v2506
        %2570 = vmatpush2.msra.mxu0 %v2505
        %2571 = vmatprep.subr.mxu0 %v2501
        %2572 = vmatpush2.msra.mxu0 %v2500
        %2573 = vmatprep.subr.mxu0 %v2496
        %2574 = vmatpush2.msra.mxu0 %v2495
        %2575 = vmatprep.subr.mxu0 %v2491
        %2576 = vmatpush2.msra.mxu0 %v2490
        %2577 = vmatprep.subr.mxu0 %v2486
        %2578 = vmatpush2.msra.mxu0 %v2485
        %2579 = vmatprep.subr.mxu0 %v2481
        %2580 = vmatpush2.msra.mxu0 %v2480
        %2581 = vmatprep.subr.mxu0 %v2476
        %2582 = vmatpush2.msra.mxu0 %v2475
        %2583 = vmatprep.subr.mxu0 %v2471
        %2584 = vmatpush2.msra.mxu0 %v2470
        %2585 = vmatprep.subr.mxu0 %v2466
        %2586 = vmatpush2.msra.mxu0 %v2465
        %2587 = vmatprep.subr.mxu0 %v2461
        %2588 = vmatpush2.msra.mxu0 %v2460
        %2589 = vmatprep.subr.mxu0 %v2456
        %2590 = vmatpush2.msra.mxu0 %v2455
        %2591 = vmatprep.subr.mxu0 %v2451
        %2592 = vmatpush2.msra.mxu0 %v2450
        %2593 = vmatprep.subr.mxu0 %v2446
        %2594 = vmatpush2.msra.mxu0 %v2445
        %2595 = vmatprep.subr.mxu0 %v2441
        %2596 = vmatpush2.msra.mxu0 %v2440
        %2597 = vmatprep.subr.mxu0 %v2436
        %2598 = vmatpush2.msra.mxu0 %v2435
        %2599 = vmatprep.subr.mxu0 %v2431
        %2600 = vmatpush2.msra.mxu0 %v2430
        %2601 = vmatprep.mubr.f32.mxu0 %v819
        %2602 = vmatmul.mubr.f32.gmra.mxu0 %v818
        %v2603 = vpop.f32.mrf.mxu0
        %v2604 = vadd.f32 %v2515, %v2603
        %v2605 = vpop.f32.mrf.mxu0
        %v2606 = vadd.f32 %v2519, %v2605
        %2607 = vdwg.mxu0
        %2608 = vmatprep.subr.mxu0 %v2428
        %2609 = vmatpush1.msra.mxu0 %v2427
        %2610 = vmatprep.subr.mxu0 %v2423
        %2611 = vmatpush1.msra.mxu0 %v2422
        %2612 = vmatprep.subr.mxu0 %v2418
        %2613 = vmatpush1.msra.mxu0 %v2417
        %2614 = vmatprep.subr.mxu0 %v2413
        %2615 = vmatpush1.msra.mxu0 %v2412
        %2616 = vmatprep.subr.mxu0 %v2408
        %2617 = vmatpush1.msra.mxu0 %v2407
        %2618 = vmatprep.subr.mxu0 %v2403
        %2619 = vmatpush1.msra.mxu0 %v2402
        %2620 = vmatprep.subr.mxu0 %v2398
        %2621 = vmatpush1.msra.mxu0 %v2397
        %2622 = vmatprep.subr.mxu0 %v2393
        %2623 = vmatpush1.msra.mxu0 %v2392
        %2624 = vmatprep.subr.mxu0 %v2388
        %2625 = vmatpush1.msra.mxu0 %v2387
        %2626 = vmatprep.subr.mxu0 %v2383
        %2627 = vmatpush1.msra.mxu0 %v2382
        %2628 = vmatprep.subr.mxu0 %v2378
        %2629 = vmatpush1.msra.mxu0 %v2377
        %2630 = vmatprep.subr.mxu0 %v2373
        %2631 = vmatpush1.msra.mxu0 %v2372
        %2632 = vmatprep.subr.mxu0 %v2368
        %2633 = vmatpush1.msra.mxu0 %v2367
        %2634 = vmatprep.subr.mxu0 %v2363
        %2635 = vmatpush1.msra.mxu0 %v2362
        %2636 = vmatprep.subr.mxu0 %v2358
        %2637 = vmatpush1.msra.mxu0 %v2357
        %2638 = vmatprep.subr.mxu0 %v2353
        %2639 = vmatpush1.msra.mxu0 %v2352
        %2640 = vmatprep.subr.mxu0 %v2508
        %2641 = vmatpush2.msra.mxu0 %v2507
        %2642 = vmatprep.subr.mxu0 %v2503
        %2643 = vmatpush2.msra.mxu0 %v2502
        %2644 = vmatprep.subr.mxu0 %v2498
        %2645 = vmatpush2.msra.mxu0 %v2497
        %2646 = vmatprep.subr.mxu0 %v2493
        %2647 = vmatpush2.msra.mxu0 %v2492
        %2648 = vmatprep.subr.mxu0 %v2488
        %2649 = vmatpush2.msra.mxu0 %v2487
        %2650 = vmatprep.subr.mxu0 %v2483
        %2651 = vmatpush2.msra.mxu0 %v2482
        %2652 = vmatprep.subr.mxu0 %v2478
        %2653 = vmatpush2.msra.mxu0 %v2477
        %2654 = vmatprep.subr.mxu0 %v2473
        %2655 = vmatpush2.msra.mxu0 %v2472
        %2656 = vmatprep.subr.mxu0 %v2468
        %2657 = vmatpush2.msra.mxu0 %v2467
        %2658 = vmatprep.subr.mxu0 %v2463
        %2659 = vmatpush2.msra.mxu0 %v2462
        %2660 = vmatprep.subr.mxu0 %v2458
        %2661 = vmatpush2.msra.mxu0 %v2457
        %2662 = vmatprep.subr.mxu0 %v2453
        %2663 = vmatpush2.msra.mxu0 %v2452
        %2664 = vmatprep.subr.mxu0 %v2448
        %2665 = vmatpush2.msra.mxu0 %v2447
        %2666 = vmatprep.subr.mxu0 %v2443
        %2667 = vmatpush2.msra.mxu0 %v2442
        %2668 = vmatprep.subr.mxu0 %v2438
        %2669 = vmatpush2.msra.mxu0 %v2437
        %2670 = vmatprep.subr.mxu0 %v2433
        %2671 = vmatpush2.msra.mxu0 %v2432
        %2672 = vmatprep.mubr.f32.mxu0 %v819
        %2673 = vmatmul.mubr.f32.gmra.mxu0 %v818
        %v2674 = vpop.f32.mrf.mxu0
        %v2675 = vadd.f32 %v2523, %v2674
        %v2676 = vpop.f32.mrf.mxu0
        %v2677 = vadd.f32 %v2527, %v2676
        %2678 = vdwg.mxu0
        %2679 = vmatprep.subr.mxu0 0.0
        %2680 = vmatpush1.msra.mxu0 %v2429
        %2681 = vmatprep.subr.mxu0 0.0
        %2682 = vmatpush1.msra.mxu0 %v2424
        %2683 = vmatprep.subr.mxu0 0.0
        %2684 = vmatpush1.msra.mxu0 %v2419
        %2685 = vmatprep.subr.mxu0 0.0
        %2686 = vmatpush1.msra.mxu0 %v2414
        %2687 = vmatprep.subr.mxu0 0.0
        %2688 = vmatpush1.msra.mxu0 %v2409
        %2689 = vmatprep.subr.mxu0 0.0
        %2690 = vmatpush1.msra.mxu0 %v2404
        %2691 = vmatprep.subr.mxu0 0.0
        %2692 = vmatpush1.msra.mxu0 %v2399
        %2693 = vmatprep.subr.mxu0 0.0
        %2694 = vmatpush1.msra.mxu0 %v2394
        %2695 = vmatprep.subr.mxu0 0.0
        %2696 = vmatpush1.msra.mxu0 %v2389
        %2697 = vmatprep.subr.mxu0 0.0
        %2698 = vmatpush1.msra.mxu0 %v2384
        %2699 = vmatprep.subr.mxu0 0.0
        %2700 = vmatpush1.msra.mxu0 %v2379
        %2701 = vmatprep.subr.mxu0 0.0
        %2702 = vmatpush1.msra.mxu0 %v2374
        %2703 = vmatprep.subr.mxu0 0.0
        %2704 = vmatpush1.msra.mxu0 %v2369
        %2705 = vmatprep.subr.mxu0 0.0
        %2706 = vmatpush1.msra.mxu0 %v2364
        %2707 = vmatprep.subr.mxu0 0.0
        %2708 = vmatpush1.msra.mxu0 %v2359
        %2709 = vmatprep.subr.mxu0 0.0
        %2710 = vmatpush1.msra.mxu0 %v2354
        %2711 = vmatprep.subr.mxu0 0.0
        %2712 = vmatpush2.msra.mxu0 %v2509
        %2713 = vmatprep.subr.mxu0 0.0
        %2714 = vmatpush2.msra.mxu0 %v2504
        %2715 = vmatprep.subr.mxu0 0.0
        %2716 = vmatpush2.msra.mxu0 %v2499
        %2717 = vmatprep.subr.mxu0 0.0
        %2718 = vmatpush2.msra.mxu0 %v2494
        %2719 = vmatprep.subr.mxu0 0.0
        %2720 = vmatpush2.msra.mxu0 %v2489
        %2721 = vmatprep.subr.mxu0 0.0
        %2722 = vmatpush2.msra.mxu0 %v2484
        %2723 = vmatprep.subr.mxu0 0.0
        %2724 = vmatpush2.msra.mxu0 %v2479
        %2725 = vmatprep.subr.mxu0 0.0
        %2726 = vmatpush2.msra.mxu0 %v2474
        %2727 = vmatprep.subr.mxu0 0.0
        %2728 = vmatpush2.msra.mxu0 %v2469
        %2729 = vmatprep.subr.mxu0 0.0
        %2730 = vmatpush2.msra.mxu0 %v2464
        %2731 = vmatprep.subr.mxu0 0.0
        %2732 = vmatpush2.msra.mxu0 %v2459
        %2733 = vmatprep.subr.mxu0 0.0
        %2734 = vmatpush2.msra.mxu0 %v2454
        %2735 = vmatprep.subr.mxu0 0.0
        %2736 = vmatpush2.msra.mxu0 %v2449
        %2737 = vmatprep.subr.mxu0 0.0
        %2738 = vmatpush2.msra.mxu0 %v2444
        %2739 = vmatprep.subr.mxu0 0.0
        %2740 = vmatpush2.msra.mxu0 %v2439
        %2741 = vmatprep.subr.mxu0 0.0
        %2742 = vmatpush2.msra.mxu0 %v2434
        %2743 = vmatprep.mubr.f32.mxu0 %v819
        %2744 = vmatmul.mubr.f32.gmra.mxu0 %v818
        %v2745 = vpop.f32.mrf.mxu0
        %v2746 = vadd.f32 %v2531, %v2745
        %v2747 = vpop.f32.mrf.mxu0
        %2748 = vdwg.mxu0
        %v2749 = vxor.u32 %v2604, 2147483648
        %v2750 = vxor.u32 %v2606, 2147483648
        %v2751 = vxor.u32 %v2675, 2147483648
        %v2752 = vmul.f32 %v2749, 1.442695
        %v2753 = vpow.pop %v2752
        %v2754 = vmul.f32 %v2750, 1.442695
        %v2755 = vpow.pop %v2754
        %v2756 = vmul.f32 %v2751, 1.442695
        %v2757 = vpow.pop %v2756
        %v2758 = vadd.f32 %v2753, 1.0
        %v2759 = vadd.f32 %v2755, 1.0
        %v2760 = vadd.f32 %v2757, 1.0
        %v2761 = vrcp.pop %v2758
        %v2762 = vmul.f32 1.0, %v2761
        %v2763 = vrcp.pop %v2759
        %v2764 = vmul.f32 1.0, %v2763
        %v2765 = vrcp.pop %v2760
        %v2766 = vmul.f32 1.0, %v2765
        %vm2775 = vcmask 1041409
        %v2776 = vsel %vm2775, %v1624, %v1622
        %vm2777 = vcmask 1042434
        %v2778 = vsel %vm2777, %v1626, %v2776
        %vm2779 = vcmask 1043459
        %v2780 = vsel %vm2779, %v1628, %v2778
        %vm2781 = vcmask 1044484
        %v2782 = vsel %vm2781, %v1630, %v2780
        %vm2783 = vcmask 1045509
        %v2784 = vsel %vm2783, %v1632, %v2782
        %vm2785 = vcmask 1046534
        %v2786 = vsel %vm2785, %v1634, %v2784
        %vm2787 = vcmask 1047559
        %v2788 = vsel %vm2787, %v1636, %v2786
        %v2798 = vsel %vm2775, %v2337, %v2335
        %v2799 = vsel %vm2777, %v2339, %v2798
        %v2800 = vsel %vm2779, %v2341, %v2799
        %v2801 = vsel %vm2781, %v2343, %v2800
        %v2802 = vsel %vm2783, %v2345, %v2801
        %v2803 = vsel %vm2785, %v2347, %v2802
        %v2804 = vsel %vm2787, %v2349, %v2803
        %v2806 = vld [vmem:[%s13] sm:$0xff]
        %v2807 = vld [vmem:[%s13 + $0x8] sm:$0xff]
        %v2808 = vld [vmem:[%s13 + $0x10] sm:$0xff]
        %v2809 = vld [vmem:[%s13 + $0x18] sm:$0xff]
        %v2810 = vld [vmem:[%s13 + $0x20] sm:$0xff]
        %v2811 = vld [vmem:[%s13 + $0x28] sm:$0xff]
        %v2812 = vld [vmem:[%s13 + $0x30] sm:$0xff]
        %v2813 = vld [vmem:[%s13 + $0x38] sm:$0xff]
        %v2814 = vld [vmem:[%s13 + $0x40] sm:$0xff]
        %v2815 = vld [vmem:[%s13 + $0x48] sm:$0xff]
        %v2816 = vld [vmem:[%s13 + $0x50] sm:$0xff]
        %v2817 = vld [vmem:[%s13 + $0x58] sm:$0xff]
        %v2818 = vld [vmem:[%s13 + $0x60] sm:$0xff]
        %v2819 = vld [vmem:[%s13 + $0x68] sm:$0xff]
        %v2820 = vld [vmem:[%s13 + $0x70] sm:$0xff]
        %v2821 = vld [vmem:[%s13 + $0x78] sm:$0xff]
        %v2822 = vld [vmem:[%s13 + $0x80] sm:$0xff]
        %v2823 = vld [vmem:[%s13 + $0x88] sm:$0xff]
        %v2824 = vld [vmem:[%s13 + $0x90] sm:$0xff]
        %v2825 = vld [vmem:[%s13 + $0x98] sm:$0xff]
        %v2826 = vld [vmem:[%s13 + $0xa0] sm:$0xff]
        %v2827 = vld [vmem:[%s13 + $0xa8] sm:$0xff]
        %v2828 = vld [vmem:[%s13 + $0xb0] sm:$0xff]
        %v2829 = vld [vmem:[%s13 + $0xb8] sm:$0xff]
        %v2830 = vld [vmem:[%s13 + $0xc0] sm:$0xff]
        %v2831 = vld [vmem:[%s13 + $0xc8] sm:$0xff]
        %v2832 = vld [vmem:[%s13 + $0xd0] sm:$0xff]
        %v2833 = vld [vmem:[%s13 + $0xd8] sm:$0xff]
        %v2834 = vld [vmem:[%s13 + $0xe0] sm:$0xff]
        %v2835 = vld [vmem:[%s13 + $0xe8] sm:$0xff]
        %v2836 = vld [vmem:[%s13 + $0xf0] sm:$0xff]
        %v2837 = vld [vmem:[%s13 + $0xf8] sm:$0xff]
        %v2838 = vld [vmem:[%s13 + $0x100] sm:$0xff]
        %v2839 = vld [vmem:[%s13 + $0x108] sm:$0xff]
        %v2840 = vld [vmem:[%s13 + $0x110] sm:$0xff]
        %v2841 = vld [vmem:[%s13 + $0x118] sm:$0xff]
        %v2842 = vld [vmem:[%s13 + $0x120] sm:$0xff]
        %v2843 = vld [vmem:[%s13 + $0x128] sm:$0xff]
        %v2844 = vld [vmem:[%s13 + $0x130] sm:$0xff]
        %v2845 = vld [vmem:[%s13 + $0x138] sm:$0xff]
        %v2846 = vld [vmem:[%s13 + $0x140] sm:$0xff]
        %v2847 = vld [vmem:[%s13 + $0x148] sm:$0xff]
        %v2848 = vld [vmem:[%s13 + $0x150] sm:$0xff]
        %v2849 = vld [vmem:[%s13 + $0x158] sm:$0xff]
        %v2850 = vld [vmem:[%s13 + $0x160] sm:$0xff]
        %v2851 = vld [vmem:[%s13 + $0x168] sm:$0xff]
        %v2852 = vld [vmem:[%s13 + $0x170] sm:$0xff]
        %v2853 = vld [vmem:[%s13 + $0x178] sm:$0xff]
        %v2854 = vld [vmem:[%s13 + $0x180] sm:$0xff]
        %v2855 = vld [vmem:[%s13 + $0x188] sm:$0xff]
        %v2856 = vld [vmem:[%s13 + $0x190] sm:$0xff]
        %v2857 = vld [vmem:[%s13 + $0x198] sm:$0xff]
        %v2858 = vld [vmem:[%s13 + $0x1a0] sm:$0xff]
        %v2859 = vld [vmem:[%s13 + $0x1a8] sm:$0xff]
        %v2860 = vld [vmem:[%s13 + $0x1b0] sm:$0xff]
        %v2861 = vld [vmem:[%s13 + $0x1b8] sm:$0xff]
        %v2862 = vld [vmem:[%s13 + $0x1c0] sm:$0xff]
        %v2863 = vld [vmem:[%s13 + $0x1c8] sm:$0xff]
        %v2864 = vld [vmem:[%s13 + $0x1d0] sm:$0xff]
        %v2865 = vld [vmem:[%s13 + $0x1d8] sm:$0xff]
        %v2866 = vld [vmem:[%s13 + $0x1e0] sm:$0xff]
        %v2867 = vld [vmem:[%s13 + $0x1e8] sm:$0xff]
        %v2868 = vld [vmem:[%s13 + $0x1f0] sm:$0xff]
        %v2869 = vld [vmem:[%s13 + $0x1f8] sm:$0xff]
        %2870 = vmatprep.subr.mxu0 %v2837
        %2871 = vmatpush1.msra.mxu0 %v2836
        %2872 = vmatprep.subr.mxu0 %v2835
        %2873 = vmatpush1.msra.mxu0 %v2834
        %2874 = vmatprep.subr.mxu0 %v2833
        %2875 = vmatpush1.msra.mxu0 %v2832
        %2876 = vmatprep.subr.mxu0 %v2831
        %2877 = vmatpush1.msra.mxu0 %v2830
        %2878 = vmatprep.subr.mxu0 %v2829
        %2879 = vmatpush1.msra.mxu0 %v2828
        %2880 = vmatprep.subr.mxu0 %v2827
        %2881 = vmatpush1.msra.mxu0 %v2826
        %2882 = vmatprep.subr.mxu0 %v2825
        %2883 = vmatpush1.msra.mxu0 %v2824
        %2884 = vmatprep.subr.mxu0 %v2823
        %2885 = vmatpush1.msra.mxu0 %v2822
        %2886 = vmatprep.subr.mxu0 %v2821
        %2887 = vmatpush1.msra.mxu0 %v2820
        %2888 = vmatprep.subr.mxu0 %v2819
        %2889 = vmatpush1.msra.mxu0 %v2818
        %2890 = vmatprep.subr.mxu0 %v2817
        %2891 = vmatpush1.msra.mxu0 %v2816
        %2892 = vmatprep.subr.mxu0 %v2815
        %2893 = vmatpush1.msra.mxu0 %v2814
        %2894 = vmatprep.subr.mxu0 %v2813
        %2895 = vmatpush1.msra.mxu0 %v2812
        %2896 = vmatprep.subr.mxu0 %v2811
        %2897 = vmatpush1.msra.mxu0 %v2810
        %2898 = vmatprep.subr.mxu0 %v2809
        %2899 = vmatpush1.msra.mxu0 %v2808
        %2900 = vmatprep.subr.mxu0 %v2807
        %2901 = vmatpush1.msra.mxu0 %v2806
        %2902 = vmatprep.subr.mxu0 %v2869
        %2903 = vmatpush2.msra.mxu0 %v2868
        %2904 = vmatprep.subr.mxu0 %v2867
        %2905 = vmatpush2.msra.mxu0 %v2866
        %2906 = vmatprep.subr.mxu0 %v2865
        %2907 = vmatpush2.msra.mxu0 %v2864
        %2908 = vmatprep.subr.mxu0 %v2863
        %2909 = vmatpush2.msra.mxu0 %v2862
        %2910 = vmatprep.subr.mxu0 %v2861
        %2911 = vmatpush2.msra.mxu0 %v2860
        %2912 = vmatprep.subr.mxu0 %v2859
        %2913 = vmatpush2.msra.mxu0 %v2858
        %2914 = vmatprep.subr.mxu0 %v2857
        %2915 = vmatpush2.msra.mxu0 %v2856
        %2916 = vmatprep.subr.mxu0 %v2855
        %2917 = vmatpush2.msra.mxu0 %v2854
        %2918 = vmatprep.subr.mxu0 %v2853
        %2919 = vmatpush2.msra.mxu0 %v2852
        %2920 = vmatprep.subr.mxu0 %v2851
        %2921 = vmatpush2.msra.mxu0 %v2850
        %2922 = vmatprep.subr.mxu0 %v2849
        %2923 = vmatpush2.msra.mxu0 %v2848
        %2924 = vmatprep.subr.mxu0 %v2847
        %2925 = vmatpush2.msra.mxu0 %v2846
        %2926 = vmatprep.subr.mxu0 %v2845
        %2927 = vmatpush2.msra.mxu0 %v2844
        %2928 = vmatprep.subr.mxu0 %v2843
        %2929 = vmatpush2.msra.mxu0 %v2842
        %2930 = vmatprep.subr.mxu0 %v2841
        %2931 = vmatpush2.msra.mxu0 %v2840
        %2932 = vmatprep.subr.mxu0 %v2839
        %2933 = vmatpush2.msra.mxu0 %v2838
        %2934 = vmatprep.mubr.f32.mxu0 %v2804
        %2935 = vmatmul.mubr.f32.gmra.mxu0 %v2788
        %v2936 = vpop.f32.mrf.mxu0
        %v2937 = vadd.f32 0.0, %v2936
        %v2938 = vpop.f32.mrf.mxu0
        %v2939 = vadd.f32 0.0, %v2938
        %2940 = vdwg.mxu0
        %v2941 = vadd.f32 %v2677, %v2937
        %v2942 = vadd.f32 %v2746, %v2939
        %v2943 = vld [vmem:[#allocation13] sm:$0x3]
        %v2945 = vlaneseq
        %v2946 = vshrl.u32 %v2945, 7
        %v2947 = vsub.s32 0, %v2946
        %v2948 = vrot.slane %v2943, %v2947
        %v2949 = vlaneseq
        %v2950 = vshrl.u32 %v2949, 7
        %v2951 = vsub.s32 1, %v2950
        %v2952 = vrot.slane %v2943, %v2951
        %v2955 = vadd.f32 %v2941, %v2948
        %v2956 = vadd.f32 %v2942, %v2952
        %v2957 = vmax.f32 %v2955, %v2956
        %v2958 = vld [vmem:[%s799] sm:$0xff]
        %v2959 = vmul.f32 %v2764, %v2958
        %v2960 = vmul.f32 %v2762, %v2957
        %v2961 = vadd.f32 %v2959, %v2960
        %v2962 = vtanh.pop %v2961
        %v2963 = vmul.f32 %v2766, %v2962
        %2964 = vst [vmem:[%s787] sm:$0xff] %v2961
        %2965 = vst [vmem:[%s780] sm:$0xff] %v2963
        %s2966 = sand.u32 %s412, 1
        %s2967 = scalar_lea.sflag [#allocation4], %s2966
        %s2968 = sand.u32 %s412, 1
        %s2969 = smul.addr %s2968, 8
        %s2970 = scalar_lea.vmem [#allocation14], %s2969
        %s2971 = sand.u32 %s438, 1
        %s2972 = scalar_lea.sflag [#allocation16], %s2971
        %s2973 = sand.u32 %s438, 1
        %s2974 = smul.addr %s2973, 8
        %s2975 = scalar_lea.vmem [#allocation15], %s2974
        // Predicated region
        $region109: #{tpu_custom_call.1} parent=79 // pred_check
          %p2976 = pneg %p422
        $region110: #{tpu_custom_call.1} parent=79 // pred_check_branch
          %2978 = sbr.rel (%p2976) target = $region112
        $region111: #{tpu_custom_call.1} parent=79 // pred_region
          %s2980 = ssub.s32 128, 128
          %2981 = vsyncadd %s2967, %s2980
          %s2982 = smul.addr %s44, 128
          %s2983 = scalar_lea.hbm %s15, %s2982
          %s2985 = sshll.u32 %s2970, 4
          %s2986 = int_to_ptr.vmem [resolvable:$true] %s2985
          %2988 = dma.vmem_to_hbm [thread:$0]  %s2986, 128, %s2983, %s2967
        $region112: #{tpu_custom_call.1} parent=79 // pred_fallthru
          _
        // Predicated region
        $region113: #{tpu_custom_call.1} parent=79 // pred_check
          %p2989 = pneg %p448
        $region114: #{tpu_custom_call.1} parent=79 // pred_check_branch
          %2991 = sbr.rel (%p2989) target = $region116
        $region115: #{tpu_custom_call.1} parent=79 // pred_region
          %s2993 = ssub.s32 128, 128
          %2994 = vsyncadd %s2972, %s2993
          %s2995 = smul.addr %s44, 128
          %s2996 = scalar_lea.hbm %s16, %s2995
          %s2998 = sshll.u32 %s2975, 4
          %s2999 = int_to_ptr.vmem [resolvable:$true] %s2998
          %3001 = dma.vmem_to_hbm [thread:$0]  %s2999, 128, %s2996, %s2972
        $region116: #{tpu_custom_call.1} parent=79 // pred_fallthru
          _
      $region80: #{tpu_custom_call.1} parent=5 // pred_fallthru
        _
      %p3002 = scmp.le.s32.totalorder 2, %s39
      // Predicated region
      $region117: #{tpu_custom_call.1} parent=5 // pred_check
        %p3003 = pneg %p3002
      $region118: #{tpu_custom_call.1} parent=5 // pred_check_branch
        %3005 = sbr.rel (%p3003) target = $region120
      $region119: #{tpu_custom_call.1} parent=5 // pred_region
        %s3006 = ssub.s32 %s39, 2
        // Predicated region
        $region121: #{tpu_custom_call.1} parent=119 // pred_check
          %p3007 = pneg %p428
        $region122: #{tpu_custom_call.1} parent=119 // pred_check_branch
          %3009 = sbr.rel (%p3007) target = $region124
        $region123: #{tpu_custom_call.1} parent=119 // pred_region
          %s3010 = sand.u32 %s413, 1
          %s3011 = scalar_lea.sflag [#allocation4], %s3010
          %s3012 = sand.u32 %s413, 1
          %s3013 = smul.addr %s3012, 8
          %s3014 = scalar_lea.vmem [#allocation14], %s3013
          %3015 = dma.done %s3011, 128
        $region124: #{tpu_custom_call.1} parent=119 // pred_fallthru
          _
        // Predicated region
        $region125: #{tpu_custom_call.1} parent=119 // pred_check
          %p3016 = pneg %p454
        $region126: #{tpu_custom_call.1} parent=119 // pred_check_branch
          %3018 = sbr.rel (%p3016) target = $region128
        $region127: #{tpu_custom_call.1} parent=119 // pred_region
          %s3019 = sand.u32 %s439, 1
          %s3020 = scalar_lea.sflag [#allocation16], %s3019
          %s3021 = sand.u32 %s439, 1
          %s3022 = smul.addr %s3021, 8
          %s3023 = scalar_lea.vmem [#allocation15], %s3022
          %3024 = dma.done %s3020, 128
        $region128: #{tpu_custom_call.1} parent=119 // pred_fallthru
          _
      $region120: #{tpu_custom_call.1} parent=5 // pred_fallthru
        _
    $region6: #{tpu_custom_call.1} parent=1 // loop_footer
      %s43 = sadd.s32 1, %s39
    $region7: #{tpu_custom_call.1} parent=1 // loop_footer_branch
      %38 = sbr.rel target = $region3
    $region8: #{tpu_custom_call.1} parent=1 // loop_exit
      _
    %3025 = vsyncpa [#allocation3], 1
    %s3026 = scalar_lea.sflag [#allocation3], 1
    %3027 = vsyncpa %s3026, 1
    %3028 = vsyncpa [#allocation6], 1
    %s3029 = scalar_lea.sflag [#allocation6], 1
    %3030 = vsyncpa %s3029, 1
    %3031 = vsyncpa [#allocation9], 1
    %s3032 = scalar_lea.sflag [#allocation9], 1
    %3033 = vsyncpa %s3032, 1
    %3034 = vsyncpa [#allocation12], 1
    %3035 = vsyncpa [#allocation4], 1
    %s3036 = scalar_lea.sflag [#allocation4], 1
    %3037 = vsyncpa %s3036, 1
    %3038 = vsyncpa [#allocation16], 1
    %s3039 = scalar_lea.sflag [#allocation16], 1
    %3040 = vsyncpa %s3039, 1

</llo_original>
